<compile_context>
chip_gen: v5e
topology: v5e:2x2
jax: 0.10.0
libtpu: 0.0.40
codegen_flags: <defaults>
</compile_context>

<pallas_src>
import math

import jax
import jax.numpy as jnp
from jax import lax
from jax.experimental import pallas as pl
from jax.experimental.pallas import tpu as pltpu


# ----------------------------- in-kernel helpers -----------------------------
def _mm(a, b):
    # MXU matmul: bf16 operands, f32 accumulation.
    return jnp.dot(a.astype(jnp.bfloat16), b.astype(jnp.bfloat16),
                   preferred_element_type=jnp.float32)


def _layernorm(x, gamma, beta, eps=1e-5):
    mu = jnp.mean(x, axis=-1, keepdims=True)
    var = jnp.mean((x - mu) ** 2, axis=-1, keepdims=True)
    return (x - mu) * lax.rsqrt(var + eps) * gamma + beta


# ------------------------------ fused forward kernel -------------------------
def anomaly_transformer_kernel(
        xin_ref, pe_ref, wtok_ref,
        wq_ref, bq_ref, wk_ref, bk_ref, wv_ref, bv_ref,
        ws_ref, bs_ref, wo_ref, bo_ref,
        g1_ref, be1_ref, wc1_ref, bc1_ref, wc2_ref, bc2_ref, g2_ref, be2_ref,
        gf_ref, bf_ref, wp_ref, bp_ref,
        out_ref, series_ref, sigma_ref,
        enc_scr):
    li = pl.program_id(1)
    n_layers = pl.num_programs(1)

    H = wq_ref.shape[1]
    E = wq_ref.shape[3]
    L, D = enc_scr.shape
    scale = jnp.float32(1.0 / math.sqrt(E))
    ln3 = jnp.float32(math.log(3.0))

    # ---- DataEmbedding (first layer step only, per batch element) -----------
    # Circular k=3 token conv was folded into one (3C -> D) matmul by the
    # wrapper; positional table is broadcast-added from its (L, D) form.
    @pl.when(li == 0)
    def _():
        enc_scr[...] = _mm(xin_ref[0], wtok_ref[...]) + pe_ref[...]

    xc = enc_scr[...]                                    # (L, D) f32
    xc_b = xc.astype(jnp.bfloat16)                       # cast once, reused

    # ---- sigma head: sigmoid(5x)+1e-5 ; 3**x - 1 ----------------------------
    sig = _mm(xc_b, ws_ref[0]) + bs_ref[0]               # (L, H)
    sig = jax.nn.sigmoid(sig * 5.0) + 1e-5
    sig = jnp.exp(sig * ln3) - 1.0
    sigma_ref[...] = sig[None, None]                     # compact (1,1,L,H)

    # ---- Q/K/V with head-split weights (no activation lane slicing) ---------
    # 1/sqrt(E) folded into q (O(L*D) multiply instead of O(H*L*L)).
    wq_l = wq_ref[0].astype(jnp.bfloat16); bq_l = bq_ref[0]
    wk_l = wk_ref[0].astype(jnp.bfloat16); bk_l = bk_ref[0]
    wv_l = wv_ref[0].astype(jnp.bfloat16); bv_l = bv_ref[0]
    q_heads, k_heads, v_heads = [], [], []
    for h in range(H):                                   # tiny static loop
        q_heads.append(((_mm(xc_b, wq_l[h]) + bq_l[h]) * scale)
                       .astype(jnp.bfloat16))            # (L, E)
        k_heads.append((_mm(xc_b, wk_l[h]) + bk_l[h]).astype(jnp.bfloat16))
        v_heads.append((_mm(xc_b, wv_l[h]) + bv_l[h]).astype(jnp.bfloat16))
    qs = jnp.stack(q_heads, axis=0)                      # (H, L, E) bf16
    ks = jnp.stack(k_heads, axis=0)

    # ---- series = softmax(scale * q k^T), all heads batched -----------------
    scores = jnp.einsum('hqe,hke->hqk', qs, ks,
                        preferred_element_type=jnp.float32)   # (H, L, L)
    scores = scores - jnp.max(scores, axis=-1, keepdims=True)
    num = jnp.exp(scores)
    series = num * pl.reciprocal(jnp.sum(num, axis=-1, keepdims=True),
                                 approx=True)
    series_ref[...] = series[None, None]                 # one coalesced store

    # ---- attention out: per-head PV, lane-concat, full-D Wout contraction ---
    series_b = series.astype(jnp.bfloat16)
    outs = [jnp.dot(series_b[h], v_heads[h], preferred_element_type=jnp.float32)
            for h in range(H)]
    attn_out = jnp.concatenate(outs, axis=-1)            # (L, D)
    new_x = _mm(attn_out, wo_ref[0]) + bo_ref[0]

    # ---- residual + norm1 + FFN (1x1 convs == linears) + residual + norm2 ---
    x1 = xc + new_x
    x1n = _layernorm(x1, g1_ref[0], be1_ref[0])
    # TODO(synk): torch F.gelu uses exact erf; tanh-approx gelu (EUP) used here.
    y = jax.nn.gelu(_mm(x1n, wc1_ref[0]) + bc1_ref[0], approximate=True)
    y = _mm(y, wc2_ref[0]) + bc2_ref[0]
    enc_new = _layernorm(x1n + y, g2_ref[0], be2_ref[0])
    enc_scr[...] = enc_new

    # ---- final encoder LayerNorm + output projection (last layer step) ------
    @pl.when(li == n_layers - 1)
    def _():
        xn = _layernorm(enc_new, gf_ref[...], bf_ref[...])
        out_ref[...] = (_mm(xn, wp_ref[...]) + bp_ref[...])[None]


# ---------------------------------- wrapper -----------------------------------
def _split_heads(w, b, H):
    # w: (nl, D, D) with output columns head-major (matches torch Linear +
    # .view(B, L, H, E)); b: (nl, 1, D).  Returns (nl, H, D, E) / (nl, H, 1, E).
    nl, D, _ = w.shape
    E = D // H
    wh = jnp.transpose(w.reshape(nl, D, H, E), (0, 2, 1, 3))
    bh = b.reshape(nl, H, E)[:, :, None, :]
    return wh, bh


def anomaly_transformer_forward(x, w_tok, pe, dist, layer_ws, gf, bf, wp, bp,
                                n_heads):
    B, L, C = x.shape
    D = w_tok.shape[1]
    H = n_heads
    E = D // H
    nl = layer_ws[0].shape[0]
    c_out = wp.shape[1]

    (wq, bq, wk, bk, wv, bv, ws, bs, wo, bo,
     g1, be1, wc1, bc1, wc2, bc2, g2, be2) = layer_ws
    F = wc1.shape[2]

    # Circular k=3 conv neighbourhood built in plain JAX (kept out of the
    # serial kernel body).  Row order [x_{t-1}; x_t; x_{t+1}] must match the
    # (3C, D) token-conv weight ordering when loading real checkpoints.
    xin = jnp.concatenate(
        [jnp.roll(x, 1, axis=1), x, jnp.roll(x, -1, axis=1)], axis=-1)  # (B,L,3C)

    wqh, bqh = _split_heads(wq, bq, H)
    wkh, bkh = _split_heads(wk, bk, H)
    wvh, bvh = _split_heads(wv, bv, H)

    grid = (B, nl)   # batch "parallel" (v7x second core), layer "arbitrary"

    lw = lambda b, l: (l, 0, 0)        # per-layer 3-D weight/bias
    lw4 = lambda b, l: (l, 0, 0, 0)    # per-layer 4-D head-split weight/bias
    shared2 = lambda b, l: (0, 0)      # shared 2-D params

    in_specs = [
        pl.BlockSpec((1, L, 3 * C), lambda b, l: (b, 0, 0)),   # xin
        pl.BlockSpec((L, D), shared2),                         # pe
        pl.BlockSpec((3 * C, D), shared2),                     # w_tok
        pl.BlockSpec((1, H, D, E), lw4),                       # Wq (head-split)
        pl.BlockSpec((1, H, 1, E), lw4),                       # bq
        pl.BlockSpec((1, H, D, E), lw4),                       # Wk
        pl.BlockSpec((1, H, 1, E), lw4),                       # bk
        pl.BlockSpec((1, H, D, E), lw4),                       # Wv
        pl.BlockSpec((1, H, 1, E), lw4),                       # bv
        pl.BlockSpec((1, D, H), lw),                           # Wsigma
        pl.BlockSpec((1, 1, H), lw),                           # bsigma
        pl.BlockSpec((1, D, D), lw),                           # Wout
        pl.BlockSpec((1, 1, D), lw),                           # bout
        pl.BlockSpec((1, 1, D), lw),                           # norm1 gamma
        pl.BlockSpec((1, 1, D), lw),                           # norm1 beta
        pl.BlockSpec((1, D, F), lw),                           # conv1 W
        pl.BlockSpec((1, 1, F), lw),                           # conv1 b
        pl.BlockSpec((1, F, D), lw),                           # conv2 W
        pl.BlockSpec((1, 1, D), lw),                           # conv2 b
        pl.BlockSpec((1, 1, D), lw),                           # norm2 gamma
        pl.BlockSpec((1, 1, D), lw),                           # norm2 beta
        pl.BlockSpec((1, D), shared2),                         # final LN gamma
        pl.BlockSpec((1, D), shared2),                         # final LN beta
        pl.BlockSpec((D, c_out), shared2),                     # projection W
        pl.BlockSpec((1, c_out), shared2),                     # projection b
    ]
    out_specs = [
        pl.BlockSpec((1, L, c_out), lambda b, l: (b, 0, 0)),        # out
        pl.BlockSpec((1, 1, H, L, L), lambda b, l: (l, b, 0, 0, 0)),  # series
        pl.BlockSpec((1, 1, L, H), lambda b, l: (l, b, 0, 0)),        # sigma
    ]
    out_shape = (
        jax.ShapeDtypeStruct((B, L, c_out), jnp.float32),
        jax.ShapeDtypeStruct((nl, B, H, L, L), jnp.float32),
        jax.ShapeDtypeStruct((nl, B, L, H), jnp.float32),
    )

    # NOTE(perf): default scoped-VMEM is ample at these block sizes; at
    # production win_size/d_model re-derive vmem_limit_bytes against the 64 MiB
    # v7x physical budget (2x(inputs+outputs)+scratch under ~48-56 MiB).
    out, series_all, sigma_all = pl.pallas_call(
        anomaly_transformer_kernel,
        out_shape=out_shape,
        grid_spec=pltpu.PrefetchScalarGridSpec(
            num_scalar_prefetch=0,
            grid=grid,
            in_specs=in_specs,
            out_specs=out_specs,
            scratch_shapes=[pltpu.VMEM((L, D), jnp.float32)]),   # enc carry
        compiler_params=pltpu.CompilerParams(
            dimension_semantics=("parallel", "arbitrary")),
    )(xin, pe, w_tok,
      wqh, bqh, wkh, bkh, wvh, bvh, ws, bs, wo, bo,
      g1, be1, wc1, bc1, wc2, bc2, g2, be2,
      gf, bf, wp, bp)

    # series already in PyTorch's (B, H, L, L) order per layer (no transpose).
    series_list = [series_all[i] for i in range(nl)]

    # prior recomputed here from sigma and |i-j| with an EXACT divide (pure
    # elementwise; avoids the kernel's largest writeback and approx-recip error).
    dist2 = (dist * dist)[None, None, :, :]
    inv_sqrt2pi = 1.0 / math.sqrt(2.0 * math.pi)
    prior_list, sigma_list = [], []
    for i in range(nl):
        sig = jnp.transpose(sigma_all[i], (0, 2, 1))[..., None]   # (B, H, L, 1)
        prior_list.append(inv_sqrt2pi / sig * jnp.exp(-dist2 / (2.0 * sig * sig)))
        sigma_list.append(jnp.broadcast_to(sig, (B, H, L, L)))
    return out, series_list, prior_list, sigma_list


# ----------------------------------- main -------------------------------------
if __name__ == "__main__":
    key = jax.random.PRNGKey(0)
    B, L = 2, 16                       # batch, win_size
    enc_in, c_out = 4, 4
    d_model, n_heads, e_layers, d_ff = 32, 4, 2, 64

    keys = iter(jax.random.split(key, 64))

    def init(shape, scale=0.1):
        return (scale * jax.random.normal(next(keys), shape)).astype(jnp.float32)

    # DataEmbedding: TokenEmbedding (circular conv1d, k=3, no bias) folded into
    # one (3*enc_in, d_model) matrix + sinusoidal positional table.
    w_tok = init((3 * enc_in, d_model))
    position = jnp.arange(L, dtype=jnp.float32)[:, None]
    div_term = jnp.exp(jnp.arange(0, d_model, 2, dtype=jnp.float32)
                       * (-math.log(10000.0) / d_model))
    pe = jnp.zeros((L, d_model), jnp.float32)
    pe = pe.at[:, 0::2].set(jnp.sin(position * div_term))
    pe = pe.at[:, 1::2].set(jnp.cos(position * div_term))

    nl = e_layers
    ones_d = jnp.ones((nl, 1, d_model), jnp.float32)
    zeros_d = jnp.zeros((nl, 1, d_model), jnp.float32)

    # Per-layer weights stacked on a leading layer axis; conv/linear weights
    # pre-transposed to (C_in, C_out).
    layer_ws = [
        init((nl, d_model, d_model)), init((nl, 1, d_model)),   # Wq, bq
        init((nl, d_model, d_model)), init((nl, 1, d_model)),   # Wk, bk
        init((nl, d_model, d_model)), init((nl, 1, d_model)),   # Wv, bv
        init((nl, d_model, n_heads)), init((nl, 1, n_heads)),   # Wsigma, bsigma
        init((nl, d_model, d_model)), init((nl, 1, d_model)),   # Wout, bout
        ones_d, zeros_d,                                        # norm1 gamma/beta
        init((nl, d_model, d_ff)), init((nl, 1, d_ff)),         # conv1 (1x1) W, b
        init((nl, d_ff, d_model)), init((nl, 1, d_model)),      # conv2 (1x1) W, b
        ones_d, zeros_d,                                        # norm2 gamma/beta
    ]

    gf = jnp.ones((1, d_model), jnp.float32)       # encoder final LayerNorm
    bf = jnp.zeros((1, d_model), jnp.float32)
    wp, bp = init((d_model, c_out)), init((1, c_out))   # projection Linear

    idx = jnp.arange(L, dtype=jnp.float32)
    dist = jnp.abs(idx[:, None] - idx[None, :])    # |i - j| distances

    x = jax.random.normal(next(keys), (B, L, enc_in), dtype=jnp.float32)

    result = anomaly_transformer_forward(
        x, w_tok, pe, dist, layer_ws, gf, bf, wp, bp, n_heads)
    jax.block_until_ready(result)
    print("KERNEL_OK")
</pallas_src>

<mosaic_0001>
module attributes {stable_mosaic.version = 11 : i64} {
  func.func @anomaly_transformer_kernel(%arg0: i32, %arg1: i32, %arg2: memref<1x16x12xf32, #tpu.memory_space<vmem>>, %arg3: memref<16x32xf32, #tpu.memory_space<vmem>>, %arg4: memref<12x32xf32, #tpu.memory_space<vmem>>, %arg5: memref<1x4x32x8xf32, #tpu.memory_space<vmem>>, %arg6: memref<1x4x1x8xf32, #tpu.memory_space<vmem>>, %arg7: memref<1x4x32x8xf32, #tpu.memory_space<vmem>>, %arg8: memref<1x4x1x8xf32, #tpu.memory_space<vmem>>, %arg9: memref<1x4x32x8xf32, #tpu.memory_space<vmem>>, %arg10: memref<1x4x1x8xf32, #tpu.memory_space<vmem>>, %arg11: memref<1x32x4xf32, #tpu.memory_space<vmem>>, %arg12: memref<1x1x4xf32, #tpu.memory_space<vmem>>, %arg13: memref<1x32x32xf32, #tpu.memory_space<vmem>>, %arg14: memref<1x1x32xf32, #tpu.memory_space<vmem>>, %arg15: memref<1x1x32xf32, #tpu.memory_space<vmem>>, %arg16: memref<1x1x32xf32, #tpu.memory_space<vmem>>, %arg17: memref<1x32x64xf32, #tpu.memory_space<vmem>>, %arg18: memref<1x1x64xf32, #tpu.memory_space<vmem>>, %arg19: memref<1x64x32xf32, #tpu.memory_space<vmem>>, %arg20: memref<1x1x32xf32, #tpu.memory_space<vmem>>, %arg21: memref<1x1x32xf32, #tpu.memory_space<vmem>>, %arg22: memref<1x1x32xf32, #tpu.memory_space<vmem>>, %arg23: memref<1x32xf32, #tpu.memory_space<vmem>>, %arg24: memref<1x32xf32, #tpu.memory_space<vmem>>, %arg25: memref<32x4xf32, #tpu.memory_space<vmem>>, %arg26: memref<1x4xf32, #tpu.memory_space<vmem>>, %arg27: memref<1x16x4xf32, #tpu.memory_space<vmem>>, %arg28: memref<1x1x4x16x16xf32, #tpu.memory_space<vmem>>, %arg29: memref<1x1x16x4xf32, #tpu.memory_space<vmem>>, %arg30: memref<16x32xf32, #tpu.memory_space<vmem>>) attributes {dimension_semantics = [#tpu.dimension_semantics<parallel>, #tpu.dimension_semantics<arbitrary>], iteration_bounds = array<i64: 2, 2>, scalar_prefetch = 0 : i64, scratch_operands = 1 : i64, tpu.core_type = #tpu.core_type<tc>, window_params = [{transform_indices = @transform_0, window_bounds = array<i64: 1, 16, 12>}, {pipeline_mode = #tpu.pipeline_mode<synchronous>, transform_indices = @transform_1, window_bounds = array<i64: 16, 32>}, {pipeline_mode = #tpu.pipeline_mode<synchronous>, transform_indices = @transform_2, window_bounds = array<i64: 12, 32>}, {transform_indices = @transform_3, window_bounds = array<i64: 1, 4, 32, 8>}, {transform_indices = @transform_4, window_bounds = array<i64: 1, 4, 1, 8>}, {transform_indices = @transform_5, window_bounds = array<i64: 1, 4, 32, 8>}, {transform_indices = @transform_6, window_bounds = array<i64: 1, 4, 1, 8>}, {transform_indices = @transform_7, window_bounds = array<i64: 1, 4, 32, 8>}, {transform_indices = @transform_8, window_bounds = array<i64: 1, 4, 1, 8>}, {transform_indices = @transform_9, window_bounds = array<i64: 1, 32, 4>}, {transform_indices = @transform_10, window_bounds = array<i64: 1, 1, 4>}, {transform_indices = @transform_11, window_bounds = array<i64: 1, 32, 32>}, {transform_indices = @transform_12, window_bounds = array<i64: 1, 1, 32>}, {transform_indices = @transform_13, window_bounds = array<i64: 1, 1, 32>}, {transform_indices = @transform_14, window_bounds = array<i64: 1, 1, 32>}, {transform_indices = @transform_15, window_bounds = array<i64: 1, 32, 64>}, {transform_indices = @transform_16, window_bounds = array<i64: 1, 1, 64>}, {transform_indices = @transform_17, window_bounds = array<i64: 1, 64, 32>}, {transform_indices = @transform_18, window_bounds = array<i64: 1, 1, 32>}, {transform_indices = @transform_19, window_bounds = array<i64: 1, 1, 32>}, {transform_indices = @transform_20, window_bounds = array<i64: 1, 1, 32>}, {pipeline_mode = #tpu.pipeline_mode<synchronous>, transform_indices = @transform_21, window_bounds = array<i64: 1, 32>}, {pipeline_mode = #tpu.pipeline_mode<synchronous>, transform_indices = @transform_22, window_bounds = array<i64: 1, 32>}, {pipeline_mode = #tpu.pipeline_mode<synchronous>, transform_indices = @transform_23, window_bounds = array<i64: 32, 4>}, {pipeline_mode = #tpu.pipeline_mode<synchronous>, transform_indices = @transform_24, window_bounds = array<i64: 1, 4>}, {transform_indices = @transform_25, window_bounds = array<i64: 1, 16, 4>}, {transform_indices = @transform_26, window_bounds = array<i64: 1, 1, 4, 16, 16>}, {transform_indices = @transform_27, window_bounds = array<i64: 1, 1, 16, 4>}]} {
    %c0_i32 = arith.constant 0 : i32
    %0 = arith.cmpi eq, %arg1, %c0_i32 : i32
    %1 = arith.extui %0 : i1 to i32
    %c0_i32_0 = arith.constant 0 : i32
    %2 = arith.cmpi ne, %1, %c0_i32_0 : i32
    scf.if %2 {
      %c0_119 = arith.constant 0 : index
      %c0_120 = arith.constant 0 : index
      %c0_121 = arith.constant 0 : index
      %283 = vector.load %arg2[%c0_119, %c0_120, %c0_121] : memref<1x16x12xf32, #tpu.memory_space<vmem>>, vector<1x16x12xf32>
      %284 = vector.shape_cast %283 : vector<1x16x12xf32> to vector<16x12xf32>
      %c0_122 = arith.constant 0 : index
      %c0_123 = arith.constant 0 : index
      %285 = vector.load %arg4[%c0_122, %c0_123] : memref<12x32xf32, #tpu.memory_space<vmem>>, vector<12x32xf32>
      %286 = arith.truncf %284 : vector<16x12xf32> to vector<16x12xbf16>
      %287 = arith.truncf %285 : vector<12x32xf32> to vector<12x32xbf16>
      %cst_124 = arith.constant dense<0.000000e+00> : vector<16x32xf32>
      %288 = tpu.matmul %286, %287, %cst_124 {dimension_numbers = #tpu.dot_dimension_numbers<[1], [0], [0], [1], [0, 0, 1, 1], [], []>} : vector<16x12xbf16>, vector<12x32xbf16>, vector<16x32xf32> -> vector<16x32xf32>
      %c0_125 = arith.constant 0 : index
      %c0_126 = arith.constant 0 : index
      %289 = vector.load %arg3[%c0_125, %c0_126] : memref<16x32xf32, #tpu.memory_space<vmem>>, vector<16x32xf32>
      %290 = arith.addf %288, %289 : vector<16x32xf32>
      %c0_127 = arith.constant 0 : index
      %c0_128 = arith.constant 0 : index
      %291 = vector.load %arg30[%c0_127, %c0_128] : memref<16x32xf32, #tpu.memory_space<vmem>>, vector<16x32xf32>
      tpu.vector_store %arg30[%c0_127, %c0_128], %290 {strides = array<i32>} : memref<16x32xf32, #tpu.memory_space<vmem>>, vector<16x32xf32>,
    } else {
    }
    %c0 = arith.constant 0 : index
    %c0_1 = arith.constant 0 : index
    %3 = vector.load %arg30[%c0, %c0_1] : memref<16x32xf32, #tpu.memory_space<vmem>>, vector<16x32xf32>
    %4 = arith.truncf %3 : vector<16x32xf32> to vector<16x32xbf16>
    %c0_2 = arith.constant 0 : index
    %c0_3 = arith.constant 0 : index
    %c0_4 = arith.constant 0 : index
    %5 = vector.load %arg11[%c0_2, %c0_3, %c0_4] : memref<1x32x4xf32, #tpu.memory_space<vmem>>, vector<1x32x4xf32>
    %6 = vector.shape_cast %5 : vector<1x32x4xf32> to vector<32x4xf32>
    %7 = arith.truncf %6 : vector<32x4xf32> to vector<32x4xbf16>
    %cst = arith.constant dense<0.000000e+00> : vector<16x4xf32>
    %8 = tpu.matmul %4, %7, %cst {dimension_numbers = #tpu.dot_dimension_numbers<[1], [0], [0], [1], [0, 0, 1, 1], [], []>} : vector<16x32xbf16>, vector<32x4xbf16>, vector<16x4xf32> -> vector<16x4xf32>
    %c0_5 = arith.constant 0 : index
    %c0_6 = arith.constant 0 : index
    %c0_7 = arith.constant 0 : index
    %9 = vector.load %arg12[%c0_5, %c0_6, %c0_7] : memref<1x1x4xf32, #tpu.memory_space<vmem>>, vector<1x1x4xf32>
    %10 = vector.shape_cast %9 : vector<1x1x4xf32> to vector<1x4xf32>
    %11 = vector.broadcast %10 : vector<1x4xf32> to vector<16x4xf32>
    %12 = arith.addf %8, %11 : vector<16x4xf32>
    %cst_8 = arith.constant 5.000000e+00 : f32
    %13 = vector.broadcast %cst_8 : f32 to vector<16x4xf32>
    %14 = arith.mulf %12, %13 : vector<16x4xf32>
    %15 = arith.negf %14 : vector<16x4xf32>
    %16 = math.exp %15 : vector<16x4xf32>
    %cst_9 = arith.constant 1.000000e+00 : f32
    %17 = vector.broadcast %cst_9 : f32 to vector<16x4xf32>
    %18 = arith.addf %17, %16 : vector<16x4xf32>
    %19 = arith.divf %17, %18 : vector<16x4xf32>
    %cst_10 = arith.constant 9.99999974E-6 : f32
    %20 = vector.broadcast %cst_10 : f32 to vector<16x4xf32>
    %21 = arith.addf %19, %20 : vector<16x4xf32>
    %cst_11 = arith.constant 1.09861231 : f32
    %22 = vector.broadcast %cst_11 : f32 to vector<16x4xf32>
    %23 = arith.mulf %21, %22 : vector<16x4xf32>
    %24 = math.exp %23 : vector<16x4xf32>
    %cst_12 = arith.constant 1.000000e+00 : f32
    %25 = vector.broadcast %cst_12 : f32 to vector<16x4xf32>
    %26 = arith.subf %24, %25 : vector<16x4xf32>
    %27 = vector.shape_cast %26 : vector<16x4xf32> to vector<1x1x16x4xf32>
    %c0_13 = arith.constant 0 : index
    %c0_14 = arith.constant 0 : index
    %c0_15 = arith.constant 0 : index
    %c0_16 = arith.constant 0 : index
    %28 = vector.load %arg29[%c0_13, %c0_14, %c0_15, %c0_16] : memref<1x1x16x4xf32, #tpu.memory_space<vmem>>, vector<1x1x16x4xf32>
    tpu.vector_store %arg29[%c0_13, %c0_14, %c0_15, %c0_16], %27 {strides = array<i32>} : memref<1x1x16x4xf32, #tpu.memory_space<vmem>>, vector<1x1x16x4xf32>,
    %c0_17 = arith.constant 0 : index
    %c0_18 = arith.constant 0 : index
    %c0_19 = arith.constant 0 : index
    %c0_20 = arith.constant 0 : index
    %29 = vector.load %arg5[%c0_17, %c0_18, %c0_19, %c0_20] : memref<1x4x32x8xf32, #tpu.memory_space<vmem>>, vector<1x4x32x8xf32>
    %30 = vector.shape_cast %29 : vector<1x4x32x8xf32> to vector<4x32x8xf32>
    %31 = arith.truncf %30 : vector<4x32x8xf32> to vector<4x32x8xbf16>
    %c0_21 = arith.constant 0 : index
    %c0_22 = arith.constant 0 : index
    %c0_23 = arith.constant 0 : index
    %c0_24 = arith.constant 0 : index
    %32 = vector.load %arg6[%c0_21, %c0_22, %c0_23, %c0_24] : memref<1x4x1x8xf32, #tpu.memory_space<vmem>>, vector<1x4x1x8xf32>
    %33 = vector.shape_cast %32 : vector<1x4x1x8xf32> to vector<4x1x8xf32>
    %c0_25 = arith.constant 0 : index
    %c0_26 = arith.constant 0 : index
    %c0_27 = arith.constant 0 : index
    %c0_28 = arith.constant 0 : index
    %34 = vector.load %arg7[%c0_25, %c0_26, %c0_27, %c0_28] : memref<1x4x32x8xf32, #tpu.memory_space<vmem>>, vector<1x4x32x8xf32>
    %35 = vector.shape_cast %34 : vector<1x4x32x8xf32> to vector<4x32x8xf32>
    %36 = arith.truncf %35 : vector<4x32x8xf32> to vector<4x32x8xbf16>
    %c0_29 = arith.constant 0 : index
    %c0_30 = arith.constant 0 : index
    %c0_31 = arith.constant 0 : index
    %c0_32 = arith.constant 0 : index
    %37 = vector.load %arg8[%c0_29, %c0_30, %c0_31, %c0_32] : memref<1x4x1x8xf32, #tpu.memory_space<vmem>>, vector<1x4x1x8xf32>
    %38 = vector.shape_cast %37 : vector<1x4x1x8xf32> to vector<4x1x8xf32>
    %c0_33 = arith.constant 0 : index
    %c0_34 = arith.constant 0 : index
    %c0_35 = arith.constant 0 : index
    %c0_36 = arith.constant 0 : index
    %39 = vector.load %arg9[%c0_33, %c0_34, %c0_35, %c0_36] : memref<1x4x32x8xf32, #tpu.memory_space<vmem>>, vector<1x4x32x8xf32>
    %40 = vector.shape_cast %39 : vector<1x4x32x8xf32> to vector<4x32x8xf32>
    %41 = arith.truncf %40 : vector<4x32x8xf32> to vector<4x32x8xbf16>
    %c0_37 = arith.constant 0 : index
    %c0_38 = arith.constant 0 : index
    %c0_39 = arith.constant 0 : index
    %c0_40 = arith.constant 0 : index
    %42 = vector.load %arg10[%c0_37, %c0_38, %c0_39, %c0_40] : memref<1x4x1x8xf32, #tpu.memory_space<vmem>>, vector<1x4x1x8xf32>
    %43 = vector.shape_cast %42 : vector<1x4x1x8xf32> to vector<4x1x8xf32>
    %44 = vector.extract_strided_slice %31 {offsets = [0, 0, 0], sizes = [1, 32, 8], strides = [1, 1, 1]} : vector<4x32x8xbf16> to vector<1x32x8xbf16>
    %45 = vector.shape_cast %44 : vector<1x32x8xbf16> to vector<32x8xbf16>
    %cst_41 = arith.constant dense<0.000000e+00> : vector<16x8xf32>
    %46 = tpu.matmul %4, %45, %cst_41 {dimension_numbers = #tpu.dot_dimension_numbers<[1], [0], [0], [1], [0, 0, 1, 1], [], []>} : vector<16x32xbf16>, vector<32x8xbf16>, vector<16x8xf32> -> vector<16x8xf32>
    %47 = vector.extract_strided_slice %33 {offsets = [0, 0, 0], sizes = [1, 1, 8], strides = [1, 1, 1]} : vector<4x1x8xf32> to vector<1x1x8xf32>
    %48 = vector.shape_cast %47 : vector<1x1x8xf32> to vector<1x8xf32>
    %49 = vector.broadcast %48 : vector<1x8xf32> to vector<16x8xf32>
    %50 = arith.addf %46, %49 : vector<16x8xf32>
    %cst_42 = arith.constant 0.353553385 : f32
    %51 = vector.broadcast %cst_42 : f32 to vector<16x8xf32>
    %52 = arith.mulf %50, %51 : vector<16x8xf32>
    %53 = arith.truncf %52 : vector<16x8xf32> to vector<16x8xbf16>
    %54 = vector.extract_strided_slice %36 {offsets = [0, 0, 0], sizes = [1, 32, 8], strides = [1, 1, 1]} : vector<4x32x8xbf16> to vector<1x32x8xbf16>
    %55 = vector.shape_cast %54 : vector<1x32x8xbf16> to vector<32x8xbf16>
    %cst_43 = arith.constant dense<0.000000e+00> : vector<16x8xf32>
    %56 = tpu.matmul %4, %55, %cst_43 {dimension_numbers = #tpu.dot_dimension_numbers<[1], [0], [0], [1], [0, 0, 1, 1], [], []>} : vector<16x32xbf16>, vector<32x8xbf16>, vector<16x8xf32> -> vector<16x8xf32>
    %57 = vector.extract_strided_slice %38 {offsets = [0, 0, 0], sizes = [1, 1, 8], strides = [1, 1, 1]} : vector<4x1x8xf32> to vector<1x1x8xf32>
    %58 = vector.shape_cast %57 : vector<1x1x8xf32> to vector<1x8xf32>
    %59 = vector.broadcast %58 : vector<1x8xf32> to vector<16x8xf32>
    %60 = arith.addf %56, %59 : vector<16x8xf32>
    %61 = arith.truncf %60 : vector<16x8xf32> to vector<16x8xbf16>
    %62 = vector.extract_strided_slice %41 {offsets = [0, 0, 0], sizes = [1, 32, 8], strides = [1, 1, 1]} : vector<4x32x8xbf16> to vector<1x32x8xbf16>
    %63 = vector.shape_cast %62 : vector<1x32x8xbf16> to vector<32x8xbf16>
    %cst_44 = arith.constant dense<0.000000e+00> : vector<16x8xf32>
    %64 = tpu.matmul %4, %63, %cst_44 {dimension_numbers = #tpu.dot_dimension_numbers<[1], [0], [0], [1], [0, 0, 1, 1], [], []>} : vector<16x32xbf16>, vector<32x8xbf16>, vector<16x8xf32> -> vector<16x8xf32>
    %65 = vector.extract_strided_slice %43 {offsets = [0, 0, 0], sizes = [1, 1, 8], strides = [1, 1, 1]} : vector<4x1x8xf32> to vector<1x1x8xf32>
    %66 = vector.shape_cast %65 : vector<1x1x8xf32> to vector<1x8xf32>
    %67 = vector.broadcast %66 : vector<1x8xf32> to vector<16x8xf32>
    %68 = arith.addf %64, %67 : vector<16x8xf32>
    %69 = arith.truncf %68 : vector<16x8xf32> to vector<16x8xbf16>
    %70 = vector.extract_strided_slice %31 {offsets = [1, 0, 0], sizes = [1, 32, 8], strides = [1, 1, 1]} : vector<4x32x8xbf16> to vector<1x32x8xbf16>
    %71 = vector.shape_cast %70 : vector<1x32x8xbf16> to vector<32x8xbf16>
    %cst_45 = arith.constant dense<0.000000e+00> : vector<16x8xf32>
    %72 = tpu.matmul %4, %71, %cst_45 {dimension_numbers = #tpu.dot_dimension_numbers<[1], [0], [0], [1], [0, 0, 1, 1], [], []>} : vector<16x32xbf16>, vector<32x8xbf16>, vector<16x8xf32> -> vector<16x8xf32>
    %73 = vector.extract_strided_slice %33 {offsets = [1, 0, 0], sizes = [1, 1, 8], strides = [1, 1, 1]} : vector<4x1x8xf32> to vector<1x1x8xf32>
    %74 = vector.shape_cast %73 : vector<1x1x8xf32> to vector<1x8xf32>
    %75 = vector.broadcast %74 : vector<1x8xf32> to vector<16x8xf32>
    %76 = arith.addf %72, %75 : vector<16x8xf32>
    %cst_46 = arith.constant 0.353553385 : f32
    %77 = vector.broadcast %cst_46 : f32 to vector<16x8xf32>
    %78 = arith.mulf %76, %77 : vector<16x8xf32>
    %79 = arith.truncf %78 : vector<16x8xf32> to vector<16x8xbf16>
    %80 = vector.extract_strided_slice %36 {offsets = [1, 0, 0], sizes = [1, 32, 8], strides = [1, 1, 1]} : vector<4x32x8xbf16> to vector<1x32x8xbf16>
    %81 = vector.shape_cast %80 : vector<1x32x8xbf16> to vector<32x8xbf16>
    %cst_47 = arith.constant dense<0.000000e+00> : vector<16x8xf32>
    %82 = tpu.matmul %4, %81, %cst_47 {dimension_numbers = #tpu.dot_dimension_numbers<[1], [0], [0], [1], [0, 0, 1, 1], [], []>} : vector<16x32xbf16>, vector<32x8xbf16>, vector<16x8xf32> -> vector<16x8xf32>
    %83 = vector.extract_strided_slice %38 {offsets = [1, 0, 0], sizes = [1, 1, 8], strides = [1, 1, 1]} : vector<4x1x8xf32> to vector<1x1x8xf32>
    %84 = vector.shape_cast %83 : vector<1x1x8xf32> to vector<1x8xf32>
    %85 = vector.broadcast %84 : vector<1x8xf32> to vector<16x8xf32>
    %86 = arith.addf %82, %85 : vector<16x8xf32>
    %87 = arith.truncf %86 : vector<16x8xf32> to vector<16x8xbf16>
    %88 = vector.extract_strided_slice %41 {offsets = [1, 0, 0], sizes = [1, 32, 8], strides = [1, 1, 1]} : vector<4x32x8xbf16> to vector<1x32x8xbf16>
    %89 = vector.shape_cast %88 : vector<1x32x8xbf16> to vector<32x8xbf16>
    %cst_48 = arith.constant dense<0.000000e+00> : vector<16x8xf32>
    %90 = tpu.matmul %4, %89, %cst_48 {dimension_numbers = #tpu.dot_dimension_numbers<[1], [0], [0], [1], [0, 0, 1, 1], [], []>} : vector<16x32xbf16>, vector<32x8xbf16>, vector<16x8xf32> -> vector<16x8xf32>
    %91 = vector.extract_strided_slice %43 {offsets = [1, 0, 0], sizes = [1, 1, 8], strides = [1, 1, 1]} : vector<4x1x8xf32> to vector<1x1x8xf32>
    %92 = vector.shape_cast %91 : vector<1x1x8xf32> to vector<1x8xf32>
    %93 = vector.broadcast %92 : vector<1x8xf32> to vector<16x8xf32>
    %94 = arith.addf %90, %93 : vector<16x8xf32>
    %95 = arith.truncf %94 : vector<16x8xf32> to vector<16x8xbf16>
    %96 = vector.extract_strided_slice %31 {offsets = [2, 0, 0], sizes = [1, 32, 8], strides = [1, 1, 1]} : vector<4x32x8xbf16> to vector<1x32x8xbf16>
    %97 = vector.shape_cast %96 : vector<1x32x8xbf16> to vector<32x8xbf16>
    %cst_49 = arith.constant dense<0.000000e+00> : vector<16x8xf32>
    %98 = tpu.matmul %4, %97, %cst_49 {dimension_numbers = #tpu.dot_dimension_numbers<[1], [0], [0], [1], [0, 0, 1, 1], [], []>} : vector<16x32xbf16>, vector<32x8xbf16>, vector<16x8xf32> -> vector<16x8xf32>
    %99 = vector.extract_strided_slice %33 {offsets = [2, 0, 0], sizes = [1, 1, 8], strides = [1, 1, 1]} : vector<4x1x8xf32> to vector<1x1x8xf32>
    %100 = vector.shape_cast %99 : vector<1x1x8xf32> to vector<1x8xf32>
    %101 = vector.broadcast %100 : vector<1x8xf32> to vector<16x8xf32>
    %102 = arith.addf %98, %101 : vector<16x8xf32>
    %cst_50 = arith.constant 0.353553385 : f32
    %103 = vector.broadcast %cst_50 : f32 to vector<16x8xf32>
    %104 = arith.mulf %102, %103 : vector<16x8xf32>
    %105 = arith.truncf %104 : vector<16x8xf32> to vector<16x8xbf16>
    %106 = vector.extract_strided_slice %36 {offsets = [2, 0, 0], sizes = [1, 32, 8], strides = [1, 1, 1]} : vector<4x32x8xbf16> to vector<1x32x8xbf16>
    %107 = vector.shape_cast %106 : vector<1x32x8xbf16> to vector<32x8xbf16>
    %cst_51 = arith.constant dense<0.000000e+00> : vector<16x8xf32>
    %108 = tpu.matmul %4, %107, %cst_51 {dimension_numbers = #tpu.dot_dimension_numbers<[1], [0], [0], [1], [0, 0, 1, 1], [], []>} : vector<16x32xbf16>, vector<32x8xbf16>, vector<16x8xf32> -> vector<16x8xf32>
    %109 = vector.extract_strided_slice %38 {offsets = [2, 0, 0], sizes = [1, 1, 8], strides = [1, 1, 1]} : vector<4x1x8xf32> to vector<1x1x8xf32>
    %110 = vector.shape_cast %109 : vector<1x1x8xf32> to vector<1x8xf32>
    %111 = vector.broadcast %110 : vector<1x8xf32> to vector<16x8xf32>
    %112 = arith.addf %108, %111 : vector<16x8xf32>
    %113 = arith.truncf %112 : vector<16x8xf32> to vector<16x8xbf16>
    %114 = vector.extract_strided_slice %41 {offsets = [2, 0, 0], sizes = [1, 32, 8], strides = [1, 1, 1]} : vector<4x32x8xbf16> to vector<1x32x8xbf16>
    %115 = vector.shape_cast %114 : vector<1x32x8xbf16> to vector<32x8xbf16>
    %cst_52 = arith.constant dense<0.000000e+00> : vector<16x8xf32>
    %116 = tpu.matmul %4, %115, %cst_52 {dimension_numbers = #tpu.dot_dimension_numbers<[1], [0], [0], [1], [0, 0, 1, 1], [], []>} : vector<16x32xbf16>, vector<32x8xbf16>, vector<16x8xf32> -> vector<16x8xf32>
    %117 = vector.extract_strided_slice %43 {offsets = [2, 0, 0], sizes = [1, 1, 8], strides = [1, 1, 1]} : vector<4x1x8xf32> to vector<1x1x8xf32>
    %118 = vector.shape_cast %117 : vector<1x1x8xf32> to vector<1x8xf32>
    %119 = vector.broadcast %118 : vector<1x8xf32> to vector<16x8xf32>
    %120 = arith.addf %116, %119 : vector<16x8xf32>
    %121 = arith.truncf %120 : vector<16x8xf32> to vector<16x8xbf16>
    %122 = vector.extract_strided_slice %31 {offsets = [3, 0, 0], sizes = [1, 32, 8], strides = [1, 1, 1]} : vector<4x32x8xbf16> to vector<1x32x8xbf16>
    %123 = vector.shape_cast %122 : vector<1x32x8xbf16> to vector<32x8xbf16>
    %cst_53 = arith.constant dense<0.000000e+00> : vector<16x8xf32>
    %124 = tpu.matmul %4, %123, %cst_53 {dimension_numbers = #tpu.dot_dimension_numbers<[1], [0], [0], [1], [0, 0, 1, 1], [], []>} : vector<16x32xbf16>, vector<32x8xbf16>, vector<16x8xf32> -> vector<16x8xf32>
    %125 = vector.extract_strided_slice %33 {offsets = [3, 0, 0], sizes = [1, 1, 8], strides = [1, 1, 1]} : vector<4x1x8xf32> to vector<1x1x8xf32>
    %126 = vector.shape_cast %125 : vector<1x1x8xf32> to vector<1x8xf32>
    %127 = vector.broadcast %126 : vector<1x8xf32> to vector<16x8xf32>
    %128 = arith.addf %124, %127 : vector<16x8xf32>
    %cst_54 = arith.constant 0.353553385 : f32
    %129 = vector.broadcast %cst_54 : f32 to vector<16x8xf32>
    %130 = arith.mulf %128, %129 : vector<16x8xf32>
    %131 = arith.truncf %130 : vector<16x8xf32> to vector<16x8xbf16>
    %132 = vector.extract_strided_slice %36 {offsets = [3, 0, 0], sizes = [1, 32, 8], strides = [1, 1, 1]} : vector<4x32x8xbf16> to vector<1x32x8xbf16>
    %133 = vector.shape_cast %132 : vector<1x32x8xbf16> to vector<32x8xbf16>
    %cst_55 = arith.constant dense<0.000000e+00> : vector<16x8xf32>
    %134 = tpu.matmul %4, %133, %cst_55 {dimension_numbers = #tpu.dot_dimension_numbers<[1], [0], [0], [1], [0, 0, 1, 1], [], []>} : vector<16x32xbf16>, vector<32x8xbf16>, vector<16x8xf32> -> vector<16x8xf32>
    %135 = vector.extract_strided_slice %38 {offsets = [3, 0, 0], sizes = [1, 1, 8], strides = [1, 1, 1]} : vector<4x1x8xf32> to vector<1x1x8xf32>
    %136 = vector.shape_cast %135 : vector<1x1x8xf32> to vector<1x8xf32>
    %137 = vector.broadcast %136 : vector<1x8xf32> to vector<16x8xf32>
    %138 = arith.addf %134, %137 : vector<16x8xf32>
    %139 = arith.truncf %138 : vector<16x8xf32> to vector<16x8xbf16>
    %140 = vector.extract_strided_slice %41 {offsets = [3, 0, 0], sizes = [1, 32, 8], strides = [1, 1, 1]} : vector<4x32x8xbf16> to vector<1x32x8xbf16>
    %141 = vector.shape_cast %140 : vector<1x32x8xbf16> to vector<32x8xbf16>
    %cst_56 = arith.constant dense<0.000000e+00> : vector<16x8xf32>
    %142 = tpu.matmul %4, %141, %cst_56 {dimension_numbers = #tpu.dot_dimension_numbers<[1], [0], [0], [1], [0, 0, 1, 1], [], []>} : vector<16x32xbf16>, vector<32x8xbf16>, vector<16x8xf32> -> vector<16x8xf32>
    %143 = vector.extract_strided_slice %43 {offsets = [3, 0, 0], sizes = [1, 1, 8], strides = [1, 1, 1]} : vector<4x1x8xf32> to vector<1x1x8xf32>
    %144 = vector.shape_cast %143 : vector<1x1x8xf32> to vector<1x8xf32>
    %145 = vector.broadcast %144 : vector<1x8xf32> to vector<16x8xf32>
    %146 = arith.addf %142, %145 : vector<16x8xf32>
    %147 = arith.truncf %146 : vector<16x8xf32> to vector<16x8xbf16>
    %148 = vector.shape_cast %53 : vector<16x8xbf16> to vector<1x16x8xbf16>
    %149 = vector.shape_cast %79 : vector<16x8xbf16> to vector<1x16x8xbf16>
    %150 = vector.shape_cast %105 : vector<16x8xbf16> to vector<1x16x8xbf16>
    %151 = vector.shape_cast %131 : vector<16x8xbf16> to vector<1x16x8xbf16>
    %152 = tpu.concatenate %148, %149, %150, %151 in 0 : vector<1x16x8xbf16>, vector<1x16x8xbf16>, vector<1x16x8xbf16>, vector<1x16x8xbf16> -> vector<4x16x8xbf16>
    %153 = vector.shape_cast %61 : vector<16x8xbf16> to vector<1x16x8xbf16>
    %154 = vector.shape_cast %87 : vector<16x8xbf16> to vector<1x16x8xbf16>
    %155 = vector.shape_cast %113 : vector<16x8xbf16> to vector<1x16x8xbf16>
    %156 = vector.shape_cast %139 : vector<16x8xbf16> to vector<1x16x8xbf16>
    %157 = tpu.concatenate %153, %154, %155, %156 in 0 : vector<1x16x8xbf16>, vector<1x16x8xbf16>, vector<1x16x8xbf16>, vector<1x16x8xbf16> -> vector<4x16x8xbf16>
    "tpu.trace_start"() <{level = 10 : i32, message = "hqe,hke->hqk"}> : () -> ()
    %cst_57 = arith.constant dense<0.000000e+00> : vector<4x16x16xf32>
    %158 = tpu.matmul %152, %157, %cst_57 {dimension_numbers = #tpu.dot_dimension_numbers<[2], [2], [1], [1], [0, 0, 0, 1, 1, 1], [0], [0]>} : vector<4x16x8xbf16>, vector<4x16x8xbf16>, vector<4x16x16xf32> -> vector<4x16x16xf32>
    "tpu.trace_stop"() : () -> ()
    %cst_58 = arith.constant dense<0xFF800000> : vector<4x16xf32>
    %159 = vector.multi_reduction <maximumf>, %158, %cst_58 [2] : vector<4x16x16xf32> to vector<4x16xf32>
    %160 = vector.shape_cast %159 : vector<4x16xf32> to vector<4x16x1xf32>
    %161 = vector.broadcast %160 : vector<4x16x1xf32> to vector<4x16x16xf32>
    %162 = arith.subf %158, %161 : vector<4x16x16xf32>
    %163 = math.exp %162 : vector<4x16x16xf32>
    %cst_59 = arith.constant dense<0.000000e+00> : vector<4x16xf32>
    %164 = vector.multi_reduction <add>, %163, %cst_59 [2] : vector<4x16x16xf32> to vector<4x16xf32>
    %165 = vector.shape_cast %164 : vector<4x16xf32> to vector<4x16x1xf32>
    %166 = tpu.reciprocal %165 {approx = true} : vector<4x16x1xf32> -> vector<4x16x1xf32>
    %167 = vector.broadcast %166 : vector<4x16x1xf32> to vector<4x16x16xf32>
    %168 = arith.mulf %163, %167 : vector<4x16x16xf32>
    %169 = vector.shape_cast %168 : vector<4x16x16xf32> to vector<1x1x4x16x16xf32>
    %c0_60 = arith.constant 0 : index
    %c0_61 = arith.constant 0 : index
    %c0_62 = arith.constant 0 : index
    %c0_63 = arith.constant 0 : index
    %c0_64 = arith.constant 0 : index
    %170 = vector.load %arg28[%c0_60, %c0_61, %c0_62, %c0_63, %c0_64] : memref<1x1x4x16x16xf32, #tpu.memory_space<vmem>>, vector<1x1x4x16x16xf32>
    tpu.vector_store %arg28[%c0_60, %c0_61, %c0_62, %c0_63, %c0_64], %169 {strides = array<i32>} : memref<1x1x4x16x16xf32, #tpu.memory_space<vmem>>, vector<1x1x4x16x16xf32>,
    %171 = arith.truncf %168 : vector<4x16x16xf32> to vector<4x16x16xbf16>
    %172 = vector.extract_strided_slice %171 {offsets = [0, 0, 0], sizes = [1, 16, 16], strides = [1, 1, 1]} : vector<4x16x16xbf16> to vector<1x16x16xbf16>
    %173 = vector.shape_cast %172 : vector<1x16x16xbf16> to vector<16x16xbf16>
    %cst_65 = arith.constant dense<0.000000e+00> : vector<16x8xf32>
    %174 = tpu.matmul %173, %69, %cst_65 {dimension_numbers = #tpu.dot_dimension_numbers<[1], [0], [0], [1], [0, 0, 1, 1], [], []>} : vector<16x16xbf16>, vector<16x8xbf16>, vector<16x8xf32> -> vector<16x8xf32>
    %175 = vector.extract_strided_slice %171 {offsets = [1, 0, 0], sizes = [1, 16, 16], strides = [1, 1, 1]} : vector<4x16x16xbf16> to vector<1x16x16xbf16>
    %176 = vector.shape_cast %175 : vector<1x16x16xbf16> to vector<16x16xbf16>
    %cst_66 = arith.constant dense<0.000000e+00> : vector<16x8xf32>
    %177 = tpu.matmul %176, %95, %cst_66 {dimension_numbers = #tpu.dot_dimension_numbers<[1], [0], [0], [1], [0, 0, 1, 1], [], []>} : vector<16x16xbf16>, vector<16x8xbf16>, vector<16x8xf32> -> vector<16x8xf32>
    %178 = vector.extract_strided_slice %171 {offsets = [2, 0, 0], sizes = [1, 16, 16], strides = [1, 1, 1]} : vector<4x16x16xbf16> to vector<1x16x16xbf16>
    %179 = vector.shape_cast %178 : vector<1x16x16xbf16> to vector<16x16xbf16>
    %cst_67 = arith.constant dense<0.000000e+00> : vector<16x8xf32>
    %180 = tpu.matmul %179, %121, %cst_67 {dimension_numbers = #tpu.dot_dimension_numbers<[1], [0], [0], [1], [0, 0, 1, 1], [], []>} : vector<16x16xbf16>, vector<16x8xbf16>, vector<16x8xf32> -> vector<16x8xf32>
    %181 = vector.extract_strided_slice %171 {offsets = [3, 0, 0], sizes = [1, 16, 16], strides = [1, 1, 1]} : vector<4x16x16xbf16> to vector<1x16x16xbf16>
    %182 = vector.shape_cast %181 : vector<1x16x16xbf16> to vector<16x16xbf16>
    %cst_68 = arith.constant dense<0.000000e+00> : vector<16x8xf32>
    %183 = tpu.matmul %182, %147, %cst_68 {dimension_numbers = #tpu.dot_dimension_numbers<[1], [0], [0], [1], [0, 0, 1, 1], [], []>} : vector<16x16xbf16>, vector<16x8xbf16>, vector<16x8xf32> -> vector<16x8xf32>
    %184 = tpu.concatenate %174, %177, %180, %183 in 1 : vector<16x8xf32>, vector<16x8xf32>, vector<16x8xf32>, vector<16x8xf32> -> vector<16x32xf32>
    %c0_69 = arith.constant 0 : index
    %c0_70 = arith.constant 0 : index
    %c0_71 = arith.constant 0 : index
    %185 = vector.load %arg13[%c0_69, %c0_70, %c0_71] : memref<1x32x32xf32, #tpu.memory_space<vmem>>, vector<1x32x32xf32>
    %186 = vector.shape_cast %185 : vector<1x32x32xf32> to vector<32x32xf32>
    %187 = arith.truncf %184 : vector<16x32xf32> to vector<16x32xbf16>
    %188 = arith.truncf %186 : vector<32x32xf32> to vector<32x32xbf16>
    %cst_72 = arith.constant dense<0.000000e+00> : vector<16x32xf32>
    %189 = tpu.matmul %187, %188, %cst_72 {dimension_numbers = #tpu.dot_dimension_numbers<[1], [0], [0], [1], [0, 0, 1, 1], [], []>} : vector<16x32xbf16>, vector<32x32xbf16>, vector<16x32xf32> -> vector<16x32xf32>
    %c0_73 = arith.constant 0 : index
    %c0_74 = arith.constant 0 : index
    %c0_75 = arith.constant 0 : index
    %190 = vector.load %arg14[%c0_73, %c0_74, %c0_75] : memref<1x1x32xf32, #tpu.memory_space<vmem>>, vector<1x1x32xf32>
    %191 = vector.shape_cast %190 : vector<1x1x32xf32> to vector<1x32xf32>
    %192 = vector.broadcast %191 : vector<1x32xf32> to vector<16x32xf32>
    %193 = arith.addf %189, %192 : vector<16x32xf32>
    %194 = arith.addf %3, %193 : vector<16x32xf32>
    %c0_76 = arith.constant 0 : index
    %c0_77 = arith.constant 0 : index
    %c0_78 = arith.constant 0 : index
    %195 = vector.load %arg15[%c0_76, %c0_77, %c0_78] : memref<1x1x32xf32, #tpu.memory_space<vmem>>, vector<1x1x32xf32>
    %196 = vector.shape_cast %195 : vector<1x1x32xf32> to vector<1x32xf32>
    %c0_79 = arith.constant 0 : index
    %c0_80 = arith.constant 0 : index
    %c0_81 = arith.constant 0 : index
    %197 = vector.load %arg16[%c0_79, %c0_80, %c0_81] : memref<1x1x32xf32, #tpu.memory_space<vmem>>, vector<1x1x32xf32>
    %198 = vector.shape_cast %197 : vector<1x1x32xf32> to vector<1x32xf32>
    %cst_82 = arith.constant dense<0.000000e+00> : vector<16xf32>
    %199 = vector.multi_reduction <add>, %194, %cst_82 [1] : vector<16x32xf32> to vector<16xf32>
    %200 = vector.shape_cast %199 : vector<16xf32> to vector<16x1xf32>
    %cst_83 = arith.constant 3.200000e+01 : f32
    %201 = vector.broadcast %cst_83 : f32 to vector<16x1xf32>
    %202 = arith.divf %200, %201 : vector<16x1xf32>
    %203 = vector.broadcast %202 : vector<16x1xf32> to vector<16x32xf32>
    %204 = arith.subf %194, %203 : vector<16x32xf32>
    %205 = arith.mulf %204, %204 : vector<16x32xf32>
    %cst_84 = arith.constant dense<0.000000e+00> : vector<16xf32>
    %206 = vector.multi_reduction <add>, %205, %cst_84 [1] : vector<16x32xf32> to vector<16xf32>
    %207 = vector.shape_cast %206 : vector<16xf32> to vector<16x1xf32>
    %cst_85 = arith.constant 3.200000e+01 : f32
    %208 = vector.broadcast %cst_85 : f32 to vector<16x1xf32>
    %209 = arith.divf %207, %208 : vector<16x1xf32>
    %210 = vector.broadcast %202 : vector<16x1xf32> to vector<16x32xf32>
    %211 = arith.subf %194, %210 : vector<16x32xf32>
    %cst_86 = arith.constant 9.99999974E-6 : f32
    %212 = vector.broadcast %cst_86 : f32 to vector<16x1xf32>
    %213 = arith.addf %209, %212 : vector<16x1xf32>
    %214 = math.rsqrt %213 : vector<16x1xf32>
    %215 = vector.broadcast %214 : vector<16x1xf32> to vector<16x32xf32>
    %216 = arith.mulf %211, %215 : vector<16x32xf32>
    %217 = vector.broadcast %196 : vector<1x32xf32> to vector<16x32xf32>
    %218 = arith.mulf %216, %217 : vector<16x32xf32>
    %219 = vector.broadcast %198 : vector<1x32xf32> to vector<16x32xf32>
    %220 = arith.addf %218, %219 : vector<16x32xf32>
    %c0_87 = arith.constant 0 : index
    %c0_88 = arith.constant 0 : index
    %c0_89 = arith.constant 0 : index
    %221 = vector.load %arg17[%c0_87, %c0_88, %c0_89] : memref<1x32x64xf32, #tpu.memory_space<vmem>>, vector<1x32x64xf32>
    %222 = vector.shape_cast %221 : vector<1x32x64xf32> to vector<32x64xf32>
    %223 = arith.truncf %220 : vector<16x32xf32> to vector<16x32xbf16>
    %224 = arith.truncf %222 : vector<32x64xf32> to vector<32x64xbf16>
    %cst_90 = arith.constant dense<0.000000e+00> : vector<16x64xf32>
    %225 = tpu.matmul %223, %224, %cst_90 {dimension_numbers = #tpu.dot_dimension_numbers<[1], [0], [0], [1], [0, 0, 1, 1], [], []>} : vector<16x32xbf16>, vector<32x64xbf16>, vector<16x64xf32> -> vector<16x64xf32>
    %c0_91 = arith.constant 0 : index
    %c0_92 = arith.constant 0 : index
    %c0_93 = arith.constant 0 : index
    %226 = vector.load %arg18[%c0_91, %c0_92, %c0_93] : memref<1x1x64xf32, #tpu.memory_space<vmem>>, vector<1x1x64xf32>
    %227 = vector.shape_cast %226 : vector<1x1x64xf32> to vector<1x64xf32>
    %228 = vector.broadcast %227 : vector<1x64xf32> to vector<16x64xf32>
    %229 = arith.addf %225, %228 : vector<16x64xf32>
    %230 = arith.mulf %229, %229 : vector<16x64xf32>
    %231 = arith.mulf %229, %230 : vector<16x64xf32>
    %cst_94 = arith.constant 4.471500e-02 : f32
    %232 = vector.broadcast %cst_94 : f32 to vector<16x64xf32>
    %233 = arith.mulf %232, %231 : vector<16x64xf32>
    %234 = arith.addf %229, %233 : vector<16x64xf32>
    %cst_95 = arith.constant 0.797884583 : f32
    %235 = vector.broadcast %cst_95 : f32 to vector<16x64xf32>
    %236 = arith.mulf %235, %234 : vector<16x64xf32>
    %237 = math.tanh %236 : vector<16x64xf32>
    %cst_96 = arith.constant 1.000000e+00 : f32
    %238 = vector.broadcast %cst_96 : f32 to vector<16x64xf32>
    %239 = arith.addf %238, %237 : vector<16x64xf32>
    %cst_97 = arith.constant 5.000000e-01 : f32
    %240 = vector.broadcast %cst_97 : f32 to vector<16x64xf32>
    %241 = arith.mulf %240, %239 : vector<16x64xf32>
    %242 = arith.mulf %229, %241 : vector<16x64xf32>
    %c0_98 = arith.constant 0 : index
    %c0_99 = arith.constant 0 : index
    %c0_100 = arith.constant 0 : index
    %243 = vector.load %arg19[%c0_98, %c0_99, %c0_100] : memref<1x64x32xf32, #tpu.memory_space<vmem>>, vector<1x64x32xf32>
    %244 = vector.shape_cast %243 : vector<1x64x32xf32> to vector<64x32xf32>
    %245 = arith.truncf %242 : vector<16x64xf32> to vector<16x64xbf16>
    %246 = arith.truncf %244 : vector<64x32xf32> to vector<64x32xbf16>
    %cst_101 = arith.constant dense<0.000000e+00> : vector<16x32xf32>
    %247 = tpu.matmul %245, %246, %cst_101 {dimension_numbers = #tpu.dot_dimension_numbers<[1], [0], [0], [1], [0, 0, 1, 1], [], []>} : vector<16x64xbf16>, vector<64x32xbf16>, vector<16x32xf32> -> vector<16x32xf32>
    %c0_102 = arith.constant 0 : index
    %c0_103 = arith.constant 0 : index
    %c0_104 = arith.constant 0 : index
    %248 = vector.load %arg20[%c0_102, %c0_103, %c0_104] : memref<1x1x32xf32, #tpu.memory_space<vmem>>, vector<1x1x32xf32>
    %249 = vector.shape_cast %248 : vector<1x1x32xf32> to vector<1x32xf32>
    %250 = vector.broadcast %249 : vector<1x32xf32> to vector<16x32xf32>
    %251 = arith.addf %247, %250 : vector<16x32xf32>
    %252 = arith.addf %220, %251 : vector<16x32xf32>
    %c0_105 = arith.constant 0 : index
    %c0_106 = arith.constant 0 : index
    %c0_107 = arith.constant 0 : index
    %253 = vector.load %arg21[%c0_105, %c0_106, %c0_107] : memref<1x1x32xf32, #tpu.memory_space<vmem>>, vector<1x1x32xf32>
    %254 = vector.shape_cast %253 : vector<1x1x32xf32> to vector<1x32xf32>
    %c0_108 = arith.constant 0 : index
    %c0_109 = arith.constant 0 : index
    %c0_110 = arith.constant 0 : index
    %255 = vector.load %arg22[%c0_108, %c0_109, %c0_110] : memref<1x1x32xf32, #tpu.memory_space<vmem>>, vector<1x1x32xf32>
    %256 = vector.shape_cast %255 : vector<1x1x32xf32> to vector<1x32xf32>
    %cst_111 = arith.constant dense<0.000000e+00> : vector<16xf32>
    %257 = vector.multi_reduction <add>, %252, %cst_111 [1] : vector<16x32xf32> to vector<16xf32>
    %258 = vector.shape_cast %257 : vector<16xf32> to vector<16x1xf32>
    %cst_112 = arith.constant 3.200000e+01 : f32
    %259 = vector.broadcast %cst_112 : f32 to vector<16x1xf32>
    %260 = arith.divf %258, %259 : vector<16x1xf32>
    %261 = vector.broadcast %260 : vector<16x1xf32> to vector<16x32xf32>
    %262 = arith.subf %252, %261 : vector<16x32xf32>
    %263 = arith.mulf %262, %262 : vector<16x32xf32>
    %cst_113 = arith.constant dense<0.000000e+00> : vector<16xf32>
    %264 = vector.multi_reduction <add>, %263, %cst_113 [1] : vector<16x32xf32> to vector<16xf32>
    %265 = vector.shape_cast %264 : vector<16xf32> to vector<16x1xf32>
    %cst_114 = arith.constant 3.200000e+01 : f32
    %266 = vector.broadcast %cst_114 : f32 to vector<16x1xf32>
    %267 = arith.divf %265, %266 : vector<16x1xf32>
    %268 = vector.broadcast %260 : vector<16x1xf32> to vector<16x32xf32>
    %269 = arith.subf %252, %268 : vector<16x32xf32>
    %cst_115 = arith.constant 9.99999974E-6 : f32
    %270 = vector.broadcast %cst_115 : f32 to vector<16x1xf32>
    %271 = arith.addf %267, %270 : vector<16x1xf32>
    %272 = math.rsqrt %271 : vector<16x1xf32>
    %273 = vector.broadcast %272 : vector<16x1xf32> to vector<16x32xf32>
    %274 = arith.mulf %269, %273 : vector<16x32xf32>
    %275 = vector.broadcast %254 : vector<1x32xf32> to vector<16x32xf32>
    %276 = arith.mulf %274, %275 : vector<16x32xf32>
    %277 = vector.broadcast %256 : vector<1x32xf32> to vector<16x32xf32>
    %278 = arith.addf %276, %277 : vector<16x32xf32>
    %c0_116 = arith.constant 0 : index
    %c0_117 = arith.constant 0 : index
    %279 = vector.load %arg30[%c0_116, %c0_117] : memref<16x32xf32, #tpu.memory_space<vmem>>, vector<16x32xf32>
    tpu.vector_store %arg30[%c0_116, %c0_117], %278 {strides = array<i32>} : memref<16x32xf32, #tpu.memory_space<vmem>>, vector<16x32xf32>,
    %c1_i32 = arith.constant 1 : i32
    %280 = arith.cmpi eq, %arg1, %c1_i32 : i32
    %281 = arith.extui %280 : i1 to i32
    %c0_i32_118 = arith.constant 0 : i32
    %282 = arith.cmpi ne, %281, %c0_i32_118 : i32
    scf.if %282 {
      %c0_119 = arith.constant 0 : index
      %c0_120 = arith.constant 0 : index
      %283 = vector.load %arg23[%c0_119, %c0_120] : memref<1x32xf32, #tpu.memory_space<vmem>>, vector<1x32xf32>
      %c0_121 = arith.constant 0 : index
      %c0_122 = arith.constant 0 : index
      %284 = vector.load %arg24[%c0_121, %c0_122] : memref<1x32xf32, #tpu.memory_space<vmem>>, vector<1x32xf32>
      %cst_123 = arith.constant dense<0.000000e+00> : vector<16xf32>
      %285 = vector.multi_reduction <add>, %278, %cst_123 [1] : vector<16x32xf32> to vector<16xf32>
      %286 = vector.shape_cast %285 : vector<16xf32> to vector<16x1xf32>
      %cst_124 = arith.constant 3.200000e+01 : f32
      %287 = vector.broadcast %cst_124 : f32 to vector<16x1xf32>
      %288 = arith.divf %286, %287 : vector<16x1xf32>
      %289 = vector.broadcast %288 : vector<16x1xf32> to vector<16x32xf32>
      %290 = arith.subf %278, %289 : vector<16x32xf32>
      %291 = arith.mulf %290, %290 : vector<16x32xf32>
      %cst_125 = arith.constant dense<0.000000e+00> : vector<16xf32>
      %292 = vector.multi_reduction <add>, %291, %cst_125 [1] : vector<16x32xf32> to vector<16xf32>
      %293 = vector.shape_cast %292 : vector<16xf32> to vector<16x1xf32>
      %cst_126 = arith.constant 3.200000e+01 : f32
      %294 = vector.broadcast %cst_126 : f32 to vector<16x1xf32>
      %295 = arith.divf %293, %294 : vector<16x1xf32>
      %296 = vector.broadcast %288 : vector<16x1xf32> to vector<16x32xf32>
      %297 = arith.subf %278, %296 : vector<16x32xf32>
      %cst_127 = arith.constant 9.99999974E-6 : f32
      %298 = vector.broadcast %cst_127 : f32 to vector<16x1xf32>
      %299 = arith.addf %295, %298 : vector<16x1xf32>
      %300 = math.rsqrt %299 : vector<16x1xf32>
      %301 = vector.broadcast %300 : vector<16x1xf32> to vector<16x32xf32>
      %302 = arith.mulf %297, %301 : vector<16x32xf32>
      %303 = vector.broadcast %283 : vector<1x32xf32> to vector<16x32xf32>
      %304 = arith.mulf %302, %303 : vector<16x32xf32>
      %305 = vector.broadcast %284 : vector<1x32xf32> to vector<16x32xf32>
      %306 = arith.addf %304, %305 : vector<16x32xf32>
      %c0_128 = arith.constant 0 : index
      %c0_129 = arith.constant 0 : index
      %307 = vector.load %arg25[%c0_128, %c0_129] : memref<32x4xf32, #tpu.memory_space<vmem>>, vector<32x4xf32>
      %308 = arith.truncf %306 : vector<16x32xf32> to vector<16x32xbf16>
      %309 = arith.truncf %307 : vector<32x4xf32> to vector<32x4xbf16>
      %cst_130 = arith.constant dense<0.000000e+00> : vector<16x4xf32>
      %310 = tpu.matmul %308, %309, %cst_130 {dimension_numbers = #tpu.dot_dimension_numbers<[1], [0], [0], [1], [0, 0, 1, 1], [], []>} : vector<16x32xbf16>, vector<32x4xbf16>, vector<16x4xf32> -> vector<16x4xf32>
      %c0_131 = arith.constant 0 : index
      %c0_132 = arith.constant 0 : index
      %311 = vector.load %arg26[%c0_131, %c0_132] : memref<1x4xf32, #tpu.memory_space<vmem>>, vector<1x4xf32>
      %312 = vector.broadcast %311 : vector<1x4xf32> to vector<16x4xf32>
      %313 = arith.addf %310, %312 : vector<16x4xf32>
      %314 = vector.shape_cast %313 : vector<16x4xf32> to vector<1x16x4xf32>
      %c0_133 = arith.constant 0 : index
      %c0_134 = arith.constant 0 : index
      %c0_135 = arith.constant 0 : index
      %315 = vector.load %arg27[%c0_133, %c0_134, %c0_135] : memref<1x16x4xf32, #tpu.memory_space<vmem>>, vector<1x16x4xf32>
      tpu.vector_store %arg27[%c0_133, %c0_134, %c0_135], %314 {strides = array<i32>} : memref<1x16x4xf32, #tpu.memory_space<vmem>>, vector<1x16x4xf32>,
    } else {
    }
    return
  }
  func.func @transform_0(%arg0: i32, %arg1: i32) -> (i32, i32, i32) {
    %c0_i32 = arith.constant 0 : i32
    %c0_i32_0 = arith.constant 0 : i32
    %c0_i32_1 = arith.constant 0 : i32
    return %arg0, %c0_i32, %c0_i32_0 : i32, i32, i32
  }
  func.func @transform_1(%arg0: i32, %arg1: i32) -> (i32, i32) {
    %c0_i32 = arith.constant 0 : i32
    %c0_i32_0 = arith.constant 0 : i32
    %c0_i32_1 = arith.constant 0 : i32
    return %c0_i32, %c0_i32_0 : i32, i32
  }
  func.func @transform_2(%arg0: i32, %arg1: i32) -> (i32, i32) {
    %c0_i32 = arith.constant 0 : i32
    %c0_i32_0 = arith.constant 0 : i32
    %c0_i32_1 = arith.constant 0 : i32
    return %c0_i32, %c0_i32_0 : i32, i32
  }
  func.func @transform_3(%arg0: i32, %arg1: i32) -> (i32, i32, i32, i32) {
    %c0_i32 = arith.constant 0 : i32
    %c0_i32_0 = arith.constant 0 : i32
    %c0_i32_1 = arith.constant 0 : i32
    %c0_i32_2 = arith.constant 0 : i32
    return %arg1, %c0_i32, %c0_i32_0, %c0_i32_1 : i32, i32, i32, i32
  }
  func.func @transform_4(%arg0: i32, %arg1: i32) -> (i32, i32, i32, i32) {
    %c0_i32 = arith.constant 0 : i32
    %c0_i32_0 = arith.constant 0 : i32
    %c0_i32_1 = arith.constant 0 : i32
    %c0_i32_2 = arith.constant 0 : i32
    return %arg1, %c0_i32, %c0_i32_0, %c0_i32_1 : i32, i32, i32, i32
  }
  func.func @transform_5(%arg0: i32, %arg1: i32) -> (i32, i32, i32, i32) {
    %c0_i32 = arith.constant 0 : i32
    %c0_i32_0 = arith.constant 0 : i32
    %c0_i32_1 = arith.constant 0 : i32
    %c0_i32_2 = arith.constant 0 : i32
    return %arg1, %c0_i32, %c0_i32_0, %c0_i32_1 : i32, i32, i32, i32
  }
  func.func @transform_6(%arg0: i32, %arg1: i32) -> (i32, i32, i32, i32) {
    %c0_i32 = arith.constant 0 : i32
    %c0_i32_0 = arith.constant 0 : i32
    %c0_i32_1 = arith.constant 0 : i32
    %c0_i32_2 = arith.constant 0 : i32
    return %arg1, %c0_i32, %c0_i32_0, %c0_i32_1 : i32, i32, i32, i32
  }
  func.func @transform_7(%arg0: i32, %arg1: i32) -> (i32, i32, i32, i32) {
    %c0_i32 = arith.constant 0 : i32
    %c0_i32_0 = arith.constant 0 : i32
    %c0_i32_1 = arith.constant 0 : i32
    %c0_i32_2 = arith.constant 0 : i32
    return %arg1, %c0_i32, %c0_i32_0, %c0_i32_1 : i32, i32, i32, i32
  }
  func.func @transform_8(%arg0: i32, %arg1: i32) -> (i32, i32, i32, i32) {
    %c0_i32 = arith.constant 0 : i32
    %c0_i32_0 = arith.constant 0 : i32
    %c0_i32_1 = arith.constant 0 : i32
    %c0_i32_2 = arith.constant 0 : i32
    return %arg1, %c0_i32, %c0_i32_0, %c0_i32_1 : i32, i32, i32, i32
  }
  func.func @transform_9(%arg0: i32, %arg1: i32) -> (i32, i32, i32) {
    %c0_i32 = arith.constant 0 : i32
    %c0_i32_0 = arith.constant 0 : i32
    %c0_i32_1 = arith.constant 0 : i32
    return %arg1, %c0_i32, %c0_i32_0 : i32, i32, i32
  }
  func.func @transform_10(%arg0: i32, %arg1: i32) -> (i32, i32, i32) {
    %c0_i32 = arith.constant 0 : i32
    %c0_i32_0 = arith.constant 0 : i32
    %c0_i32_1 = arith.constant 0 : i32
    return %arg1, %c0_i32, %c0_i32_0 : i32, i32, i32
  }
  func.func @transform_11(%arg0: i32, %arg1: i32) -> (i32, i32, i32) {
    %c0_i32 = arith.constant 0 : i32
    %c0_i32_0 = arith.constant 0 : i32
    %c0_i32_1 = arith.constant 0 : i32
    return %arg1, %c0_i32, %c0_i32_0 : i32, i32, i32
  }
  func.func @transform_12(%arg0: i32, %arg1: i32) -> (i32, i32, i32) {
    %c0_i32 = arith.constant 0 : i32
    %c0_i32_0 = arith.constant 0 : i32
    %c0_i32_1 = arith.constant 0 : i32
    return %arg1, %c0_i32, %c0_i32_0 : i32, i32, i32
  }
  func.func @transform_13(%arg0: i32, %arg1: i32) -> (i32, i32, i32) {
    %c0_i32 = arith.constant 0 : i32
    %c0_i32_0 = arith.constant 0 : i32
    %c0_i32_1 = arith.constant 0 : i32
    return %arg1, %c0_i32, %c0_i32_0 : i32, i32, i32
  }
  func.func @transform_14(%arg0: i32, %arg1: i32) -> (i32, i32, i32) {
    %c0_i32 = arith.constant 0 : i32
    %c0_i32_0 = arith.constant 0 : i32
    %c0_i32_1 = arith.constant 0 : i32
    return %arg1, %c0_i32, %c0_i32_0 : i32, i32, i32
  }
  func.func @transform_15(%arg0: i32, %arg1: i32) -> (i32, i32, i32) {
    %c0_i32 = arith.constant 0 : i32
    %c0_i32_0 = arith.constant 0 : i32
    %c0_i32_1 = arith.constant 0 : i32
    return %arg1, %c0_i32, %c0_i32_0 : i32, i32, i32
  }
  func.func @transform_16(%arg0: i32, %arg1: i32) -> (i32, i32, i32) {
    %c0_i32 = arith.constant 0 : i32
    %c0_i32_0 = arith.constant 0 : i32
    %c0_i32_1 = arith.constant 0 : i32
    return %arg1, %c0_i32, %c0_i32_0 : i32, i32, i32
  }
  func.func @transform_17(%arg0: i32, %arg1: i32) -> (i32, i32, i32) {
    %c0_i32 = arith.constant 0 : i32
    %c0_i32_0 = arith.constant 0 : i32
    %c0_i32_1 = arith.constant 0 : i32
    return %arg1, %c0_i32, %c0_i32_0 : i32, i32, i32
  }
  func.func @transform_18(%arg0: i32, %arg1: i32) -> (i32, i32, i32) {
    %c0_i32 = arith.constant 0 : i32
    %c0_i32_0 = arith.constant 0 : i32
    %c0_i32_1 = arith.constant 0 : i32
    return %arg1, %c0_i32, %c0_i32_0 : i32, i32, i32
  }
  func.func @transform_19(%arg0: i32, %arg1: i32) -> (i32, i32, i32) {
    %c0_i32 = arith.constant 0 : i32
    %c0_i32_0 = arith.constant 0 : i32
    %c0_i32_1 = arith.constant 0 : i32
    return %arg1, %c0_i32, %c0_i32_0 : i32, i32, i32
  }
  func.func @transform_20(%arg0: i32, %arg1: i32) -> (i32, i32, i32) {
    %c0_i32 = arith.constant 0 : i32
    %c0_i32_0 = arith.constant 0 : i32
    %c0_i32_1 = arith.constant 0 : i32
    return %arg1, %c0_i32, %c0_i32_0 : i32, i32, i32
  }
  func.func @transform_21(%arg0: i32, %arg1: i32) -> (i32, i32) {
    %c0_i32 = arith.constant 0 : i32
    %c0_i32_0 = arith.constant 0 : i32
    %c0_i32_1 = arith.constant 0 : i32
    return %c0_i32, %c0_i32_0 : i32, i32
  }
  func.func @transform_22(%arg0: i32, %arg1: i32) -> (i32, i32) {
    %c0_i32 = arith.constant 0 : i32
    %c0_i32_0 = arith.constant 0 : i32
    %c0_i32_1 = arith.constant 0 : i32
    return %c0_i32, %c0_i32_0 : i32, i32
  }
  func.func @transform_23(%arg0: i32, %arg1: i32) -> (i32, i32) {
    %c0_i32 = arith.constant 0 : i32
    %c0_i32_0 = arith.constant 0 : i32
    %c0_i32_1 = arith.constant 0 : i32
    return %c0_i32, %c0_i32_0 : i32, i32
  }
  func.func @transform_24(%arg0: i32, %arg1: i32) -> (i32, i32) {
    %c0_i32 = arith.constant 0 : i32
    %c0_i32_0 = arith.constant 0 : i32
    %c0_i32_1 = arith.constant 0 : i32
    return %c0_i32, %c0_i32_0 : i32, i32
  }
  func.func @transform_25(%arg0: i32, %arg1: i32) -> (i32, i32, i32) {
    %c0_i32 = arith.constant 0 : i32
    %c0_i32_0 = arith.constant 0 : i32
    %c0_i32_1 = arith.constant 0 : i32
    return %arg0, %c0_i32, %c0_i32_0 : i32, i32, i32
  }
  func.func @transform_26(%arg0: i32, %arg1: i32) -> (i32, i32, i32, i32, i32) {
    %c0_i32 = arith.constant 0 : i32
    %c0_i32_0 = arith.constant 0 : i32
    %c0_i32_1 = arith.constant 0 : i32
    %c0_i32_2 = arith.constant 0 : i32
    return %arg1, %arg0, %c0_i32, %c0_i32_0, %c0_i32_1 : i32, i32, i32, i32, i32
  }
  func.func @transform_27(%arg0: i32, %arg1: i32) -> (i32, i32, i32, i32) {
    %c0_i32 = arith.constant 0 : i32
    %c0_i32_0 = arith.constant 0 : i32
    %c0_i32_1 = arith.constant 0 : i32
    return %arg1, %arg0, %c0_i32, %c0_i32_0 : i32, i32, i32, i32
  }
}

</mosaic_0001>

<llo_original>
// kernel: tpu_custom_call.1
$region0: #{tpu_custom_call.1}
  #allocation0 [shape = 'u32[]', space=smem, size = 0x4, offset = 0x4, fixed_abs, tag = 'smem constant byte address 0x4 - core index']
  #allocation1 [shape = 'u32[72,128]{1,0:T(1,128)}', space=vmem, size = 0x9000, scoped, tag = 'internal scratch']
  #allocation2 [shape = 'f32[16,32]{1,0:T(8,128)}', space=vmem, size = 0x2000, scoped, tag = 'scratch operand']
  %s0 = inlined_call_operand.vmem [shape: f32[2,16,12], index: 0, kind: input, shape index: {}]
  %s1 = inlined_call_operand.vmem [shape: f32[16,32], index: 1, kind: input, shape index: {}]
  %s2 = inlined_call_operand.vmem [shape: f32[12,32], index: 2, kind: input, shape index: {}]
  %s3 = inlined_call_operand.vmem [shape: f32[2,4,32,8], index: 3, kind: input, shape index: {}]
  %s4 = inlined_call_operand.vmem [shape: f32[2,4,1,8], index: 4, kind: input, shape index: {}]
  %s5 = inlined_call_operand.vmem [shape: f32[2,4,32,8], index: 5, kind: input, shape index: {}]
  %s6 = inlined_call_operand.vmem [shape: f32[2,4,1,8], index: 6, kind: input, shape index: {}]
  %s7 = inlined_call_operand.vmem [shape: f32[2,4,32,8], index: 7, kind: input, shape index: {}]
  %s8 = inlined_call_operand.vmem [shape: f32[2,4,1,8], index: 8, kind: input, shape index: {}]
  %s9 = inlined_call_operand.vmem [shape: f32[2,32,4], index: 9, kind: input, shape index: {}]
  %s10 = inlined_call_operand.vmem [shape: f32[2,1,4], index: 10, kind: input, shape index: {}]
  %s11 = inlined_call_operand.vmem [shape: f32[2,32,32], index: 11, kind: input, shape index: {}]
  %s12 = inlined_call_operand.vmem [shape: f32[2,1,32], index: 12, kind: input, shape index: {}]
  %s13 = inlined_call_operand.vmem [shape: f32[2,1,32], index: 13, kind: input, shape index: {}]
  %s14 = inlined_call_operand.vmem [shape: f32[2,1,32], index: 14, kind: input, shape index: {}]
  %s15 = inlined_call_operand.vmem [shape: f32[2,32,64], index: 15, kind: input, shape index: {}]
  %s16 = inlined_call_operand.vmem [shape: f32[2,1,64], index: 16, kind: input, shape index: {}]
  %s17 = inlined_call_operand.vmem [shape: f32[2,64,32], index: 17, kind: input, shape index: {}]
  %s18 = inlined_call_operand.vmem [shape: f32[2,1,32], index: 18, kind: input, shape index: {}]
  %s19 = inlined_call_operand.vmem [shape: f32[2,1,32], index: 19, kind: input, shape index: {}]
  %s20 = inlined_call_operand.vmem [shape: f32[2,1,32], index: 20, kind: input, shape index: {}]
  %s21 = inlined_call_operand.vmem [shape: f32[1,32], index: 21, kind: input, shape index: {}]
  %s22 = inlined_call_operand.vmem [shape: f32[1,32], index: 22, kind: input, shape index: {}]
  %s23 = inlined_call_operand.vmem [shape: f32[32,4], index: 23, kind: input, shape index: {}]
  %s24 = inlined_call_operand.vmem [shape: f32[1,4], index: 24, kind: input, shape index: {}]
  %s25 = inlined_call_operand.vmem [shape: f32[2,16,4], index: 25, kind: output, shape index: {0}]
  %s26 = inlined_call_operand.hbm [shape: f32[2,2,4,16,16], index: 26, kind: output, shape index: {1}]
  %s27 = inlined_call_operand.vmem [shape: f32[2,2,16,4], index: 27, kind: output, shape index: {2}]
  %28 = xla_tuple %s25, %s26, %s27
  %s29 = sld [smem:[#allocation0]]
  $region157: #{tpu_custom_call.1} parent=0
    _
  %s31 = ssub.s32 1, %s29
  %s32 = scalar_select 0, %s31, %s29
  $region1: #{tpu_custom_call.1} parent=0
    #allocation3 [shape = 'u8[65536]{0}', space=vmem, size = 0x10000, scoped, tag = 'output window, operand 1']
    #allocation4 [shape = 's32[2]{0}', space=sflag, size = 0x8, scoped, tag = 'scoped memory for tpu_custom_call.1']
    %33 = vsyncpa [#allocation4], 0
    %s34 = scalar_lea.sflag [#allocation4], 1
    %35 = vsyncpa %s34, 0
    loop: start=0, step=1, limit=6
    $region2: #{tpu_custom_call.1} parent=1 // loop_pre_header
      _
    $region3: #{tpu_custom_call.1} parent=1 // loop_header
      %s37 = sphi 0, %s41
      %p38 = scmp.ge.s32.totalorder %s37, 6
      %s44 = sphi 0, %s56
      %s45 = sphi 0, %s52
      %s46 = sphi 0, %s44
      %s47 = sphi 0, %s45
      %s48 = sphi 0, %s46
      %s49 = sphi 0, %s47
      %s59 = sphi 0, %s61
      %s62 = sphi 0, %s59
      %s63 = sphi 0, %s62
      %s79 = sphi 0, %s63
      %s83 = sphi 0, %s83
      %s85 = sphi 0, %s83
      %s86 = sphi 0, %s85
      %s100 = sphi 0, %s86
      %s104 = sphi 0, %s104
      %s106 = sphi 0, %s104
      %s107 = sphi 0, %s106
      %s121 = sphi 0, %s107
      %s127 = sphi 0, %s129
      %s130 = sphi 0, %s127
      %s131 = sphi 0, %s130
      %s147 = sphi 0, %s131
      %s153 = sphi 0, %s155
      %s156 = sphi 0, %s153
      %s157 = sphi 0, %s156
      %s173 = sphi 0, %s157
      %s179 = sphi 0, %s181
      %s182 = sphi 0, %s179
      %s183 = sphi 0, %s182
      %s199 = sphi 0, %s183
      %s205 = sphi 0, %s207
      %s208 = sphi 0, %s205
      %s209 = sphi 0, %s208
      %s225 = sphi 0, %s209
      %s231 = sphi 0, %s233
      %s234 = sphi 0, %s231
      %s235 = sphi 0, %s234
      %s251 = sphi 0, %s235
      %s257 = sphi 0, %s259
      %s260 = sphi 0, %s257
      %s261 = sphi 0, %s260
      %s277 = sphi 0, %s261
      %s283 = sphi 0, %s285
      %s286 = sphi 0, %s283
      %s287 = sphi 0, %s286
      %s303 = sphi 0, %s287
      %s309 = sphi 0, %s311
      %s312 = sphi 0, %s309
      %s313 = sphi 0, %s312
      %s329 = sphi 0, %s313
      %s335 = sphi 0, %s337
      %s338 = sphi 0, %s335
      %s339 = sphi 0, %s338
      %s355 = sphi 0, %s339
      %s361 = sphi 0, %s363
      %s364 = sphi 0, %s361
      %s365 = sphi 0, %s364
      %s381 = sphi 0, %s365
      %s387 = sphi 0, %s389
      %s390 = sphi 0, %s387
      %s391 = sphi 0, %s390
      %s407 = sphi 0, %s391
      %s413 = sphi 0, %s415
      %s416 = sphi 0, %s413
      %s417 = sphi 0, %s416
      %s433 = sphi 0, %s417
      %s439 = sphi 0, %s441
      %s442 = sphi 0, %s439
      %s443 = sphi 0, %s442
      %s459 = sphi 0, %s443
      %s465 = sphi 0, %s467
      %s468 = sphi 0, %s465
      %s469 = sphi 0, %s468
      %s485 = sphi 0, %s469
      %s491 = sphi 0, %s493
      %s494 = sphi 0, %s491
      %s495 = sphi 0, %s494
      %s511 = sphi 0, %s495
      %s517 = sphi 0, %s519
      %s520 = sphi 0, %s517
      %s521 = sphi 0, %s520
      %s537 = sphi 0, %s521
      %s543 = sphi 0, %s545
      %s546 = sphi 0, %s543
      %s547 = sphi 0, %s546
      %s563 = sphi 0, %s547
      %s569 = sphi 0, %s571
      %s572 = sphi 0, %s569
      %s573 = sphi 0, %s572
      %s589 = sphi 0, %s573
      %s593 = sphi 0, %s593
      %s595 = sphi 0, %s593
      %s596 = sphi 0, %s595
      %s610 = sphi 0, %s596
      %s614 = sphi 0, %s614
      %s616 = sphi 0, %s614
      %s617 = sphi 0, %s616
      %s631 = sphi 0, %s617
      %s635 = sphi 0, %s635
      %s637 = sphi 0, %s635
      %s638 = sphi 0, %s637
      %s652 = sphi 0, %s638
      %s656 = sphi 0, %s656
      %s658 = sphi 0, %s656
      %s659 = sphi 0, %s658
      %s673 = sphi 0, %s659
      %s679 = sphi 0, %s681
      %s682 = sphi 0, %s679
      %s683 = sphi 0, %s682
      %s699 = sphi 0, %s683
      %s707 = sphi 0, %s709
      %s710 = sphi 0, %s707
      %s711 = sphi 0, %s710
      %s727 = sphi 0, %s711
      %s735 = sphi 0, %s737
      %s738 = sphi 0, %s735
      %s739 = sphi 0, %s738
      %s755 = sphi 0, %s739
    $region4: #{tpu_custom_call.1} parent=1 // loop_header_branch
      %40 = sbr.rel (%p38) target = $region8
    $region5: #{tpu_custom_call.1} parent=1 // loop_body
      %s42 = ssub.s32 %s37, 1
      %s43 = ssub.s32 %s37, 2
      %s50 = sadd.s32 1, %s45
      %p51 = scmp.ge.s32.totalorder %s50, 2
      %s52 = scalar_select %p51, 0, %s50
      %s53 = sadd.s32 1, %s44
      %s54 = scalar_select %p51, %s53, %s44
      %p55 = scmp.ge.s32.totalorder %s54, 2
      %s56 = scalar_select %p55, 0, %s54
      %s57 = ssub.s32 %s44, %s56
      %p58 = scmp.eq.s32.totalorder %s57, 0
      %s60 = sadd.s32 %s59, 1
      %s61 = scalar_select %p58, %s59, %s60
      %p64 = pneg %p58
      %p65 = scmp.eq.s32.totalorder %s37, 3
      %p66 = por %p64, %p65
      %p67 = scmp.ne.s32.totalorder %s59, %s62
      %p68 = scmp.eq.s32.totalorder %s37, 0
      %p69 = por %p67, %p68
      %p70 = scmp.ne.s32.totalorder %s59, %s62
      %p71 = scmp.eq.s32.totalorder %s42, 3
      %p72 = por %p70, %p71
      %p73 = scmp.ne.s32.totalorder %s62, %s63
      %p74 = scmp.eq.s32.totalorder %s42, 0
      %p75 = por %p73, %p74
      %p76 = scmp.ne.s32.totalorder %s62, %s63
      %p77 = scmp.eq.s32.totalorder %s43, 3
      %p78 = por %p76, %p77
      %p80 = scmp.ne.s32.totalorder %s63, %s79
      %p81 = scmp.eq.s32.totalorder %s43, 0
      %p82 = por %p80, %p81
      %s84 = sadd.s32 %s83, 1
      %p87 = scmp.eq.s32.totalorder %s37, 3
      %p88 = scmp.ne.s32.totalorder %s83, %s85
      %p89 = scmp.eq.s32.totalorder %s37, 0
      %p90 = por %p88, %p89
      %p91 = scmp.ne.s32.totalorder %s83, %s85
      %p92 = scmp.eq.s32.totalorder %s42, 3
      %p93 = por %p91, %p92
      %p94 = scmp.ne.s32.totalorder %s85, %s86
      %p95 = scmp.eq.s32.totalorder %s42, 0
      %p96 = por %p94, %p95
      %p97 = scmp.ne.s32.totalorder %s85, %s86
      %p98 = scmp.eq.s32.totalorder %s43, 3
      %p99 = por %p97, %p98
      %p101 = scmp.ne.s32.totalorder %s86, %s100
      %p102 = scmp.eq.s32.totalorder %s43, 0
      %p103 = por %p101, %p102
      %s105 = sadd.s32 %s104, 1
      %p108 = scmp.eq.s32.totalorder %s37, 3
      %p109 = scmp.ne.s32.totalorder %s104, %s106
      %p110 = scmp.eq.s32.totalorder %s37, 0
      %p111 = por %p109, %p110
      %p112 = scmp.ne.s32.totalorder %s104, %s106
      %p113 = scmp.eq.s32.totalorder %s42, 3
      %p114 = por %p112, %p113
      %p115 = scmp.ne.s32.totalorder %s106, %s107
      %p116 = scmp.eq.s32.totalorder %s42, 0
      %p117 = por %p115, %p116
      %p118 = scmp.ne.s32.totalorder %s106, %s107
      %p119 = scmp.eq.s32.totalorder %s43, 3
      %p120 = por %p118, %p119
      %p122 = scmp.ne.s32.totalorder %s107, %s121
      %p123 = scmp.eq.s32.totalorder %s43, 0
      %p124 = por %p122, %p123
      %s125 = ssub.s32 %s45, %s52
      %p126 = scmp.eq.s32.totalorder %s125, 0
      %s128 = sadd.s32 %s127, 1
      %s129 = scalar_select %p126, %s127, %s128
      %p132 = pneg %p126
      %p133 = scmp.eq.s32.totalorder %s37, 3
      %p134 = por %p132, %p133
      %p135 = scmp.ne.s32.totalorder %s127, %s130
      %p136 = scmp.eq.s32.totalorder %s37, 0
      %p137 = por %p135, %p136
      %p138 = scmp.ne.s32.totalorder %s127, %s130
      %p139 = scmp.eq.s32.totalorder %s42, 3
      %p140 = por %p138, %p139
      %p141 = scmp.ne.s32.totalorder %s130, %s131
      %p142 = scmp.eq.s32.totalorder %s42, 0
      %p143 = por %p141, %p142
      %p144 = scmp.ne.s32.totalorder %s130, %s131
      %p145 = scmp.eq.s32.totalorder %s43, 3
      %p146 = por %p144, %p145
      %p148 = scmp.ne.s32.totalorder %s131, %s147
      %p149 = scmp.eq.s32.totalorder %s43, 0
      %p150 = por %p148, %p149
      %s151 = ssub.s32 %s45, %s52
      %p152 = scmp.eq.s32.totalorder %s151, 0
      %s154 = sadd.s32 %s153, 1
      %s155 = scalar_select %p152, %s153, %s154
      %p158 = pneg %p152
      %p159 = scmp.eq.s32.totalorder %s37, 3
      %p160 = por %p158, %p159
      %p161 = scmp.ne.s32.totalorder %s153, %s156
      %p162 = scmp.eq.s32.totalorder %s37, 0
      %p163 = por %p161, %p162
      %p164 = scmp.ne.s32.totalorder %s153, %s156
      %p165 = scmp.eq.s32.totalorder %s42, 3
      %p166 = por %p164, %p165
      %p167 = scmp.ne.s32.totalorder %s156, %s157
      %p168 = scmp.eq.s32.totalorder %s42, 0
      %p169 = por %p167, %p168
      %p170 = scmp.ne.s32.totalorder %s156, %s157
      %p171 = scmp.eq.s32.totalorder %s43, 3
      %p172 = por %p170, %p171
      %p174 = scmp.ne.s32.totalorder %s157, %s173
      %p175 = scmp.eq.s32.totalorder %s43, 0
      %p176 = por %p174, %p175
      %s177 = ssub.s32 %s45, %s52
      %p178 = scmp.eq.s32.totalorder %s177, 0
      %s180 = sadd.s32 %s179, 1
      %s181 = scalar_select %p178, %s179, %s180
      %p184 = pneg %p178
      %p185 = scmp.eq.s32.totalorder %s37, 3
      %p186 = por %p184, %p185
      %p187 = scmp.ne.s32.totalorder %s179, %s182
      %p188 = scmp.eq.s32.totalorder %s37, 0
      %p189 = por %p187, %p188
      %p190 = scmp.ne.s32.totalorder %s179, %s182
      %p191 = scmp.eq.s32.totalorder %s42, 3
      %p192 = por %p190, %p191
      %p193 = scmp.ne.s32.totalorder %s182, %s183
      %p194 = scmp.eq.s32.totalorder %s42, 0
      %p195 = por %p193, %p194
      %p196 = scmp.ne.s32.totalorder %s182, %s183
      %p197 = scmp.eq.s32.totalorder %s43, 3
      %p198 = por %p196, %p197
      %p200 = scmp.ne.s32.totalorder %s183, %s199
      %p201 = scmp.eq.s32.totalorder %s43, 0
      %p202 = por %p200, %p201
      %s203 = ssub.s32 %s45, %s52
      %p204 = scmp.eq.s32.totalorder %s203, 0
      %s206 = sadd.s32 %s205, 1
      %s207 = scalar_select %p204, %s205, %s206
      %p210 = pneg %p204
      %p211 = scmp.eq.s32.totalorder %s37, 3
      %p212 = por %p210, %p211
      %p213 = scmp.ne.s32.totalorder %s205, %s208
      %p214 = scmp.eq.s32.totalorder %s37, 0
      %p215 = por %p213, %p214
      %p216 = scmp.ne.s32.totalorder %s205, %s208
      %p217 = scmp.eq.s32.totalorder %s42, 3
      %p218 = por %p216, %p217
      %p219 = scmp.ne.s32.totalorder %s208, %s209
      %p220 = scmp.eq.s32.totalorder %s42, 0
      %p221 = por %p219, %p220
      %p222 = scmp.ne.s32.totalorder %s208, %s209
      %p223 = scmp.eq.s32.totalorder %s43, 3
      %p224 = por %p222, %p223
      %p226 = scmp.ne.s32.totalorder %s209, %s225
      %p227 = scmp.eq.s32.totalorder %s43, 0
      %p228 = por %p226, %p227
      %s229 = ssub.s32 %s45, %s52
      %p230 = scmp.eq.s32.totalorder %s229, 0
      %s232 = sadd.s32 %s231, 1
      %s233 = scalar_select %p230, %s231, %s232
      %p236 = pneg %p230
      %p237 = scmp.eq.s32.totalorder %s37, 3
      %p238 = por %p236, %p237
      %p239 = scmp.ne.s32.totalorder %s231, %s234
      %p240 = scmp.eq.s32.totalorder %s37, 0
      %p241 = por %p239, %p240
      %p242 = scmp.ne.s32.totalorder %s231, %s234
      %p243 = scmp.eq.s32.totalorder %s42, 3
      %p244 = por %p242, %p243
      %p245 = scmp.ne.s32.totalorder %s234, %s235
      %p246 = scmp.eq.s32.totalorder %s42, 0
      %p247 = por %p245, %p246
      %p248 = scmp.ne.s32.totalorder %s234, %s235
      %p249 = scmp.eq.s32.totalorder %s43, 3
      %p250 = por %p248, %p249
      %p252 = scmp.ne.s32.totalorder %s235, %s251
      %p253 = scmp.eq.s32.totalorder %s43, 0
      %p254 = por %p252, %p253
      %s255 = ssub.s32 %s45, %s52
      %p256 = scmp.eq.s32.totalorder %s255, 0
      %s258 = sadd.s32 %s257, 1
      %s259 = scalar_select %p256, %s257, %s258
      %p262 = pneg %p256
      %p263 = scmp.eq.s32.totalorder %s37, 3
      %p264 = por %p262, %p263
      %p265 = scmp.ne.s32.totalorder %s257, %s260
      %p266 = scmp.eq.s32.totalorder %s37, 0
      %p267 = por %p265, %p266
      %p268 = scmp.ne.s32.totalorder %s257, %s260
      %p269 = scmp.eq.s32.totalorder %s42, 3
      %p270 = por %p268, %p269
      %p271 = scmp.ne.s32.totalorder %s260, %s261
      %p272 = scmp.eq.s32.totalorder %s42, 0
      %p273 = por %p271, %p272
      %p274 = scmp.ne.s32.totalorder %s260, %s261
      %p275 = scmp.eq.s32.totalorder %s43, 3
      %p276 = por %p274, %p275
      %p278 = scmp.ne.s32.totalorder %s261, %s277
      %p279 = scmp.eq.s32.totalorder %s43, 0
      %p280 = por %p278, %p279
      %s281 = ssub.s32 %s45, %s52
      %p282 = scmp.eq.s32.totalorder %s281, 0
      %s284 = sadd.s32 %s283, 1
      %s285 = scalar_select %p282, %s283, %s284
      %p288 = pneg %p282
      %p289 = scmp.eq.s32.totalorder %s37, 3
      %p290 = por %p288, %p289
      %p291 = scmp.ne.s32.totalorder %s283, %s286
      %p292 = scmp.eq.s32.totalorder %s37, 0
      %p293 = por %p291, %p292
      %p294 = scmp.ne.s32.totalorder %s283, %s286
      %p295 = scmp.eq.s32.totalorder %s42, 3
      %p296 = por %p294, %p295
      %p297 = scmp.ne.s32.totalorder %s286, %s287
      %p298 = scmp.eq.s32.totalorder %s42, 0
      %p299 = por %p297, %p298
      %p300 = scmp.ne.s32.totalorder %s286, %s287
      %p301 = scmp.eq.s32.totalorder %s43, 3
      %p302 = por %p300, %p301
      %p304 = scmp.ne.s32.totalorder %s287, %s303
      %p305 = scmp.eq.s32.totalorder %s43, 0
      %p306 = por %p304, %p305
      %s307 = ssub.s32 %s45, %s52
      %p308 = scmp.eq.s32.totalorder %s307, 0
      %s310 = sadd.s32 %s309, 1
      %s311 = scalar_select %p308, %s309, %s310
      %p314 = pneg %p308
      %p315 = scmp.eq.s32.totalorder %s37, 3
      %p316 = por %p314, %p315
      %p317 = scmp.ne.s32.totalorder %s309, %s312
      %p318 = scmp.eq.s32.totalorder %s37, 0
      %p319 = por %p317, %p318
      %p320 = scmp.ne.s32.totalorder %s309, %s312
      %p321 = scmp.eq.s32.totalorder %s42, 3
      %p322 = por %p320, %p321
      %p323 = scmp.ne.s32.totalorder %s312, %s313
      %p324 = scmp.eq.s32.totalorder %s42, 0
      %p325 = por %p323, %p324
      %p326 = scmp.ne.s32.totalorder %s312, %s313
      %p327 = scmp.eq.s32.totalorder %s43, 3
      %p328 = por %p326, %p327
      %p330 = scmp.ne.s32.totalorder %s313, %s329
      %p331 = scmp.eq.s32.totalorder %s43, 0
      %p332 = por %p330, %p331
      %s333 = ssub.s32 %s45, %s52
      %p334 = scmp.eq.s32.totalorder %s333, 0
      %s336 = sadd.s32 %s335, 1
      %s337 = scalar_select %p334, %s335, %s336
      %p340 = pneg %p334
      %p341 = scmp.eq.s32.totalorder %s37, 3
      %p342 = por %p340, %p341
      %p343 = scmp.ne.s32.totalorder %s335, %s338
      %p344 = scmp.eq.s32.totalorder %s37, 0
      %p345 = por %p343, %p344
      %p346 = scmp.ne.s32.totalorder %s335, %s338
      %p347 = scmp.eq.s32.totalorder %s42, 3
      %p348 = por %p346, %p347
      %p349 = scmp.ne.s32.totalorder %s338, %s339
      %p350 = scmp.eq.s32.totalorder %s42, 0
      %p351 = por %p349, %p350
      %p352 = scmp.ne.s32.totalorder %s338, %s339
      %p353 = scmp.eq.s32.totalorder %s43, 3
      %p354 = por %p352, %p353
      %p356 = scmp.ne.s32.totalorder %s339, %s355
      %p357 = scmp.eq.s32.totalorder %s43, 0
      %p358 = por %p356, %p357
      %s359 = ssub.s32 %s45, %s52
      %p360 = scmp.eq.s32.totalorder %s359, 0
      %s362 = sadd.s32 %s361, 1
      %s363 = scalar_select %p360, %s361, %s362
      %p366 = pneg %p360
      %p367 = scmp.eq.s32.totalorder %s37, 3
      %p368 = por %p366, %p367
      %p369 = scmp.ne.s32.totalorder %s361, %s364
      %p370 = scmp.eq.s32.totalorder %s37, 0
      %p371 = por %p369, %p370
      %p372 = scmp.ne.s32.totalorder %s361, %s364
      %p373 = scmp.eq.s32.totalorder %s42, 3
      %p374 = por %p372, %p373
      %p375 = scmp.ne.s32.totalorder %s364, %s365
      %p376 = scmp.eq.s32.totalorder %s42, 0
      %p377 = por %p375, %p376
      %p378 = scmp.ne.s32.totalorder %s364, %s365
      %p379 = scmp.eq.s32.totalorder %s43, 3
      %p380 = por %p378, %p379
      %p382 = scmp.ne.s32.totalorder %s365, %s381
      %p383 = scmp.eq.s32.totalorder %s43, 0
      %p384 = por %p382, %p383
      %s385 = ssub.s32 %s45, %s52
      %p386 = scmp.eq.s32.totalorder %s385, 0
      %s388 = sadd.s32 %s387, 1
      %s389 = scalar_select %p386, %s387, %s388
      %p392 = pneg %p386
      %p393 = scmp.eq.s32.totalorder %s37, 3
      %p394 = por %p392, %p393
      %p395 = scmp.ne.s32.totalorder %s387, %s390
      %p396 = scmp.eq.s32.totalorder %s37, 0
      %p397 = por %p395, %p396
      %p398 = scmp.ne.s32.totalorder %s387, %s390
      %p399 = scmp.eq.s32.totalorder %s42, 3
      %p400 = por %p398, %p399
      %p401 = scmp.ne.s32.totalorder %s390, %s391
      %p402 = scmp.eq.s32.totalorder %s42, 0
      %p403 = por %p401, %p402
      %p404 = scmp.ne.s32.totalorder %s390, %s391
      %p405 = scmp.eq.s32.totalorder %s43, 3
      %p406 = por %p404, %p405
      %p408 = scmp.ne.s32.totalorder %s391, %s407
      %p409 = scmp.eq.s32.totalorder %s43, 0
      %p410 = por %p408, %p409
      %s411 = ssub.s32 %s45, %s52
      %p412 = scmp.eq.s32.totalorder %s411, 0
      %s414 = sadd.s32 %s413, 1
      %s415 = scalar_select %p412, %s413, %s414
      %p418 = pneg %p412
      %p419 = scmp.eq.s32.totalorder %s37, 3
      %p420 = por %p418, %p419
      %p421 = scmp.ne.s32.totalorder %s413, %s416
      %p422 = scmp.eq.s32.totalorder %s37, 0
      %p423 = por %p421, %p422
      %p424 = scmp.ne.s32.totalorder %s413, %s416
      %p425 = scmp.eq.s32.totalorder %s42, 3
      %p426 = por %p424, %p425
      %p427 = scmp.ne.s32.totalorder %s416, %s417
      %p428 = scmp.eq.s32.totalorder %s42, 0
      %p429 = por %p427, %p428
      %p430 = scmp.ne.s32.totalorder %s416, %s417
      %p431 = scmp.eq.s32.totalorder %s43, 3
      %p432 = por %p430, %p431
      %p434 = scmp.ne.s32.totalorder %s417, %s433
      %p435 = scmp.eq.s32.totalorder %s43, 0
      %p436 = por %p434, %p435
      %s437 = ssub.s32 %s45, %s52
      %p438 = scmp.eq.s32.totalorder %s437, 0
      %s440 = sadd.s32 %s439, 1
      %s441 = scalar_select %p438, %s439, %s440
      %p444 = pneg %p438
      %p445 = scmp.eq.s32.totalorder %s37, 3
      %p446 = por %p444, %p445
      %p447 = scmp.ne.s32.totalorder %s439, %s442
      %p448 = scmp.eq.s32.totalorder %s37, 0
      %p449 = por %p447, %p448
      %p450 = scmp.ne.s32.totalorder %s439, %s442
      %p451 = scmp.eq.s32.totalorder %s42, 3
      %p452 = por %p450, %p451
      %p453 = scmp.ne.s32.totalorder %s442, %s443
      %p454 = scmp.eq.s32.totalorder %s42, 0
      %p455 = por %p453, %p454
      %p456 = scmp.ne.s32.totalorder %s442, %s443
      %p457 = scmp.eq.s32.totalorder %s43, 3
      %p458 = por %p456, %p457
      %p460 = scmp.ne.s32.totalorder %s443, %s459
      %p461 = scmp.eq.s32.totalorder %s43, 0
      %p462 = por %p460, %p461
      %s463 = ssub.s32 %s45, %s52
      %p464 = scmp.eq.s32.totalorder %s463, 0
      %s466 = sadd.s32 %s465, 1
      %s467 = scalar_select %p464, %s465, %s466
      %p470 = pneg %p464
      %p471 = scmp.eq.s32.totalorder %s37, 3
      %p472 = por %p470, %p471
      %p473 = scmp.ne.s32.totalorder %s465, %s468
      %p474 = scmp.eq.s32.totalorder %s37, 0
      %p475 = por %p473, %p474
      %p476 = scmp.ne.s32.totalorder %s465, %s468
      %p477 = scmp.eq.s32.totalorder %s42, 3
      %p478 = por %p476, %p477
      %p479 = scmp.ne.s32.totalorder %s468, %s469
      %p480 = scmp.eq.s32.totalorder %s42, 0
      %p481 = por %p479, %p480
      %p482 = scmp.ne.s32.totalorder %s468, %s469
      %p483 = scmp.eq.s32.totalorder %s43, 3
      %p484 = por %p482, %p483
      %p486 = scmp.ne.s32.totalorder %s469, %s485
      %p487 = scmp.eq.s32.totalorder %s43, 0
      %p488 = por %p486, %p487
      %s489 = ssub.s32 %s45, %s52
      %p490 = scmp.eq.s32.totalorder %s489, 0
      %s492 = sadd.s32 %s491, 1
      %s493 = scalar_select %p490, %s491, %s492
      %p496 = pneg %p490
      %p497 = scmp.eq.s32.totalorder %s37, 3
      %p498 = por %p496, %p497
      %p499 = scmp.ne.s32.totalorder %s491, %s494
      %p500 = scmp.eq.s32.totalorder %s37, 0
      %p501 = por %p499, %p500
      %p502 = scmp.ne.s32.totalorder %s491, %s494
      %p503 = scmp.eq.s32.totalorder %s42, 3
      %p504 = por %p502, %p503
      %p505 = scmp.ne.s32.totalorder %s494, %s495
      %p506 = scmp.eq.s32.totalorder %s42, 0
      %p507 = por %p505, %p506
      %p508 = scmp.ne.s32.totalorder %s494, %s495
      %p509 = scmp.eq.s32.totalorder %s43, 3
      %p510 = por %p508, %p509
      %p512 = scmp.ne.s32.totalorder %s495, %s511
      %p513 = scmp.eq.s32.totalorder %s43, 0
      %p514 = por %p512, %p513
      %s515 = ssub.s32 %s45, %s52
      %p516 = scmp.eq.s32.totalorder %s515, 0
      %s518 = sadd.s32 %s517, 1
      %s519 = scalar_select %p516, %s517, %s518
      %p522 = pneg %p516
      %p523 = scmp.eq.s32.totalorder %s37, 3
      %p524 = por %p522, %p523
      %p525 = scmp.ne.s32.totalorder %s517, %s520
      %p526 = scmp.eq.s32.totalorder %s37, 0
      %p527 = por %p525, %p526
      %p528 = scmp.ne.s32.totalorder %s517, %s520
      %p529 = scmp.eq.s32.totalorder %s42, 3
      %p530 = por %p528, %p529
      %p531 = scmp.ne.s32.totalorder %s520, %s521
      %p532 = scmp.eq.s32.totalorder %s42, 0
      %p533 = por %p531, %p532
      %p534 = scmp.ne.s32.totalorder %s520, %s521
      %p535 = scmp.eq.s32.totalorder %s43, 3
      %p536 = por %p534, %p535
      %p538 = scmp.ne.s32.totalorder %s521, %s537
      %p539 = scmp.eq.s32.totalorder %s43, 0
      %p540 = por %p538, %p539
      %s541 = ssub.s32 %s45, %s52
      %p542 = scmp.eq.s32.totalorder %s541, 0
      %s544 = sadd.s32 %s543, 1
      %s545 = scalar_select %p542, %s543, %s544
      %p548 = pneg %p542
      %p549 = scmp.eq.s32.totalorder %s37, 3
      %p550 = por %p548, %p549
      %p551 = scmp.ne.s32.totalorder %s543, %s546
      %p552 = scmp.eq.s32.totalorder %s37, 0
      %p553 = por %p551, %p552
      %p554 = scmp.ne.s32.totalorder %s543, %s546
      %p555 = scmp.eq.s32.totalorder %s42, 3
      %p556 = por %p554, %p555
      %p557 = scmp.ne.s32.totalorder %s546, %s547
      %p558 = scmp.eq.s32.totalorder %s42, 0
      %p559 = por %p557, %p558
      %p560 = scmp.ne.s32.totalorder %s546, %s547
      %p561 = scmp.eq.s32.totalorder %s43, 3
      %p562 = por %p560, %p561
      %p564 = scmp.ne.s32.totalorder %s547, %s563
      %p565 = scmp.eq.s32.totalorder %s43, 0
      %p566 = por %p564, %p565
      %s567 = ssub.s32 %s45, %s52
      %p568 = scmp.eq.s32.totalorder %s567, 0
      %s570 = sadd.s32 %s569, 1
      %s571 = scalar_select %p568, %s569, %s570
      %p574 = pneg %p568
      %p575 = scmp.eq.s32.totalorder %s37, 3
      %p576 = por %p574, %p575
      %p577 = scmp.ne.s32.totalorder %s569, %s572
      %p578 = scmp.eq.s32.totalorder %s37, 0
      %p579 = por %p577, %p578
      %p580 = scmp.ne.s32.totalorder %s569, %s572
      %p581 = scmp.eq.s32.totalorder %s42, 3
      %p582 = por %p580, %p581
      %p583 = scmp.ne.s32.totalorder %s572, %s573
      %p584 = scmp.eq.s32.totalorder %s42, 0
      %p585 = por %p583, %p584
      %p586 = scmp.ne.s32.totalorder %s572, %s573
      %p587 = scmp.eq.s32.totalorder %s43, 3
      %p588 = por %p586, %p587
      %p590 = scmp.ne.s32.totalorder %s573, %s589
      %p591 = scmp.eq.s32.totalorder %s43, 0
      %p592 = por %p590, %p591
      %s594 = sadd.s32 %s593, 1
      %p597 = scmp.eq.s32.totalorder %s37, 3
      %p598 = scmp.ne.s32.totalorder %s593, %s595
      %p599 = scmp.eq.s32.totalorder %s37, 0
      %p600 = por %p598, %p599
      %p601 = scmp.ne.s32.totalorder %s593, %s595
      %p602 = scmp.eq.s32.totalorder %s42, 3
      %p603 = por %p601, %p602
      %p604 = scmp.ne.s32.totalorder %s595, %s596
      %p605 = scmp.eq.s32.totalorder %s42, 0
      %p606 = por %p604, %p605
      %p607 = scmp.ne.s32.totalorder %s595, %s596
      %p608 = scmp.eq.s32.totalorder %s43, 3
      %p609 = por %p607, %p608
      %p611 = scmp.ne.s32.totalorder %s596, %s610
      %p612 = scmp.eq.s32.totalorder %s43, 0
      %p613 = por %p611, %p612
      %s615 = sadd.s32 %s614, 1
      %p618 = scmp.eq.s32.totalorder %s37, 3
      %p619 = scmp.ne.s32.totalorder %s614, %s616
      %p620 = scmp.eq.s32.totalorder %s37, 0
      %p621 = por %p619, %p620
      %p622 = scmp.ne.s32.totalorder %s614, %s616
      %p623 = scmp.eq.s32.totalorder %s42, 3
      %p624 = por %p622, %p623
      %p625 = scmp.ne.s32.totalorder %s616, %s617
      %p626 = scmp.eq.s32.totalorder %s42, 0
      %p627 = por %p625, %p626
      %p628 = scmp.ne.s32.totalorder %s616, %s617
      %p629 = scmp.eq.s32.totalorder %s43, 3
      %p630 = por %p628, %p629
      %p632 = scmp.ne.s32.totalorder %s617, %s631
      %p633 = scmp.eq.s32.totalorder %s43, 0
      %p634 = por %p632, %p633
      %s636 = sadd.s32 %s635, 1
      %p639 = scmp.eq.s32.totalorder %s37, 3
      %p640 = scmp.ne.s32.totalorder %s635, %s637
      %p641 = scmp.eq.s32.totalorder %s37, 0
      %p642 = por %p640, %p641
      %p643 = scmp.ne.s32.totalorder %s635, %s637
      %p644 = scmp.eq.s32.totalorder %s42, 3
      %p645 = por %p643, %p644
      %p646 = scmp.ne.s32.totalorder %s637, %s638
      %p647 = scmp.eq.s32.totalorder %s42, 0
      %p648 = por %p646, %p647
      %p649 = scmp.ne.s32.totalorder %s637, %s638
      %p650 = scmp.eq.s32.totalorder %s43, 3
      %p651 = por %p649, %p650
      %p653 = scmp.ne.s32.totalorder %s638, %s652
      %p654 = scmp.eq.s32.totalorder %s43, 0
      %p655 = por %p653, %p654
      %s657 = sadd.s32 %s656, 1
      %p660 = scmp.eq.s32.totalorder %s37, 3
      %p661 = scmp.ne.s32.totalorder %s656, %s658
      %p662 = scmp.eq.s32.totalorder %s37, 0
      %p663 = por %p661, %p662
      %p664 = scmp.ne.s32.totalorder %s656, %s658
      %p665 = scmp.eq.s32.totalorder %s42, 3
      %p666 = por %p664, %p665
      %p667 = scmp.ne.s32.totalorder %s658, %s659
      %p668 = scmp.eq.s32.totalorder %s42, 0
      %p669 = por %p667, %p668
      %p670 = scmp.ne.s32.totalorder %s658, %s659
      %p671 = scmp.eq.s32.totalorder %s43, 3
      %p672 = por %p670, %p671
      %p674 = scmp.ne.s32.totalorder %s659, %s673
      %p675 = scmp.eq.s32.totalorder %s43, 0
      %p676 = por %p674, %p675
      %s677 = ssub.s32 %s44, %s56
      %p678 = scmp.eq.s32.totalorder %s677, 0
      %s680 = sadd.s32 %s679, 1
      %s681 = scalar_select %p678, %s679, %s680
      %p684 = pneg %p678
      %p685 = scmp.eq.s32.totalorder %s37, 3
      %p686 = por %p684, %p685
      %p687 = scmp.ne.s32.totalorder %s679, %s682
      %p688 = scmp.eq.s32.totalorder %s37, 0
      %p689 = por %p687, %p688
      %p690 = scmp.ne.s32.totalorder %s679, %s682
      %p691 = scmp.eq.s32.totalorder %s42, 3
      %p692 = por %p690, %p691
      %p693 = scmp.ne.s32.totalorder %s682, %s683
      %p694 = scmp.eq.s32.totalorder %s42, 0
      %p695 = por %p693, %p694
      %p696 = scmp.ne.s32.totalorder %s682, %s683
      %p697 = scmp.eq.s32.totalorder %s43, 3
      %p698 = por %p696, %p697
      %p700 = scmp.ne.s32.totalorder %s683, %s699
      %p701 = scmp.eq.s32.totalorder %s43, 0
      %p702 = por %p700, %p701
      %s703 = ssub.s32 %s45, %s52
      %s704 = ssub.s32 %s44, %s56
      %s705 = sor.u32 %s703, %s704
      %p706 = scmp.eq.s32.totalorder %s705, 0
      %s708 = sadd.s32 %s707, 1
      %s709 = scalar_select %p706, %s707, %s708
      %p712 = pneg %p706
      %p713 = scmp.eq.s32.totalorder %s37, 3
      %p714 = por %p712, %p713
      %p715 = scmp.ne.s32.totalorder %s707, %s710
      %p716 = scmp.eq.s32.totalorder %s37, 0
      %p717 = por %p715, %p716
      %p718 = scmp.ne.s32.totalorder %s707, %s710
      %p719 = scmp.eq.s32.totalorder %s42, 3
      %p720 = por %p718, %p719
      %p721 = scmp.ne.s32.totalorder %s710, %s711
      %p722 = scmp.eq.s32.totalorder %s42, 0
      %p723 = por %p721, %p722
      %p724 = scmp.ne.s32.totalorder %s710, %s711
      %p725 = scmp.eq.s32.totalorder %s43, 3
      %p726 = por %p724, %p725
      %p728 = scmp.ne.s32.totalorder %s711, %s727
      %p729 = scmp.eq.s32.totalorder %s43, 0
      %p730 = por %p728, %p729
      %s731 = ssub.s32 %s45, %s52
      %s732 = ssub.s32 %s44, %s56
      %s733 = sor.u32 %s731, %s732
      %p734 = scmp.eq.s32.totalorder %s733, 0
      %s736 = sadd.s32 %s735, 1
      %s737 = scalar_select %p734, %s735, %s736
      %p740 = pneg %p734
      %p741 = scmp.eq.s32.totalorder %s37, 3
      %p742 = por %p740, %p741
      %p743 = scmp.ne.s32.totalorder %s735, %s738
      %p744 = scmp.eq.s32.totalorder %s37, 0
      %p745 = por %p743, %p744
      %p746 = scmp.ne.s32.totalorder %s735, %s738
      %p747 = scmp.eq.s32.totalorder %s42, 3
      %p748 = por %p746, %p747
      %p749 = scmp.ne.s32.totalorder %s738, %s739
      %p750 = scmp.eq.s32.totalorder %s42, 0
      %p751 = por %p749, %p750
      %p752 = scmp.ne.s32.totalorder %s738, %s739
      %p753 = scmp.eq.s32.totalorder %s43, 3
      %p754 = por %p752, %p753
      %p756 = scmp.ne.s32.totalorder %s739, %s755
      %p757 = scmp.eq.s32.totalorder %s43, 0
      %p758 = por %p756, %p757
      %p759 = scmp.le.s32.totalorder 1, %s37
      %p760 = scmp.lt.s32.totalorder %s37, 5
      %p761 = pnand %p759, %p760
      %p762 = pneg %p761
      // Predicated region
      $region9: #{tpu_custom_call.1} parent=5 // pred_check
        _
      $region10: #{tpu_custom_call.1} parent=5 // pred_check_branch
        %764 = sbr.rel (%p761) target = $region12
      $region11: #{tpu_custom_call.1} parent=5 // pred_region
        %s765 = ssub.s32 %s37, 1
        // Predicated region
        $region13: #{tpu_custom_call.1} parent=11 // pred_check
          %p766 = pneg %p96
        $region14: #{tpu_custom_call.1} parent=11 // pred_check_branch
          %768 = sbr.rel (%p766) target = $region16
        $region15: #{tpu_custom_call.1} parent=11 // pred_region
          _
        $region16: #{tpu_custom_call.1} parent=11 // pred_fallthru
          _
        // Predicated region
        $region17: #{tpu_custom_call.1} parent=11 // pred_check
          %p769 = pneg %p117
        $region18: #{tpu_custom_call.1} parent=11 // pred_check_branch
          %771 = sbr.rel (%p769) target = $region20
        $region19: #{tpu_custom_call.1} parent=11 // pred_region
          _
        $region20: #{tpu_custom_call.1} parent=11 // pred_fallthru
          _
        // Predicated region
        $region21: #{tpu_custom_call.1} parent=11 // pred_check
          %p772 = pneg %p606
        $region22: #{tpu_custom_call.1} parent=11 // pred_check_branch
          %774 = sbr.rel (%p772) target = $region24
        $region23: #{tpu_custom_call.1} parent=11 // pred_region
          _
        $region24: #{tpu_custom_call.1} parent=11 // pred_fallthru
          _
        // Predicated region
        $region25: #{tpu_custom_call.1} parent=11 // pred_check
          %p775 = pneg %p627
        $region26: #{tpu_custom_call.1} parent=11 // pred_check_branch
          %777 = sbr.rel (%p775) target = $region28
        $region27: #{tpu_custom_call.1} parent=11 // pred_region
          _
        $region28: #{tpu_custom_call.1} parent=11 // pred_fallthru
          _
        // Predicated region
        $region29: #{tpu_custom_call.1} parent=11 // pred_check
          %p778 = pneg %p648
        $region30: #{tpu_custom_call.1} parent=11 // pred_check_branch
          %780 = sbr.rel (%p778) target = $region32
        $region31: #{tpu_custom_call.1} parent=11 // pred_region
          _
        $region32: #{tpu_custom_call.1} parent=11 // pred_fallthru
          _
        // Predicated region
        $region33: #{tpu_custom_call.1} parent=11 // pred_check
          %p781 = pneg %p669
        $region34: #{tpu_custom_call.1} parent=11 // pred_check_branch
          %783 = sbr.rel (%p781) target = $region36
        $region35: #{tpu_custom_call.1} parent=11 // pred_region
          _
        $region36: #{tpu_custom_call.1} parent=11 // pred_fallthru
          _
      $region12: #{tpu_custom_call.1} parent=5 // pred_fallthru
        _
      %p784 = scmp.lt.s32.totalorder %s37, 4
      // Predicated region
      $region37: #{tpu_custom_call.1} parent=5 // pred_check
        %p785 = pneg %p784
      $region38: #{tpu_custom_call.1} parent=5 // pred_check_branch
        %787 = sbr.rel (%p785) target = $region40
      $region39: #{tpu_custom_call.1} parent=5 // pred_region
        // Predicated region
        $region41: #{tpu_custom_call.1} parent=39 // pred_check
          %p788 = pneg %p69
        $region42: #{tpu_custom_call.1} parent=39 // pred_check_branch
          %790 = sbr.rel (%p788) target = $region44
        $region43: #{tpu_custom_call.1} parent=39 // pred_region
          %p791 = scmp.lt.s32.totalorder %s44, 1
          %s792 = scalar_select %p791, %s44, 1
          %s793 = smul.addr %s792, 2
          %s794 = smul.addr %s793, 8
          %s795 = scalar_lea.vmem %s0, %s794
        $region44: #{tpu_custom_call.1} parent=39 // pred_fallthru
          _
        // Predicated region
        $region45: #{tpu_custom_call.1} parent=39 // pred_check
          %p796 = pneg %p137
        $region46: #{tpu_custom_call.1} parent=39 // pred_check_branch
          %798 = sbr.rel (%p796) target = $region48
        $region47: #{tpu_custom_call.1} parent=39 // pred_region
          %p799 = scmp.lt.s32.totalorder %s45, 1
          %s800 = scalar_select %p799, %s45, 1
          %s801 = smul.addr %s800, 16
          %s802 = smul.addr %s801, 8
          %s803 = scalar_lea.vmem %s3, %s802
        $region48: #{tpu_custom_call.1} parent=39 // pred_fallthru
          _
        // Predicated region
        $region49: #{tpu_custom_call.1} parent=39 // pred_check
          %p804 = pneg %p163
        $region50: #{tpu_custom_call.1} parent=39 // pred_check_branch
          %806 = sbr.rel (%p804) target = $region52
        $region51: #{tpu_custom_call.1} parent=39 // pred_region
          %p807 = scmp.lt.s32.totalorder %s45, 1
          %s808 = scalar_select %p807, %s45, 1
          %s809 = smul.addr %s808, 4
          %s810 = scalar_lea.vmem %s4, %s809
        $region52: #{tpu_custom_call.1} parent=39 // pred_fallthru
          _
        // Predicated region
        $region53: #{tpu_custom_call.1} parent=39 // pred_check
          %p811 = pneg %p189
        $region54: #{tpu_custom_call.1} parent=39 // pred_check_branch
          %813 = sbr.rel (%p811) target = $region56
        $region55: #{tpu_custom_call.1} parent=39 // pred_region
          %p814 = scmp.lt.s32.totalorder %s45, 1
          %s815 = scalar_select %p814, %s45, 1
          %s816 = smul.addr %s815, 16
          %s817 = smul.addr %s816, 8
          %s818 = scalar_lea.vmem %s5, %s817
        $region56: #{tpu_custom_call.1} parent=39 // pred_fallthru
          _
        // Predicated region
        $region57: #{tpu_custom_call.1} parent=39 // pred_check
          %p819 = pneg %p215
        $region58: #{tpu_custom_call.1} parent=39 // pred_check_branch
          %821 = sbr.rel (%p819) target = $region60
        $region59: #{tpu_custom_call.1} parent=39 // pred_region
          %p822 = scmp.lt.s32.totalorder %s45, 1
          %s823 = scalar_select %p822, %s45, 1
          %s824 = smul.addr %s823, 4
          %s825 = scalar_lea.vmem %s6, %s824
        $region60: #{tpu_custom_call.1} parent=39 // pred_fallthru
          _
        // Predicated region
        $region61: #{tpu_custom_call.1} parent=39 // pred_check
          %p826 = pneg %p241
        $region62: #{tpu_custom_call.1} parent=39 // pred_check_branch
          %828 = sbr.rel (%p826) target = $region64
        $region63: #{tpu_custom_call.1} parent=39 // pred_region
          %p829 = scmp.lt.s32.totalorder %s45, 1
          %s830 = scalar_select %p829, %s45, 1
          %s831 = smul.addr %s830, 16
          %s832 = smul.addr %s831, 8
          %s833 = scalar_lea.vmem %s7, %s832
        $region64: #{tpu_custom_call.1} parent=39 // pred_fallthru
          _
        // Predicated region
        $region65: #{tpu_custom_call.1} parent=39 // pred_check
          %p834 = pneg %p267
        $region66: #{tpu_custom_call.1} parent=39 // pred_check_branch
          %836 = sbr.rel (%p834) target = $region68
        $region67: #{tpu_custom_call.1} parent=39 // pred_region
          %p837 = scmp.lt.s32.totalorder %s45, 1
          %s838 = scalar_select %p837, %s45, 1
          %s839 = smul.addr %s838, 4
          %s840 = scalar_lea.vmem %s8, %s839
        $region68: #{tpu_custom_call.1} parent=39 // pred_fallthru
          _
        // Predicated region
        $region69: #{tpu_custom_call.1} parent=39 // pred_check
          %p841 = pneg %p293
        $region70: #{tpu_custom_call.1} parent=39 // pred_check_branch
          %843 = sbr.rel (%p841) target = $region72
        $region71: #{tpu_custom_call.1} parent=39 // pred_region
          %p844 = scmp.lt.s32.totalorder %s45, 1
          %s845 = scalar_select %p844, %s45, 1
          %s846 = smul.addr %s845, 4
          %s847 = smul.addr %s846, 8
          %s848 = scalar_lea.vmem %s9, %s847
        $region72: #{tpu_custom_call.1} parent=39 // pred_fallthru
          _
        // Predicated region
        $region73: #{tpu_custom_call.1} parent=39 // pred_check
          %p849 = pneg %p319
        $region74: #{tpu_custom_call.1} parent=39 // pred_check_branch
          %851 = sbr.rel (%p849) target = $region76
        $region75: #{tpu_custom_call.1} parent=39 // pred_region
          %p852 = scmp.lt.s32.totalorder %s45, 1
          %s853 = scalar_select %p852, %s45, 1
          %s854 = scalar_lea.vmem %s10, %s853
        $region76: #{tpu_custom_call.1} parent=39 // pred_fallthru
          _
        // Predicated region
        $region77: #{tpu_custom_call.1} parent=39 // pred_check
          %p855 = pneg %p345
        $region78: #{tpu_custom_call.1} parent=39 // pred_check_branch
          %857 = sbr.rel (%p855) target = $region80
        $region79: #{tpu_custom_call.1} parent=39 // pred_region
          %p858 = scmp.lt.s32.totalorder %s45, 1
          %s859 = scalar_select %p858, %s45, 1
          %s860 = smul.addr %s859, 4
          %s861 = smul.addr %s860, 8
          %s862 = scalar_lea.vmem %s11, %s861
        $region80: #{tpu_custom_call.1} parent=39 // pred_fallthru
          _
        // Predicated region
        $region81: #{tpu_custom_call.1} parent=39 // pred_check
          %p863 = pneg %p371
        $region82: #{tpu_custom_call.1} parent=39 // pred_check_branch
          %865 = sbr.rel (%p863) target = $region84
        $region83: #{tpu_custom_call.1} parent=39 // pred_region
          %p866 = scmp.lt.s32.totalorder %s45, 1
          %s867 = scalar_select %p866, %s45, 1
          %s868 = scalar_lea.vmem %s12, %s867
        $region84: #{tpu_custom_call.1} parent=39 // pred_fallthru
          _
        // Predicated region
        $region85: #{tpu_custom_call.1} parent=39 // pred_check
          %p869 = pneg %p397
        $region86: #{tpu_custom_call.1} parent=39 // pred_check_branch
          %871 = sbr.rel (%p869) target = $region88
        $region87: #{tpu_custom_call.1} parent=39 // pred_region
          %p872 = scmp.lt.s32.totalorder %s45, 1
          %s873 = scalar_select %p872, %s45, 1
          %s874 = scalar_lea.vmem %s13, %s873
        $region88: #{tpu_custom_call.1} parent=39 // pred_fallthru
          _
        // Predicated region
        $region89: #{tpu_custom_call.1} parent=39 // pred_check
          %p875 = pneg %p423
        $region90: #{tpu_custom_call.1} parent=39 // pred_check_branch
          %877 = sbr.rel (%p875) target = $region92
        $region91: #{tpu_custom_call.1} parent=39 // pred_region
          %p878 = scmp.lt.s32.totalorder %s45, 1
          %s879 = scalar_select %p878, %s45, 1
          %s880 = scalar_lea.vmem %s14, %s879
        $region92: #{tpu_custom_call.1} parent=39 // pred_fallthru
          _
        // Predicated region
        $region93: #{tpu_custom_call.1} parent=39 // pred_check
          %p881 = pneg %p449
        $region94: #{tpu_custom_call.1} parent=39 // pred_check_branch
          %883 = sbr.rel (%p881) target = $region96
        $region95: #{tpu_custom_call.1} parent=39 // pred_region
          %p884 = scmp.lt.s32.totalorder %s45, 1
          %s885 = scalar_select %p884, %s45, 1
          %s886 = smul.addr %s885, 4
          %s887 = smul.addr %s886, 8
          %s888 = scalar_lea.vmem %s15, %s887
        $region96: #{tpu_custom_call.1} parent=39 // pred_fallthru
          _
        // Predicated region
        $region97: #{tpu_custom_call.1} parent=39 // pred_check
          %p889 = pneg %p475
        $region98: #{tpu_custom_call.1} parent=39 // pred_check_branch
          %891 = sbr.rel (%p889) target = $region100
        $region99: #{tpu_custom_call.1} parent=39 // pred_region
          %p892 = scmp.lt.s32.totalorder %s45, 1
          %s893 = scalar_select %p892, %s45, 1
          %s894 = scalar_lea.vmem %s16, %s893
        $region100: #{tpu_custom_call.1} parent=39 // pred_fallthru
          _
        // Predicated region
        $region101: #{tpu_custom_call.1} parent=39 // pred_check
          %p895 = pneg %p501
        $region102: #{tpu_custom_call.1} parent=39 // pred_check_branch
          %897 = sbr.rel (%p895) target = $region104
        $region103: #{tpu_custom_call.1} parent=39 // pred_region
          %p898 = scmp.lt.s32.totalorder %s45, 1
          %s899 = scalar_select %p898, %s45, 1
          %s900 = smul.addr %s899, 8
          %s901 = smul.addr %s900, 8
          %s902 = scalar_lea.vmem %s17, %s901
        $region104: #{tpu_custom_call.1} parent=39 // pred_fallthru
          _
        // Predicated region
        $region105: #{tpu_custom_call.1} parent=39 // pred_check
          %p903 = pneg %p527
        $region106: #{tpu_custom_call.1} parent=39 // pred_check_branch
          %905 = sbr.rel (%p903) target = $region108
        $region107: #{tpu_custom_call.1} parent=39 // pred_region
          %p906 = scmp.lt.s32.totalorder %s45, 1
          %s907 = scalar_select %p906, %s45, 1
          %s908 = scalar_lea.vmem %s18, %s907
        $region108: #{tpu_custom_call.1} parent=39 // pred_fallthru
          _
        // Predicated region
        $region109: #{tpu_custom_call.1} parent=39 // pred_check
          %p909 = pneg %p553
        $region110: #{tpu_custom_call.1} parent=39 // pred_check_branch
          %911 = sbr.rel (%p909) target = $region112
        $region111: #{tpu_custom_call.1} parent=39 // pred_region
          %p912 = scmp.lt.s32.totalorder %s45, 1
          %s913 = scalar_select %p912, %s45, 1
          %s914 = scalar_lea.vmem %s19, %s913
        $region112: #{tpu_custom_call.1} parent=39 // pred_fallthru
          _
        // Predicated region
        $region113: #{tpu_custom_call.1} parent=39 // pred_check
          %p915 = pneg %p579
        $region114: #{tpu_custom_call.1} parent=39 // pred_check_branch
          %917 = sbr.rel (%p915) target = $region116
        $region115: #{tpu_custom_call.1} parent=39 // pred_region
          %p918 = scmp.lt.s32.totalorder %s45, 1
          %s919 = scalar_select %p918, %s45, 1
          %s920 = scalar_lea.vmem %s20, %s919
        $region116: #{tpu_custom_call.1} parent=39 // pred_fallthru
          _
      $region40: #{tpu_custom_call.1} parent=5 // pred_fallthru
        _
      %p921 = scmp.le.s32.totalorder 1, %s37
      %p922 = scmp.lt.s32.totalorder %s37, 5
      %p923 = pnand %p921, %p922
      %p924 = pneg %p923
      // Predicated region
      $region117: #{tpu_custom_call.1} parent=5 // pred_check
        _
      $region118: #{tpu_custom_call.1} parent=5 // pred_check_branch
        %926 = sbr.rel (%p923) target = $region120
      $region119: #{tpu_custom_call.1} parent=5 // pred_region
        %s927 = ssub.s32 %s37, 1
        %p928 = scmp.lt.s32.totalorder %s46, 1
        %s929 = scalar_select %p928, %s46, 1
        %s930 = smul.addr %s929, 2
        %s931 = smul.addr %s930, 8
        %s932 = scalar_lea.vmem %s0, %s931
        %p933 = pneg %p75
        %p934 = pneg %p72
        %p935 = pneg %p96
        %p936 = pneg %p93
        %p937 = pneg %p117
        %p938 = pneg %p114
        %p939 = scmp.lt.s32.totalorder %s47, 1
        %s940 = scalar_select %p939, %s47, 1
        %s941 = smul.addr %s940, 16
        %s942 = smul.addr %s941, 8
        %s943 = scalar_lea.vmem %s3, %s942
        %p944 = pneg %p143
        %p945 = pneg %p140
        %p946 = scmp.lt.s32.totalorder %s47, 1
        %s947 = scalar_select %p946, %s47, 1
        %s948 = smul.addr %s947, 4
        %s949 = scalar_lea.vmem %s4, %s948
        %p950 = pneg %p169
        %p951 = pneg %p166
        %p952 = scmp.lt.s32.totalorder %s47, 1
        %s953 = scalar_select %p952, %s47, 1
        %s954 = smul.addr %s953, 16
        %s955 = smul.addr %s954, 8
        %s956 = scalar_lea.vmem %s5, %s955
        %p957 = pneg %p195
        %p958 = pneg %p192
        %p959 = scmp.lt.s32.totalorder %s47, 1
        %s960 = scalar_select %p959, %s47, 1
        %s961 = smul.addr %s960, 4
        %s962 = scalar_lea.vmem %s6, %s961
        %p963 = pneg %p221
        %p964 = pneg %p218
        %p965 = scmp.lt.s32.totalorder %s47, 1
        %s966 = scalar_select %p965, %s47, 1
        %s967 = smul.addr %s966, 16
        %s968 = smul.addr %s967, 8
        %s969 = scalar_lea.vmem %s7, %s968
        %p970 = pneg %p247
        %p971 = pneg %p244
        %p972 = scmp.lt.s32.totalorder %s47, 1
        %s973 = scalar_select %p972, %s47, 1
        %s974 = smul.addr %s973, 4
        %s975 = scalar_lea.vmem %s8, %s974
        %p976 = pneg %p273
        %p977 = pneg %p270
        %p978 = scmp.lt.s32.totalorder %s47, 1
        %s979 = scalar_select %p978, %s47, 1
        %s980 = smul.addr %s979, 4
        %s981 = smul.addr %s980, 8
        %s982 = scalar_lea.vmem %s9, %s981
        %p983 = pneg %p299
        %p984 = pneg %p296
        %p985 = scmp.lt.s32.totalorder %s47, 1
        %s986 = scalar_select %p985, %s47, 1
        %s987 = scalar_lea.vmem %s10, %s986
        %p988 = pneg %p325
        %p989 = pneg %p322
        %p990 = scmp.lt.s32.totalorder %s47, 1
        %s991 = scalar_select %p990, %s47, 1
        %s992 = smul.addr %s991, 4
        %s993 = smul.addr %s992, 8
        %s994 = scalar_lea.vmem %s11, %s993
        %p995 = pneg %p351
        %p996 = pneg %p348
        %p997 = scmp.lt.s32.totalorder %s47, 1
        %s998 = scalar_select %p997, %s47, 1
        %s999 = scalar_lea.vmem %s12, %s998
        %p1000 = pneg %p377
        %p1001 = pneg %p374
        %p1002 = scmp.lt.s32.totalorder %s47, 1
        %s1003 = scalar_select %p1002, %s47, 1
        %s1004 = scalar_lea.vmem %s13, %s1003
        %p1005 = pneg %p403
        %p1006 = pneg %p400
        %p1007 = scmp.lt.s32.totalorder %s47, 1
        %s1008 = scalar_select %p1007, %s47, 1
        %s1009 = scalar_lea.vmem %s14, %s1008
        %p1010 = pneg %p429
        %p1011 = pneg %p426
        %p1012 = scmp.lt.s32.totalorder %s47, 1
        %s1013 = scalar_select %p1012, %s47, 1
        %s1014 = smul.addr %s1013, 4
        %s1015 = smul.addr %s1014, 8
        %s1016 = scalar_lea.vmem %s15, %s1015
        %p1017 = pneg %p455
        %p1018 = pneg %p452
        %p1019 = scmp.lt.s32.totalorder %s47, 1
        %s1020 = scalar_select %p1019, %s47, 1
        %s1021 = scalar_lea.vmem %s16, %s1020
        %p1022 = pneg %p481
        %p1023 = pneg %p478
        %p1024 = scmp.lt.s32.totalorder %s47, 1
        %s1025 = scalar_select %p1024, %s47, 1
        %s1026 = smul.addr %s1025, 8
        %s1027 = smul.addr %s1026, 8
        %s1028 = scalar_lea.vmem %s17, %s1027
        %p1029 = pneg %p507
        %p1030 = pneg %p504
        %p1031 = scmp.lt.s32.totalorder %s47, 1
        %s1032 = scalar_select %p1031, %s47, 1
        %s1033 = scalar_lea.vmem %s18, %s1032
        %p1034 = pneg %p533
        %p1035 = pneg %p530
        %p1036 = scmp.lt.s32.totalorder %s47, 1
        %s1037 = scalar_select %p1036, %s47, 1
        %s1038 = scalar_lea.vmem %s19, %s1037
        %p1039 = pneg %p559
        %p1040 = pneg %p556
        %p1041 = scmp.lt.s32.totalorder %s47, 1
        %s1042 = scalar_select %p1041, %s47, 1
        %s1043 = scalar_lea.vmem %s20, %s1042
        %p1044 = pneg %p585
        %p1045 = pneg %p582
        %p1046 = pneg %p606
        %p1047 = pneg %p603
        %p1048 = pneg %p627
        %p1049 = pneg %p624
        %p1050 = pneg %p648
        %p1051 = pneg %p645
        %p1052 = pneg %p669
        %p1053 = pneg %p666
        %p1054 = pneg %p695
        %p1055 = pneg %p692
        %p1056 = scmp.lt.s32.totalorder %s46, 1
        %s1057 = scalar_select %p1056, %s46, 1
        %s1058 = smul.addr %s1057, 2
        %s1059 = smul.addr %s1058, 8
        %s1060 = scalar_lea.vmem %s25, %s1059
        %p1061 = pneg %p723
        %p1062 = pneg %p720
        %s1063 = sand.u32 %s710, 1
        %s1064 = scalar_lea.sflag [#allocation4], %s1063
        %s1065 = sand.u32 %s710, 1
        %s1066 = smul.addr %s1065, 64
        %s1067 = scalar_lea.vmem [#allocation3], %s1066
        %p1068 = pneg %p751
        %p1069 = pneg %p748
        %p1070 = scmp.lt.s32.totalorder %s47, 1
        %s1071 = scalar_select %p1070, %s47, 1
        %p1072 = scmp.lt.s32.totalorder %s46, 1
        %s1073 = scalar_select %p1072, %s46, 1
        %s1074 = smul.addr %s1073, 2
        %s1075 = smul.addr %s1071, 4
        %s1076 = sadd.s32 %s1074, %s1075
        %s1077 = smul.addr %s1076, 8
        %s1078 = scalar_lea.vmem %s27, %s1077
        %p1079 = scmp.lt.s32.totalorder %s46, 1
        %s1080 = scalar_select %p1079, %s46, 1
        %s1081 = smul.addr %s1080, 2
        %s1082 = smul.addr %s1081, 8
        %s1083 = scalar_lea.vmem %s0, %s1082
        %p1084 = scmp.lt.s32.totalorder %s47, 1
        %s1085 = scalar_select %p1084, %s47, 1
        %s1086 = smul.addr %s1085, 16
        %s1087 = smul.addr %s1086, 8
        %s1088 = scalar_lea.vmem %s3, %s1087
        %p1089 = scmp.lt.s32.totalorder %s47, 1
        %s1090 = scalar_select %p1089, %s47, 1
        %s1091 = smul.addr %s1090, 4
        %s1092 = scalar_lea.vmem %s4, %s1091
        %p1093 = scmp.lt.s32.totalorder %s47, 1
        %s1094 = scalar_select %p1093, %s47, 1
        %s1095 = smul.addr %s1094, 16
        %s1096 = smul.addr %s1095, 8
        %s1097 = scalar_lea.vmem %s5, %s1096
        %p1098 = scmp.lt.s32.totalorder %s47, 1
        %s1099 = scalar_select %p1098, %s47, 1
        %s1100 = smul.addr %s1099, 4
        %s1101 = scalar_lea.vmem %s6, %s1100
        %p1102 = scmp.lt.s32.totalorder %s47, 1
        %s1103 = scalar_select %p1102, %s47, 1
        %s1104 = smul.addr %s1103, 16
        %s1105 = smul.addr %s1104, 8
        %s1106 = scalar_lea.vmem %s7, %s1105
        %p1107 = scmp.lt.s32.totalorder %s47, 1
        %s1108 = scalar_select %p1107, %s47, 1
        %s1109 = smul.addr %s1108, 4
        %s1110 = scalar_lea.vmem %s8, %s1109
        %p1111 = scmp.lt.s32.totalorder %s47, 1
        %s1112 = scalar_select %p1111, %s47, 1
        %s1113 = smul.addr %s1112, 4
        %s1114 = smul.addr %s1113, 8
        %s1115 = scalar_lea.vmem %s9, %s1114
        %p1116 = scmp.lt.s32.totalorder %s47, 1
        %s1117 = scalar_select %p1116, %s47, 1
        %s1118 = scalar_lea.vmem %s10, %s1117
        %p1119 = scmp.lt.s32.totalorder %s47, 1
        %s1120 = scalar_select %p1119, %s47, 1
        %s1121 = smul.addr %s1120, 4
        %s1122 = smul.addr %s1121, 8
        %s1123 = scalar_lea.vmem %s11, %s1122
        %p1124 = scmp.lt.s32.totalorder %s47, 1
        %s1125 = scalar_select %p1124, %s47, 1
        %s1126 = scalar_lea.vmem %s12, %s1125
        %p1127 = scmp.lt.s32.totalorder %s47, 1
        %s1128 = scalar_select %p1127, %s47, 1
        %s1129 = scalar_lea.vmem %s13, %s1128
        %p1130 = scmp.lt.s32.totalorder %s47, 1
        %s1131 = scalar_select %p1130, %s47, 1
        %s1132 = scalar_lea.vmem %s14, %s1131
        %p1133 = scmp.lt.s32.totalorder %s47, 1
        %s1134 = scalar_select %p1133, %s47, 1
        %s1135 = smul.addr %s1134, 4
        %s1136 = smul.addr %s1135, 8
        %s1137 = scalar_lea.vmem %s15, %s1136
        %p1138 = scmp.lt.s32.totalorder %s47, 1
        %s1139 = scalar_select %p1138, %s47, 1
        %s1140 = scalar_lea.vmem %s16, %s1139
        %p1141 = scmp.lt.s32.totalorder %s47, 1
        %s1142 = scalar_select %p1141, %s47, 1
        %s1143 = smul.addr %s1142, 8
        %s1144 = smul.addr %s1143, 8
        %s1145 = scalar_lea.vmem %s17, %s1144
        %p1146 = scmp.lt.s32.totalorder %s47, 1
        %s1147 = scalar_select %p1146, %s47, 1
        %s1148 = scalar_lea.vmem %s18, %s1147
        %p1149 = scmp.lt.s32.totalorder %s47, 1
        %s1150 = scalar_select %p1149, %s47, 1
        %s1151 = scalar_lea.vmem %s19, %s1150
        %p1152 = scmp.lt.s32.totalorder %s47, 1
        %s1153 = scalar_select %p1152, %s47, 1
        %s1154 = scalar_lea.vmem %s20, %s1153
        %p1155 = scmp.lt.s32.totalorder %s46, 1
        %s1156 = scalar_select %p1155, %s46, 1
        %s1157 = smul.addr %s1156, 2
        %s1158 = smul.addr %s1157, 8
        %s1159 = scalar_lea.vmem %s25, %s1158
        %p1160 = scmp.lt.s32.totalorder %s47, 1
        %s1161 = scalar_select %p1160, %s47, 1
        %p1162 = scmp.lt.s32.totalorder %s46, 1
        %s1163 = scalar_select %p1162, %s46, 1
        %s1164 = smul.addr %s1163, 2
        %s1165 = smul.addr %s1161, 4
        %s1166 = sadd.s32 %s1164, %s1165
        %s1167 = smul.addr %s1166, 8
        %s1168 = scalar_lea.vmem %s27, %s1167
        %p1170 = scmp.eq.s32.totalorder %s47, 0
        // Predicated region
        $region121: #{tpu_custom_call.1} parent=119 // pred_check
          %p1171 = pneg %p1170
        $region122: #{tpu_custom_call.1} parent=119 // pred_check_branch
          %1173 = sbr.rel (%p1171) target = $region124
        $region123: #{tpu_custom_call.1} parent=119 // pred_region
          %v1174 = vld [vmem:[%s1083] sm:$0xff]
          %v1175 = vld [vmem:[%s1083 + $0x8] sm:$0xff]
          %v1176 = vld [vmem:[%s2] sm:$0xff]
          %v1177 = vld [vmem:[%s2 + $0x8] sm:$0xf]
          %v1178 = vpack.c.bf16 %v1175, %v1174
          %v1179 = vpack.c.bf16 %v1177, %v1176
          %v1180 = vld [vmem:[%s1] sm:$0xff]
          %v1181 = vld [vmem:[%s1 + $0x8] sm:$0xff]
          %vm1182 = vcmask 97280
          %v1184 = vsel %vm1182, %v1178, 0
          %vm1186 = vcmask 1045504
          %v1188 = vsel %vm1186, %v1179, 0
          %1190 = vmatpush.bf16.msra.mxu0 0
          %1191 = vmatpush.bf16.msra.mxu0 0
          %1192 = vmatpush.bf16.msra.mxu0 0
          %1193 = vmatpush.bf16.msra.mxu0 0
          %1194 = vmatpush.bf16.msra.mxu0 0
          %1195 = vmatpush.bf16.msra.mxu0 0
          %1196 = vmatpush.bf16.msra.mxu0 0
          %1197 = vmatpush.bf16.msra.mxu0 %v1188
          %1198 = vmatmul.bf16.gmra.mxu0 %v1184
          %v1199 = vpop.f32.mrf.mxu0
          %v1200 = vadd.f32 %v1180, %v1199
          %v1201 = vpop.f32.mrf.mxu0
          %v1202 = vadd.f32 %v1181, %v1201
          %1203 = vdwg.mxu0
          %vm1204 = vcmask 261120
          %1205 = vst.msk [vmem:[#allocation2] sm:$0xff] %vm1204, %v1200
          %1206 = vst.msk [vmem:[#allocation2 + $0x8] sm:$0xff] %vm1204, %v1202
        $region124: #{tpu_custom_call.1} parent=119 // pred_fallthru
          _
        %v1207 = vld [vmem:[#allocation2] sm:$0xff]
        %v1208 = vld [vmem:[#allocation2 + $0x8] sm:$0xff]
        %v1209 = vpack.c.bf16 %v1208, %v1207
        %v1210 = vld [vmem:[%s1115] sm:$0xff]
        %v1211 = vld [vmem:[%s1115 + $0x8] sm:$0xff]
        %v1212 = vld [vmem:[%s1115 + $0x10] sm:$0xff]
        %v1213 = vld [vmem:[%s1115 + $0x18] sm:$0xff]
        %v1214 = vpack.c.bf16 %v1211, %v1210
        %v1215 = vpack.c.bf16 %v1213, %v1212
        %v1216 = vld [vmem:[%s1118] sm:$0x1]
        %v1218 = vperm.slane %v1216, 0
        %vm1220 = vcmask 261120
        %v1222 = vsel %vm1220, %v1209, 0
        %1224 = vmatpush.bf16.msra.mxu0 0
        %1225 = vmatpush.bf16.msra.mxu0 0
        %1226 = vmatpush.bf16.msra.mxu0 0
        %1227 = vmatpush.bf16.msra.mxu0 0
        %1228 = vmatpush.bf16.msra.mxu0 0
        %1229 = vmatpush.bf16.msra.mxu0 0
        %1230 = vmatpush.bf16.msra.mxu0 %v1215
        %1231 = vmatpush.bf16.msra.mxu0 %v1214
        %1232 = vmatmul.bf16.gmra.mxu0 %v1222
        %v1233 = vpop.f32.mrf.mxu0
        %v1234 = vadd.f32 %v1218, %v1233
        %v1235 = vpop.f32.mrf.mxu0
        %v1236 = vadd.f32 %v1218, %v1235
        %1237 = vdwg.mxu0
        %v1238 = vmul.f32 %v1234, 5.0
        %v1239 = vmul.f32 %v1236, 5.0
        %v1240 = vxor.u32 %v1238, 2147483648
        %v1241 = vxor.u32 %v1239, 2147483648
        %v1242 = vmul.f32 %v1240, 1.442695
        %v1243 = vpow.pop %v1242
        %v1244 = vmul.f32 %v1241, 1.442695
        %v1245 = vpow.pop %v1244
        %v1246 = vadd.f32 %v1243, 1.0
        %v1247 = vadd.f32 %v1245, 1.0
        %v1248 = vrcp.pop %v1246
        %v1249 = vmul.f32 %v1246, %v1248
        %v1250 = vsub.f32 1.0, %v1249
        %v1251 = vmul.f32 %v1248, %v1250
        %v1252 = vadd.f32 %v1248, %v1251
        %vm1253 = vweird.f32 %v1246
        %vm1254 = vweird.f32 %v1248
        %vm1255 = vmor %vm1253, %vm1254
        %v1256 = vsel %vm1255, %v1248, %v1252
        %v1257 = vand.u32 2147483647, %v1246
        %vm1258 = vcmp.eq.f32.partialorder %v1257, 8.507059e+37
        %v1259 = vand.u32 %v1246, 2147483648
        %v1260 = vor.u32 1.1754944e-38, %v1259
        %v1261 = vsel %vm1258, %v1260, %v1256
        %v1262 = vmul.f32 1.0, %v1261
        %v1263 = vrcp.pop %v1247
        %v1264 = vmul.f32 %v1247, %v1263
        %v1265 = vsub.f32 1.0, %v1264
        %v1266 = vmul.f32 %v1263, %v1265
        %v1267 = vadd.f32 %v1263, %v1266
        %vm1268 = vweird.f32 %v1247
        %vm1269 = vweird.f32 %v1263
        %vm1270 = vmor %vm1268, %vm1269
        %v1271 = vsel %vm1270, %v1263, %v1267
        %v1272 = vand.u32 2147483647, %v1247
        %vm1273 = vcmp.eq.f32.partialorder %v1272, 8.507059e+37
        %v1274 = vand.u32 %v1247, 2147483648
        %v1275 = vor.u32 1.1754944e-38, %v1274
        %v1276 = vsel %vm1273, %v1275, %v1271
        %v1277 = vmul.f32 1.0, %v1276
        %v1278 = vadd.f32 %v1262, 1e-05
        %v1279 = vadd.f32 %v1277, 1e-05
        %v1280 = vmul.f32 %v1278, 1.0986123
        %v1281 = vmul.f32 %v1279, 1.0986123
        %v1282 = vmul.f32 %v1280, 1.442695
        %v1283 = vpow.pop %v1282
        %v1284 = vmul.f32 %v1281, 1.442695
        %v1285 = vpow.pop %v1284
        %v1286 = vsub.f32 %v1283, 1.0
        %v1287 = vsub.f32 %v1285, 1.0
        %vm1288 = vcmask 31744
        %1289 = vst.msk [vmem:[%s1168] sm:$0xff] %vm1288, %v1286
        %1290 = vst.msk [vmem:[%s1168 + $0x8] sm:$0xff] %vm1288, %v1287
        %v1291 = vld [vmem:[%s1088] sm:$0xff]
        %v1292 = vld [vmem:[%s1088 + $0x8] sm:$0xff]
        %v1293 = vld [vmem:[%s1088 + $0x10] sm:$0xff]
        %v1294 = vld [vmem:[%s1088 + $0x18] sm:$0xff]
        %v1295 = vld [vmem:[%s1088 + $0x20] sm:$0xff]
        %v1296 = vld [vmem:[%s1088 + $0x28] sm:$0xff]
        %v1297 = vld [vmem:[%s1088 + $0x30] sm:$0xff]
        %v1298 = vld [vmem:[%s1088 + $0x38] sm:$0xff]
        %v1299 = vld [vmem:[%s1088 + $0x40] sm:$0xff]
        %v1300 = vld [vmem:[%s1088 + $0x48] sm:$0xff]
        %v1301 = vld [vmem:[%s1088 + $0x50] sm:$0xff]
        %v1302 = vld [vmem:[%s1088 + $0x58] sm:$0xff]
        %v1303 = vld [vmem:[%s1088 + $0x60] sm:$0xff]
        %v1304 = vld [vmem:[%s1088 + $0x68] sm:$0xff]
        %v1305 = vld [vmem:[%s1088 + $0x70] sm:$0xff]
        %v1306 = vld [vmem:[%s1088 + $0x78] sm:$0xff]
        %v1307 = vpack.c.bf16 %v1291, %v1291
        %v1308 = vpack.c.bf16 %v1292, %v1292
        %v1309 = vpack.c.bf16 %v1293, %v1293
        %v1310 = vpack.c.bf16 %v1294, %v1294
        %v1311 = vpack.c.bf16 %v1295, %v1295
        %v1312 = vpack.c.bf16 %v1296, %v1296
        %v1313 = vpack.c.bf16 %v1297, %v1297
        %v1314 = vpack.c.bf16 %v1298, %v1298
        %v1315 = vpack.c.bf16 %v1299, %v1299
        %v1316 = vpack.c.bf16 %v1300, %v1300
        %v1317 = vpack.c.bf16 %v1301, %v1301
        %v1318 = vpack.c.bf16 %v1302, %v1302
        %v1319 = vpack.c.bf16 %v1303, %v1303
        %v1320 = vpack.c.bf16 %v1304, %v1304
        %v1321 = vpack.c.bf16 %v1305, %v1305
        %v1322 = vpack.c.bf16 %v1306, %v1306
        %v1323 = vld [vmem:[%s1092] sm:$0x1]
        %v1324 = vld [vmem:[%s1092 + $0x1] sm:$0x1]
        %v1325 = vld [vmem:[%s1092 + $0x2] sm:$0x1]
        %v1326 = vld [vmem:[%s1092 + $0x3] sm:$0x1]
        %v1327 = vld [vmem:[%s1097] sm:$0xff]
        %v1328 = vld [vmem:[%s1097 + $0x8] sm:$0xff]
        %v1329 = vld [vmem:[%s1097 + $0x10] sm:$0xff]
        %v1330 = vld [vmem:[%s1097 + $0x18] sm:$0xff]
        %v1331 = vld [vmem:[%s1097 + $0x20] sm:$0xff]
        %v1332 = vld [vmem:[%s1097 + $0x28] sm:$0xff]
        %v1333 = vld [vmem:[%s1097 + $0x30] sm:$0xff]
        %v1334 = vld [vmem:[%s1097 + $0x38] sm:$0xff]
        %v1335 = vld [vmem:[%s1097 + $0x40] sm:$0xff]
        %v1336 = vld [vmem:[%s1097 + $0x48] sm:$0xff]
        %v1337 = vld [vmem:[%s1097 + $0x50] sm:$0xff]
        %v1338 = vld [vmem:[%s1097 + $0x58] sm:$0xff]
        %v1339 = vld [vmem:[%s1097 + $0x60] sm:$0xff]
        %v1340 = vld [vmem:[%s1097 + $0x68] sm:$0xff]
        %v1341 = vld [vmem:[%s1097 + $0x70] sm:$0xff]
        %v1342 = vld [vmem:[%s1097 + $0x78] sm:$0xff]
        %v1343 = vpack.c.bf16 %v1327, %v1327
        %v1344 = vpack.c.bf16 %v1328, %v1328
        %v1345 = vpack.c.bf16 %v1329, %v1329
        %v1346 = vpack.c.bf16 %v1330, %v1330
        %v1347 = vpack.c.bf16 %v1331, %v1331
        %v1348 = vpack.c.bf16 %v1332, %v1332
        %v1349 = vpack.c.bf16 %v1333, %v1333
        %v1350 = vpack.c.bf16 %v1334, %v1334
        %v1351 = vpack.c.bf16 %v1335, %v1335
        %v1352 = vpack.c.bf16 %v1336, %v1336
        %v1353 = vpack.c.bf16 %v1337, %v1337
        %v1354 = vpack.c.bf16 %v1338, %v1338
        %v1355 = vpack.c.bf16 %v1339, %v1339
        %v1356 = vpack.c.bf16 %v1340, %v1340
        %v1357 = vpack.c.bf16 %v1341, %v1341
        %v1358 = vpack.c.bf16 %v1342, %v1342
        %v1359 = vld [vmem:[%s1101] sm:$0x1]
        %v1360 = vld [vmem:[%s1101 + $0x1] sm:$0x1]
        %v1361 = vld [vmem:[%s1101 + $0x2] sm:$0x1]
        %v1362 = vld [vmem:[%s1101 + $0x3] sm:$0x1]
        %v1363 = vld [vmem:[%s1106] sm:$0xff]
        %v1364 = vld [vmem:[%s1106 + $0x8] sm:$0xff]
        %v1365 = vld [vmem:[%s1106 + $0x10] sm:$0xff]
        %v1366 = vld [vmem:[%s1106 + $0x18] sm:$0xff]
        %v1367 = vld [vmem:[%s1106 + $0x20] sm:$0xff]
        %v1368 = vld [vmem:[%s1106 + $0x28] sm:$0xff]
        %v1369 = vld [vmem:[%s1106 + $0x30] sm:$0xff]
        %v1370 = vld [vmem:[%s1106 + $0x38] sm:$0xff]
        %v1371 = vld [vmem:[%s1106 + $0x40] sm:$0xff]
        %v1372 = vld [vmem:[%s1106 + $0x48] sm:$0xff]
        %v1373 = vld [vmem:[%s1106 + $0x50] sm:$0xff]
        %v1374 = vld [vmem:[%s1106 + $0x58] sm:$0xff]
        %v1375 = vld [vmem:[%s1106 + $0x60] sm:$0xff]
        %v1376 = vld [vmem:[%s1106 + $0x68] sm:$0xff]
        %v1377 = vld [vmem:[%s1106 + $0x70] sm:$0xff]
        %v1378 = vld [vmem:[%s1106 + $0x78] sm:$0xff]
        %v1379 = vpack.c.bf16 %v1363, %v1363
        %v1380 = vpack.c.bf16 %v1364, %v1364
        %v1381 = vpack.c.bf16 %v1365, %v1365
        %v1382 = vpack.c.bf16 %v1366, %v1366
        %v1383 = vpack.c.bf16 %v1367, %v1367
        %v1384 = vpack.c.bf16 %v1368, %v1368
        %v1385 = vpack.c.bf16 %v1369, %v1369
        %v1386 = vpack.c.bf16 %v1370, %v1370
        %v1387 = vpack.c.bf16 %v1371, %v1371
        %v1388 = vpack.c.bf16 %v1372, %v1372
        %v1389 = vpack.c.bf16 %v1373, %v1373
        %v1390 = vpack.c.bf16 %v1374, %v1374
        %v1391 = vpack.c.bf16 %v1375, %v1375
        %v1392 = vpack.c.bf16 %v1376, %v1376
        %v1393 = vpack.c.bf16 %v1377, %v1377
        %v1394 = vpack.c.bf16 %v1378, %v1378
        %v1395 = vld [vmem:[%s1110] sm:$0x1]
        %v1396 = vld [vmem:[%s1110 + $0x1] sm:$0x1]
        %v1397 = vld [vmem:[%s1110 + $0x2] sm:$0x1]
        %v1398 = vld [vmem:[%s1110 + $0x3] sm:$0x1]
        %v1400 = vperm.slane %v1323, 0
        %v1406 = vunpack.c.l.b16 %v1307
        %v1407 = vunpack.c.l.b16 %v1308
        %v1408 = vunpack.c.l.b16 %v1309
        %v1409 = vunpack.c.l.b16 %v1310
        %v1410 = vpack.c.b16 %v1407, %v1406
        %v1411 = vpack.c.b16 %v1409, %v1408
        %1414 = vmatpush.bf16.msra.mxu0 0
        %1415 = vmatpush.bf16.msra.mxu0 0
        %1416 = vmatpush.bf16.msra.mxu0 0
        %1417 = vmatpush.bf16.msra.mxu0 0
        %1418 = vmatpush.bf16.msra.mxu0 0
        %1419 = vmatpush.bf16.msra.mxu0 0
        %1420 = vmatpush.bf16.msra.mxu0 %v1411
        %1421 = vmatpush.bf16.msra.mxu0 %v1410
        %1422 = vmatmul.bf16.gmra.mxu0 %v1222
        %v1423 = vpop.f32.mrf.mxu0
        %v1424 = vadd.f32 %v1400, %v1423
        %v1425 = vpop.f32.mrf.mxu0
        %v1426 = vadd.f32 %v1400, %v1425
        %1427 = vdwg.mxu0
        %v1428 = vmul.f32 %v1424, 0.35355338
        %v1429 = vmul.f32 %v1426, 0.35355338
        %v1430 = vpack.c.bf16 %v1428, %v1428
        %v1431 = vpack.c.bf16 %v1429, %v1429
        %v1433 = vperm.slane %v1359, 0
        %v1439 = vunpack.c.l.b16 %v1343
        %v1440 = vunpack.c.l.b16 %v1344
        %v1441 = vunpack.c.l.b16 %v1345
        %v1442 = vunpack.c.l.b16 %v1346
        %v1443 = vpack.c.b16 %v1440, %v1439
        %v1444 = vpack.c.b16 %v1442, %v1441
        %1447 = vmatpush.bf16.msra.mxu0 0
        %1448 = vmatpush.bf16.msra.mxu0 0
        %1449 = vmatpush.bf16.msra.mxu0 0
        %1450 = vmatpush.bf16.msra.mxu0 0
        %1451 = vmatpush.bf16.msra.mxu0 0
        %1452 = vmatpush.bf16.msra.mxu0 0
        %1453 = vmatpush.bf16.msra.mxu0 %v1444
        %1454 = vmatpush.bf16.msra.mxu0 %v1443
        %1455 = vmatmul.bf16.gmra.mxu0 %v1222
        %v1456 = vpop.f32.mrf.mxu0
        %v1457 = vadd.f32 %v1433, %v1456
        %v1458 = vpop.f32.mrf.mxu0
        %v1459 = vadd.f32 %v1433, %v1458
        %1460 = vdwg.mxu0
        %v1461 = vpack.c.bf16 %v1457, %v1457
        %v1462 = vpack.c.bf16 %v1459, %v1459
        %v1464 = vperm.slane %v1395, 0
        %v1470 = vunpack.c.l.b16 %v1379
        %v1471 = vunpack.c.l.b16 %v1380
        %v1472 = vunpack.c.l.b16 %v1381
        %v1473 = vunpack.c.l.b16 %v1382
        %v1474 = vpack.c.b16 %v1471, %v1470
        %v1475 = vpack.c.b16 %v1473, %v1472
        %1478 = vmatpush.bf16.msra.mxu0 0
        %1479 = vmatpush.bf16.msra.mxu0 0
        %1480 = vmatpush.bf16.msra.mxu0 0
        %1481 = vmatpush.bf16.msra.mxu0 0
        %1482 = vmatpush.bf16.msra.mxu0 0
        %1483 = vmatpush.bf16.msra.mxu0 0
        %1484 = vmatpush.bf16.msra.mxu0 %v1475
        %1485 = vmatpush.bf16.msra.mxu0 %v1474
        %1486 = vmatmul.bf16.gmra.mxu0 %v1222
        %v1487 = vpop.f32.mrf.mxu0
        %v1488 = vadd.f32 %v1464, %v1487
        %v1489 = vpop.f32.mrf.mxu0
        %v1490 = vadd.f32 %v1464, %v1489
        %1491 = vdwg.mxu0
        %v1492 = vpack.c.bf16 %v1490, %v1488
        %v1494 = vperm.slane %v1324, 0
        %v1500 = vunpack.c.l.b16 %v1311
        %v1501 = vunpack.c.l.b16 %v1312
        %v1502 = vunpack.c.l.b16 %v1313
        %v1503 = vunpack.c.l.b16 %v1314
        %v1504 = vpack.c.b16 %v1501, %v1500
        %v1505 = vpack.c.b16 %v1503, %v1502
        %1508 = vmatpush.bf16.msra.mxu0 0
        %1509 = vmatpush.bf16.msra.mxu0 0
        %1510 = vmatpush.bf16.msra.mxu0 0
        %1511 = vmatpush.bf16.msra.mxu0 0
        %1512 = vmatpush.bf16.msra.mxu0 0
        %1513 = vmatpush.bf16.msra.mxu0 0
        %1514 = vmatpush.bf16.msra.mxu0 %v1505
        %1515 = vmatpush.bf16.msra.mxu0 %v1504
        %1516 = vmatmul.bf16.gmra.mxu0 %v1222
        %v1517 = vpop.f32.mrf.mxu0
        %v1518 = vadd.f32 %v1494, %v1517
        %v1519 = vpop.f32.mrf.mxu0
        %v1520 = vadd.f32 %v1494, %v1519
        %1521 = vdwg.mxu0
        %v1522 = vmul.f32 %v1518, 0.35355338
        %v1523 = vmul.f32 %v1520, 0.35355338
        %v1524 = vpack.c.bf16 %v1522, %v1522
        %v1525 = vpack.c.bf16 %v1523, %v1523
        %v1527 = vperm.slane %v1360, 0
        %v1533 = vunpack.c.l.b16 %v1347
        %v1534 = vunpack.c.l.b16 %v1348
        %v1535 = vunpack.c.l.b16 %v1349
        %v1536 = vunpack.c.l.b16 %v1350
        %v1537 = vpack.c.b16 %v1534, %v1533
        %v1538 = vpack.c.b16 %v1536, %v1535
        %1541 = vmatpush.bf16.msra.mxu0 0
        %1542 = vmatpush.bf16.msra.mxu0 0
        %1543 = vmatpush.bf16.msra.mxu0 0
        %1544 = vmatpush.bf16.msra.mxu0 0
        %1545 = vmatpush.bf16.msra.mxu0 0
        %1546 = vmatpush.bf16.msra.mxu0 0
        %1547 = vmatpush.bf16.msra.mxu0 %v1538
        %1548 = vmatpush.bf16.msra.mxu0 %v1537
        %1549 = vmatmul.bf16.gmra.mxu0 %v1222
        %v1550 = vpop.f32.mrf.mxu0
        %v1551 = vadd.f32 %v1527, %v1550
        %v1552 = vpop.f32.mrf.mxu0
        %v1553 = vadd.f32 %v1527, %v1552
        %1554 = vdwg.mxu0
        %v1555 = vpack.c.bf16 %v1551, %v1551
        %v1556 = vpack.c.bf16 %v1553, %v1553
        %v1558 = vperm.slane %v1396, 0
        %v1564 = vunpack.c.l.b16 %v1383
        %v1565 = vunpack.c.l.b16 %v1384
        %v1566 = vunpack.c.l.b16 %v1385
        %v1567 = vunpack.c.l.b16 %v1386
        %v1568 = vpack.c.b16 %v1565, %v1564
        %v1569 = vpack.c.b16 %v1567, %v1566
        %1572 = vmatpush.bf16.msra.mxu0 0
        %1573 = vmatpush.bf16.msra.mxu0 0
        %1574 = vmatpush.bf16.msra.mxu0 0
        %1575 = vmatpush.bf16.msra.mxu0 0
        %1576 = vmatpush.bf16.msra.mxu0 0
        %1577 = vmatpush.bf16.msra.mxu0 0
        %1578 = vmatpush.bf16.msra.mxu0 %v1569
        %1579 = vmatpush.bf16.msra.mxu0 %v1568
        %1580 = vmatmul.bf16.gmra.mxu0 %v1222
        %v1581 = vpop.f32.mrf.mxu0
        %v1582 = vadd.f32 %v1558, %v1581
        %v1583 = vpop.f32.mrf.mxu0
        %v1584 = vadd.f32 %v1558, %v1583
        %1585 = vdwg.mxu0
        %v1586 = vpack.c.bf16 %v1584, %v1582
        %v1588 = vperm.slane %v1325, 0
        %v1594 = vunpack.c.l.b16 %v1315
        %v1595 = vunpack.c.l.b16 %v1316
        %v1596 = vunpack.c.l.b16 %v1317
        %v1597 = vunpack.c.l.b16 %v1318
        %v1598 = vpack.c.b16 %v1595, %v1594
        %v1599 = vpack.c.b16 %v1597, %v1596
        %1602 = vmatpush.bf16.msra.mxu0 0
        %1603 = vmatpush.bf16.msra.mxu0 0
        %1604 = vmatpush.bf16.msra.mxu0 0
        %1605 = vmatpush.bf16.msra.mxu0 0
        %1606 = vmatpush.bf16.msra.mxu0 0
        %1607 = vmatpush.bf16.msra.mxu0 0
        %1608 = vmatpush.bf16.msra.mxu0 %v1599
        %1609 = vmatpush.bf16.msra.mxu0 %v1598
        %1610 = vmatmul.bf16.gmra.mxu0 %v1222
        %v1611 = vpop.f32.mrf.mxu0
        %v1612 = vadd.f32 %v1588, %v1611
        %v1613 = vpop.f32.mrf.mxu0
        %v1614 = vadd.f32 %v1588, %v1613
        %1615 = vdwg.mxu0
        %v1616 = vmul.f32 %v1612, 0.35355338
        %v1617 = vmul.f32 %v1614, 0.35355338
        %v1618 = vpack.c.bf16 %v1616, %v1616
        %v1619 = vpack.c.bf16 %v1617, %v1617
        %v1621 = vperm.slane %v1361, 0
        %v1627 = vunpack.c.l.b16 %v1351
        %v1628 = vunpack.c.l.b16 %v1352
        %v1629 = vunpack.c.l.b16 %v1353
        %v1630 = vunpack.c.l.b16 %v1354
        %v1631 = vpack.c.b16 %v1628, %v1627
        %v1632 = vpack.c.b16 %v1630, %v1629
        %1635 = vmatpush.bf16.msra.mxu0 0
        %1636 = vmatpush.bf16.msra.mxu0 0
        %1637 = vmatpush.bf16.msra.mxu0 0
        %1638 = vmatpush.bf16.msra.mxu0 0
        %1639 = vmatpush.bf16.msra.mxu0 0
        %1640 = vmatpush.bf16.msra.mxu0 0
        %1641 = vmatpush.bf16.msra.mxu0 %v1632
        %1642 = vmatpush.bf16.msra.mxu0 %v1631
        %1643 = vmatmul.bf16.gmra.mxu0 %v1222
        %v1644 = vpop.f32.mrf.mxu0
        %v1645 = vadd.f32 %v1621, %v1644
        %v1646 = vpop.f32.mrf.mxu0
        %v1647 = vadd.f32 %v1621, %v1646
        %1648 = vdwg.mxu0
        %v1649 = vpack.c.bf16 %v1645, %v1645
        %v1650 = vpack.c.bf16 %v1647, %v1647
        %v1652 = vperm.slane %v1397, 0
        %v1658 = vunpack.c.l.b16 %v1387
        %v1659 = vunpack.c.l.b16 %v1388
        %v1660 = vunpack.c.l.b16 %v1389
        %v1661 = vunpack.c.l.b16 %v1390
        %v1662 = vpack.c.b16 %v1659, %v1658
        %v1663 = vpack.c.b16 %v1661, %v1660
        %1666 = vmatpush.bf16.msra.mxu0 0
        %1667 = vmatpush.bf16.msra.mxu0 0
        %1668 = vmatpush.bf16.msra.mxu0 0
        %1669 = vmatpush.bf16.msra.mxu0 0
        %1670 = vmatpush.bf16.msra.mxu0 0
        %1671 = vmatpush.bf16.msra.mxu0 0
        %1672 = vmatpush.bf16.msra.mxu0 %v1663
        %1673 = vmatpush.bf16.msra.mxu0 %v1662
        %1674 = vmatmul.bf16.gmra.mxu0 %v1222
        %v1675 = vpop.f32.mrf.mxu0
        %v1676 = vadd.f32 %v1652, %v1675
        %v1677 = vpop.f32.mrf.mxu0
        %v1678 = vadd.f32 %v1652, %v1677
        %1679 = vdwg.mxu0
        %v1680 = vpack.c.bf16 %v1678, %v1676
        %v1682 = vperm.slane %v1326, 0
        %v1688 = vunpack.c.l.b16 %v1319
        %v1689 = vunpack.c.l.b16 %v1320
        %v1690 = vunpack.c.l.b16 %v1321
        %v1691 = vunpack.c.l.b16 %v1322
        %v1692 = vpack.c.b16 %v1689, %v1688
        %v1693 = vpack.c.b16 %v1691, %v1690
        %1696 = vmatpush.bf16.msra.mxu0 0
        %1697 = vmatpush.bf16.msra.mxu0 0
        %1698 = vmatpush.bf16.msra.mxu0 0
        %1699 = vmatpush.bf16.msra.mxu0 0
        %1700 = vmatpush.bf16.msra.mxu0 0
        %1701 = vmatpush.bf16.msra.mxu0 0
        %1702 = vmatpush.bf16.msra.mxu0 %v1693
        %1703 = vmatpush.bf16.msra.mxu0 %v1692
        %1704 = vmatmul.bf16.gmra.mxu0 %v1222
        %v1705 = vpop.f32.mrf.mxu0
        %v1706 = vadd.f32 %v1682, %v1705
        %v1707 = vpop.f32.mrf.mxu0
        %v1708 = vadd.f32 %v1682, %v1707
        %1709 = vdwg.mxu0
        %v1710 = vmul.f32 %v1706, 0.35355338
        %v1711 = vmul.f32 %v1708, 0.35355338
        %v1712 = vpack.c.bf16 %v1710, %v1710
        %v1713 = vpack.c.bf16 %v1711, %v1711
        %v1715 = vperm.slane %v1362, 0
        %v1721 = vunpack.c.l.b16 %v1355
        %v1722 = vunpack.c.l.b16 %v1356
        %v1723 = vunpack.c.l.b16 %v1357
        %v1724 = vunpack.c.l.b16 %v1358
        %v1725 = vpack.c.b16 %v1722, %v1721
        %v1726 = vpack.c.b16 %v1724, %v1723
        %1729 = vmatpush.bf16.msra.mxu0 0
        %1730 = vmatpush.bf16.msra.mxu0 0
        %1731 = vmatpush.bf16.msra.mxu0 0
        %1732 = vmatpush.bf16.msra.mxu0 0
        %1733 = vmatpush.bf16.msra.mxu0 0
        %1734 = vmatpush.bf16.msra.mxu0 0
        %1735 = vmatpush.bf16.msra.mxu0 %v1726
        %1736 = vmatpush.bf16.msra.mxu0 %v1725
        %1737 = vmatmul.bf16.gmra.mxu0 %v1222
        %v1738 = vpop.f32.mrf.mxu0
        %v1739 = vadd.f32 %v1715, %v1738
        %v1740 = vpop.f32.mrf.mxu0
        %v1741 = vadd.f32 %v1715, %v1740
        %1742 = vdwg.mxu0
        %v1743 = vpack.c.bf16 %v1739, %v1739
        %v1744 = vpack.c.bf16 %v1741, %v1741
        %v1746 = vperm.slane %v1398, 0
        %v1752 = vunpack.c.l.b16 %v1391
        %v1753 = vunpack.c.l.b16 %v1392
        %v1754 = vunpack.c.l.b16 %v1393
        %v1755 = vunpack.c.l.b16 %v1394
        %v1756 = vpack.c.b16 %v1753, %v1752
        %v1757 = vpack.c.b16 %v1755, %v1754
        %1760 = vmatpush.bf16.msra.mxu0 0
        %1761 = vmatpush.bf16.msra.mxu0 0
        %1762 = vmatpush.bf16.msra.mxu0 0
        %1763 = vmatpush.bf16.msra.mxu0 0
        %1764 = vmatpush.bf16.msra.mxu0 0
        %1765 = vmatpush.bf16.msra.mxu0 0
        %1766 = vmatpush.bf16.msra.mxu0 %v1757
        %1767 = vmatpush.bf16.msra.mxu0 %v1756
        %1768 = vmatmul.bf16.gmra.mxu0 %v1222
        %v1769 = vpop.f32.mrf.mxu0
        %v1770 = vadd.f32 %v1746, %v1769
        %v1771 = vpop.f32.mrf.mxu0
        %v1772 = vadd.f32 %v1746, %v1771
        %1773 = vdwg.mxu0
        %v1774 = vpack.c.bf16 %v1772, %v1770
        %v1777 = vunpack.c.l.b16 %v1430
        %v1778 = vunpack.c.l.b16 %v1431
        %v1779 = vpack.c.b16 %v1778, %v1777
        %v1782 = vunpack.c.l.b16 %v1461
        %v1783 = vunpack.c.l.b16 %v1462
        %v1784 = vpack.c.b16 %v1783, %v1782
        %vm1785 = vcmask 64512
        %v1787 = vsel %vm1785, %v1779, 0
        %v1790 = vsel %vm1785, %v1784, 0
        %1792 = vmatpush.bf16.xpose.msra.mxu0 0
        %1793 = vmatpush.bf16.xpose.msra.mxu0 0
        %1794 = vmatpush.bf16.xpose.msra.mxu0 0
        %1795 = vmatpush.bf16.xpose.msra.mxu0 0
        %1796 = vmatpush.bf16.xpose.msra.mxu0 0
        %1797 = vmatpush.bf16.xpose.msra.mxu0 0
        %1798 = vmatpush.bf16.xpose.msra.mxu0 0
        %1799 = vmatpush.bf16.xpose.msra.mxu0 %v1790
        %1800 = vmatmul.bf16.gmra.mxu0 %v1787
        %v1801 = vpop.f32.mrf.mxu0
        %v1802 = vadd.f32 0.0, %v1801
        %v1803 = vpop.f32.mrf.mxu0
        %v1804 = vadd.f32 0.0, %v1803
        %1805 = vdwg.mxu0
        %v1808 = vunpack.c.l.b16 %v1524
        %v1809 = vunpack.c.l.b16 %v1525
        %v1810 = vpack.c.b16 %v1809, %v1808
        %v1813 = vunpack.c.l.b16 %v1555
        %v1814 = vunpack.c.l.b16 %v1556
        %v1815 = vpack.c.b16 %v1814, %v1813
        %v1817 = vsel %vm1785, %v1810, 0
        %v1820 = vsel %vm1785, %v1815, 0
        %1822 = vmatpush.bf16.xpose.msra.mxu0 0
        %1823 = vmatpush.bf16.xpose.msra.mxu0 0
        %1824 = vmatpush.bf16.xpose.msra.mxu0 0
        %1825 = vmatpush.bf16.xpose.msra.mxu0 0
        %1826 = vmatpush.bf16.xpose.msra.mxu0 0
        %1827 = vmatpush.bf16.xpose.msra.mxu0 0
        %1828 = vmatpush.bf16.xpose.msra.mxu0 0
        %1829 = vmatpush.bf16.xpose.msra.mxu0 %v1820
        %1830 = vmatmul.bf16.gmra.mxu0 %v1817
        %v1831 = vpop.f32.mrf.mxu0
        %v1832 = vadd.f32 0.0, %v1831
        %v1833 = vpop.f32.mrf.mxu0
        %v1834 = vadd.f32 0.0, %v1833
        %1835 = vdwg.mxu0
        %v1838 = vunpack.c.l.b16 %v1618
        %v1839 = vunpack.c.l.b16 %v1619
        %v1840 = vpack.c.b16 %v1839, %v1838
        %v1843 = vunpack.c.l.b16 %v1649
        %v1844 = vunpack.c.l.b16 %v1650
        %v1845 = vpack.c.b16 %v1844, %v1843
        %v1847 = vsel %vm1785, %v1840, 0
        %v1850 = vsel %vm1785, %v1845, 0
        %1852 = vmatpush.bf16.xpose.msra.mxu0 0
        %1853 = vmatpush.bf16.xpose.msra.mxu0 0
        %1854 = vmatpush.bf16.xpose.msra.mxu0 0
        %1855 = vmatpush.bf16.xpose.msra.mxu0 0
        %1856 = vmatpush.bf16.xpose.msra.mxu0 0
        %1857 = vmatpush.bf16.xpose.msra.mxu0 0
        %1858 = vmatpush.bf16.xpose.msra.mxu0 0
        %1859 = vmatpush.bf16.xpose.msra.mxu0 %v1850
        %1860 = vmatmul.bf16.gmra.mxu0 %v1847
        %v1861 = vpop.f32.mrf.mxu0
        %v1862 = vadd.f32 0.0, %v1861
        %v1863 = vpop.f32.mrf.mxu0
        %v1864 = vadd.f32 0.0, %v1863
        %1865 = vdwg.mxu0
        %v1868 = vunpack.c.l.b16 %v1712
        %v1869 = vunpack.c.l.b16 %v1713
        %v1870 = vpack.c.b16 %v1869, %v1868
        %v1873 = vunpack.c.l.b16 %v1743
        %v1874 = vunpack.c.l.b16 %v1744
        %v1875 = vpack.c.b16 %v1874, %v1873
        %v1877 = vsel %vm1785, %v1870, 0
        %v1880 = vsel %vm1785, %v1875, 0
        %1882 = vmatpush.bf16.xpose.msra.mxu0 0
        %1883 = vmatpush.bf16.xpose.msra.mxu0 0
        %1884 = vmatpush.bf16.xpose.msra.mxu0 0
        %1885 = vmatpush.bf16.xpose.msra.mxu0 0
        %1886 = vmatpush.bf16.xpose.msra.mxu0 0
        %1887 = vmatpush.bf16.xpose.msra.mxu0 0
        %1888 = vmatpush.bf16.xpose.msra.mxu0 0
        %1889 = vmatpush.bf16.xpose.msra.mxu0 %v1880
        %1890 = vmatmul.bf16.gmra.mxu0 %v1877
        %v1891 = vpop.f32.mrf.mxu0
        %v1892 = vadd.f32 0.0, %v1891
        %v1893 = vpop.f32.mrf.mxu0
        %v1894 = vadd.f32 0.0, %v1893
        %1895 = vdwg.mxu0
        %vm1896 = vcmask 130048
        %v1897 = vsel %vm1896, %v1802, -inf
        %1898 = vmax.xlane.f32.xlu0 %v1897
        %v1899 = vpop.xlane.xlu0 %1898
        %v1900 = vsel %vm1896, %v1804, -inf
        %1901 = vmax.xlane.f32.xlu0 %v1900
        %v1902 = vpop.xlane.xlu0 %1901
        %v1903 = vsel %vm1896, %v1832, -inf
        %1904 = vmax.xlane.f32.xlu0 %v1903
        %v1905 = vpop.xlane.xlu0 %1904
        %v1906 = vsel %vm1896, %v1834, -inf
        %1907 = vmax.xlane.f32.xlu0 %v1906
        %v1908 = vpop.xlane.xlu0 %1907
        %v1909 = vsel %vm1896, %v1862, -inf
        %1910 = vmax.xlane.f32.xlu0 %v1909
        %v1911 = vpop.xlane.xlu0 %1910
        %v1912 = vsel %vm1896, %v1864, -inf
        %1913 = vmax.xlane.f32.xlu0 %v1912
        %v1914 = vpop.xlane.xlu0 %1913
        %v1915 = vsel %vm1896, %v1892, -inf
        %1916 = vmax.xlane.f32.xlu0 %v1915
        %v1917 = vpop.xlane.xlu0 %1916
        %v1918 = vsel %vm1896, %v1894, -inf
        %1919 = vmax.xlane.f32.xlu0 %v1918
        %v1920 = vpop.xlane.xlu0 %1919
        %v1921 = vsub.f32 %v1802, %v1899
        %v1922 = vsub.f32 %v1804, %v1902
        %v1923 = vsub.f32 %v1832, %v1905
        %v1924 = vsub.f32 %v1834, %v1908
        %v1925 = vsub.f32 %v1862, %v1911
        %v1926 = vsub.f32 %v1864, %v1914
        %v1927 = vsub.f32 %v1892, %v1917
        %v1928 = vsub.f32 %v1894, %v1920
        %v1929 = vmul.f32 %v1921, 1.442695
        %v1930 = vpow.pop %v1929
        %v1931 = vmul.f32 %v1922, 1.442695
        %v1932 = vpow.pop %v1931
        %v1933 = vmul.f32 %v1923, 1.442695
        %v1934 = vpow.pop %v1933
        %v1935 = vmul.f32 %v1924, 1.442695
        %v1936 = vpow.pop %v1935
        %v1937 = vmul.f32 %v1925, 1.442695
        %v1938 = vpow.pop %v1937
        %v1939 = vmul.f32 %v1926, 1.442695
        %v1940 = vpow.pop %v1939
        %v1941 = vmul.f32 %v1927, 1.442695
        %v1942 = vpow.pop %v1941
        %v1943 = vmul.f32 %v1928, 1.442695
        %v1944 = vpow.pop %v1943
        %v1945 = vsel %vm1896, %v1930, 0.0
        %1946 = vadd.xlane.f32.xlu0 %v1945
        %v1947 = vpop.xlane.xlu0 %1946
        %v1948 = vsel %vm1896, %v1932, 0.0
        %1949 = vadd.xlane.f32.xlu0 %v1948
        %v1950 = vpop.xlane.xlu0 %1949
        %v1951 = vsel %vm1896, %v1934, 0.0
        %1952 = vadd.xlane.f32.xlu0 %v1951
        %v1953 = vpop.xlane.xlu0 %1952
        %v1954 = vsel %vm1896, %v1936, 0.0
        %1955 = vadd.xlane.f32.xlu0 %v1954
        %v1956 = vpop.xlane.xlu0 %1955
        %v1957 = vsel %vm1896, %v1938, 0.0
        %1958 = vadd.xlane.f32.xlu0 %v1957
        %v1959 = vpop.xlane.xlu0 %1958
        %v1960 = vsel %vm1896, %v1940, 0.0
        %1961 = vadd.xlane.f32.xlu0 %v1960
        %v1962 = vpop.xlane.xlu0 %1961
        %v1963 = vsel %vm1896, %v1942, 0.0
        %1964 = vadd.xlane.f32.xlu0 %v1963
        %v1965 = vpop.xlane.xlu0 %1964
        %v1966 = vsel %vm1896, %v1944, 0.0
        %1967 = vadd.xlane.f32.xlu0 %v1966
        %v1968 = vpop.xlane.xlu0 %1967
        %v1969 = vrcp.pop %v1947
        %v1970 = vrcp.pop %v1950
        %v1971 = vrcp.pop %v1953
        %v1972 = vrcp.pop %v1956
        %v1973 = vrcp.pop %v1959
        %v1974 = vrcp.pop %v1962
        %v1975 = vrcp.pop %v1965
        %v1976 = vrcp.pop %v1968
        %v1977 = vmul.f32 %v1930, %v1969
        %v1978 = vmul.f32 %v1932, %v1970
        %v1979 = vmul.f32 %v1934, %v1971
        %v1980 = vmul.f32 %v1936, %v1972
        %v1981 = vmul.f32 %v1938, %v1973
        %v1982 = vmul.f32 %v1940, %v1974
        %v1983 = vmul.f32 %v1942, %v1975
        %v1984 = vmul.f32 %v1944, %v1976
        %1985 = vst.msk [vmem:[%s1067] sm:$0xff] %vm1896, %v1977
        %1986 = vst.msk [vmem:[%s1067 + $0x8] sm:$0xff] %vm1896, %v1978
        %1987 = vst.msk [vmem:[%s1067 + $0x10] sm:$0xff] %vm1896, %v1979
        %1988 = vst.msk [vmem:[%s1067 + $0x18] sm:$0xff] %vm1896, %v1980
        %1989 = vst.msk [vmem:[%s1067 + $0x20] sm:$0xff] %vm1896, %v1981
        %1990 = vst.msk [vmem:[%s1067 + $0x28] sm:$0xff] %vm1896, %v1982
        %1991 = vst.msk [vmem:[%s1067 + $0x30] sm:$0xff] %vm1896, %v1983
        %1992 = vst.msk [vmem:[%s1067 + $0x38] sm:$0xff] %vm1896, %v1984
        %v1993 = vpack.c.bf16 %v1977, %v1977
        %v1994 = vpack.c.bf16 %v1978, %v1978
        %v1995 = vpack.c.bf16 %v1979, %v1979
        %v1996 = vpack.c.bf16 %v1980, %v1980
        %v1997 = vpack.c.bf16 %v1981, %v1981
        %v1998 = vpack.c.bf16 %v1982, %v1982
        %v1999 = vpack.c.bf16 %v1983, %v1983
        %v2000 = vpack.c.bf16 %v1984, %v1984
        %v2003 = vunpack.c.l.b16 %v1993
        %v2004 = vunpack.c.l.b16 %v1994
        %v2005 = vpack.c.b16 %v2004, %v2003
        %v2007 = vsel %vm1896, %v2005, 0
        %2009 = vmatpush.bf16.msra.mxu0 0
        %2010 = vmatpush.bf16.msra.mxu0 0
        %2011 = vmatpush.bf16.msra.mxu0 0
        %2012 = vmatpush.bf16.msra.mxu0 0
        %2013 = vmatpush.bf16.msra.mxu0 0
        %2014 = vmatpush.bf16.msra.mxu0 0
        %2015 = vmatpush.bf16.msra.mxu0 0
        %2016 = vmatpush.bf16.msra.mxu0 %v1492
        %2017 = vmatmul.bf16.gmra.mxu0 %v2007
        %v2018 = vpop.f32.mrf.mxu0
        %v2019 = vadd.f32 0.0, %v2018
        %v2020 = vpop.f32.mrf.mxu0
        %v2021 = vadd.f32 0.0, %v2020
        %2022 = vdwg.mxu0
        %v2025 = vunpack.c.l.b16 %v1995
        %v2026 = vunpack.c.l.b16 %v1996
        %v2027 = vpack.c.b16 %v2026, %v2025
        %v2029 = vsel %vm1896, %v2027, 0
        %2031 = vmatpush.bf16.msra.mxu0 0
        %2032 = vmatpush.bf16.msra.mxu0 0
        %2033 = vmatpush.bf16.msra.mxu0 0
        %2034 = vmatpush.bf16.msra.mxu0 0
        %2035 = vmatpush.bf16.msra.mxu0 0
        %2036 = vmatpush.bf16.msra.mxu0 0
        %2037 = vmatpush.bf16.msra.mxu0 0
        %2038 = vmatpush.bf16.msra.mxu0 %v1586
        %2039 = vmatmul.bf16.gmra.mxu0 %v2029
        %v2040 = vpop.f32.mrf.mxu0
        %v2041 = vadd.f32 0.0, %v2040
        %v2042 = vpop.f32.mrf.mxu0
        %v2043 = vadd.f32 0.0, %v2042
        %2044 = vdwg.mxu0
        %v2047 = vunpack.c.l.b16 %v1997
        %v2048 = vunpack.c.l.b16 %v1998
        %v2049 = vpack.c.b16 %v2048, %v2047
        %v2051 = vsel %vm1896, %v2049, 0
        %2053 = vmatpush.bf16.msra.mxu0 0
        %2054 = vmatpush.bf16.msra.mxu0 0
        %2055 = vmatpush.bf16.msra.mxu0 0
        %2056 = vmatpush.bf16.msra.mxu0 0
        %2057 = vmatpush.bf16.msra.mxu0 0
        %2058 = vmatpush.bf16.msra.mxu0 0
        %2059 = vmatpush.bf16.msra.mxu0 0
        %2060 = vmatpush.bf16.msra.mxu0 %v1680
        %2061 = vmatmul.bf16.gmra.mxu0 %v2051
        %v2062 = vpop.f32.mrf.mxu0
        %v2063 = vadd.f32 0.0, %v2062
        %v2064 = vpop.f32.mrf.mxu0
        %v2065 = vadd.f32 0.0, %v2064
        %2066 = vdwg.mxu0
        %v2069 = vunpack.c.l.b16 %v1999
        %v2070 = vunpack.c.l.b16 %v2000
        %v2071 = vpack.c.b16 %v2070, %v2069
        %v2073 = vsel %vm1896, %v2071, 0
        %2075 = vmatpush.bf16.msra.mxu0 0
        %2076 = vmatpush.bf16.msra.mxu0 0
        %2077 = vmatpush.bf16.msra.mxu0 0
        %2078 = vmatpush.bf16.msra.mxu0 0
        %2079 = vmatpush.bf16.msra.mxu0 0
        %2080 = vmatpush.bf16.msra.mxu0 0
        %2081 = vmatpush.bf16.msra.mxu0 0
        %2082 = vmatpush.bf16.msra.mxu0 %v1774
        %2083 = vmatmul.bf16.gmra.mxu0 %v2073
        %v2084 = vpop.f32.mrf.mxu0
        %v2085 = vadd.f32 0.0, %v2084
        %v2086 = vpop.f32.mrf.mxu0
        %v2087 = vadd.f32 0.0, %v2086
        %2088 = vdwg.mxu0
        %2091 = vrot.lane.b32.xlu0 %v2041, 8
        %v2092 = vpop.permute.xlu0 %2091
        %2093 = vrot.lane.b32.xlu0 %v2043, 8
        %v2094 = vpop.permute.xlu0 %2093
        %2099 = vrot.lane.b32.xlu0 %v2063, 16
        %v2100 = vpop.permute.xlu0 %2099
        %2101 = vrot.lane.b32.xlu0 %v2065, 16
        %v2102 = vpop.permute.xlu0 %2101
        %2107 = vrot.lane.b32.xlu0 %v2085, 24
        %v2108 = vpop.permute.xlu0 %2107
        %2109 = vrot.lane.b32.xlu0 %v2087, 24
        %v2110 = vpop.permute.xlu0 %2109
        %v2113 = vsel %vm1785, %v2019, %v2092
        %v2114 = vsel %vm1785, %v2021, %v2094
        %v2115 = vsel %vm1896, %v2113, %v2100
        %v2116 = vsel %vm1896, %v2114, %v2102
        %vm2117 = vcmask 195584
        %v2118 = vsel %vm2117, %v2115, %v2108
        %v2119 = vsel %vm2117, %v2116, %v2110
        %v2120 = vld [vmem:[%s1123] sm:$0xff]
        %v2121 = vld [vmem:[%s1123 + $0x8] sm:$0xff]
        %v2122 = vld [vmem:[%s1123 + $0x10] sm:$0xff]
        %v2123 = vld [vmem:[%s1123 + $0x18] sm:$0xff]
        %v2124 = vpack.c.bf16 %v2119, %v2118
        %v2125 = vpack.c.bf16 %v2121, %v2120
        %v2126 = vpack.c.bf16 %v2123, %v2122
        %v2127 = vld [vmem:[%s1126] sm:$0x1]
        %v2129 = vperm.slane %v2127, 0
        %v2132 = vsel %vm1220, %v2124, 0
        %2134 = vmatpush.bf16.msra.mxu0 0
        %2135 = vmatpush.bf16.msra.mxu0 0
        %2136 = vmatpush.bf16.msra.mxu0 0
        %2137 = vmatpush.bf16.msra.mxu0 0
        %2138 = vmatpush.bf16.msra.mxu0 0
        %2139 = vmatpush.bf16.msra.mxu0 0
        %2140 = vmatpush.bf16.msra.mxu0 %v2126
        %2141 = vmatpush.bf16.msra.mxu0 %v2125
        %2142 = vmatmul.bf16.gmra.mxu0 %v2132
        %v2143 = vpop.f32.mrf.mxu0
        %v2144 = vadd.f32 %v2129, %v2143
        %v2145 = vpop.f32.mrf.mxu0
        %v2146 = vadd.f32 %v2129, %v2145
        %2147 = vdwg.mxu0
        %v2148 = vadd.f32 %v1207, %v2144
        %v2149 = vadd.f32 %v1208, %v2146
        %v2150 = vld [vmem:[%s1129] sm:$0x1]
        %v2151 = vld [vmem:[%s1132] sm:$0x1]
        %v2152 = vsel %vm1220, %v2148, 0.0
        %2153 = vadd.xlane.f32.xlu0 %v2152
        %v2154 = vpop.xlane.xlu0 %2153
        %v2155 = vsel %vm1220, %v2149, 0.0
        %2156 = vadd.xlane.f32.xlu0 %v2155
        %v2157 = vpop.xlane.xlu0 %2156
        %v2158 = vrcp.pop 32.0
        %v2159 = vmul.f32 32.0, %v2158
        %v2160 = vsub.f32 1.0, %v2159
        %v2161 = vmul.f32 %v2158, %v2160
        %v2162 = vadd.f32 %v2158, %v2161
        %vm2163 = vweird.f32 %v2158
        %v2164 = vsel %vm2163, %v2158, %v2162
        %v2165 = vmul.f32 %v2154, %v2164
        %v2166 = vmul.f32 %v2157, %v2164
        %v2167 = vsub.f32 %v2148, %v2165
        %v2168 = vsub.f32 %v2149, %v2166
        %v2169 = vmul.f32 %v2167, %v2167
        %v2170 = vmul.f32 %v2168, %v2168
        %v2171 = vsel %vm1220, %v2169, 0.0
        %2172 = vadd.xlane.f32.xlu0 %v2171
        %v2173 = vpop.xlane.xlu0 %2172
        %v2174 = vsel %vm1220, %v2170, 0.0
        %2175 = vadd.xlane.f32.xlu0 %v2174
        %v2176 = vpop.xlane.xlu0 %2175
        %v2177 = vmul.f32 %v2173, %v2164
        %v2178 = vmul.f32 %v2176, %v2164
        %v2179 = vadd.f32 %v2177, 1e-05
        %v2180 = vadd.f32 %v2178, 1e-05
        %v2181 = vrsqrt.pop %v2179
        %v2182 = vmul.f32 %v2181, %v2179
        %v2183 = vmul.f32 %v2182, %v2181
        %v2184 = vmul.f32 0.5, %v2183
        %v2185 = vsub.f32 1.5, %v2184
        %v2186 = vmul.f32 %v2181, %v2185
        %vm2187 = vweird.f32 %v2179
        %vm2188 = vweird.f32 %v2181
        %vm2189 = vmor %vm2187, %vm2188
        %v2190 = vsel %vm2189, %v2181, %v2186
        %v2191 = vrsqrt.pop %v2180
        %v2192 = vmul.f32 %v2191, %v2180
        %v2193 = vmul.f32 %v2192, %v2191
        %v2194 = vmul.f32 0.5, %v2193
        %v2195 = vsub.f32 1.5, %v2194
        %v2196 = vmul.f32 %v2191, %v2195
        %vm2197 = vweird.f32 %v2180
        %vm2198 = vweird.f32 %v2191
        %vm2199 = vmor %vm2197, %vm2198
        %v2200 = vsel %vm2199, %v2191, %v2196
        %v2201 = vmul.f32 %v2167, %v2190
        %v2202 = vmul.f32 %v2168, %v2200
        %v2204 = vperm.slane %v2150, 0
        %v2206 = vmul.f32 %v2201, %v2204
        %v2207 = vmul.f32 %v2202, %v2204
        %v2209 = vperm.slane %v2151, 0
        %v2211 = vadd.f32 %v2206, %v2209
        %v2212 = vadd.f32 %v2207, %v2209
        %v2213 = vld [vmem:[%s1137] sm:$0xff]
        %v2214 = vld [vmem:[%s1137 + $0x8] sm:$0xff]
        %v2215 = vld [vmem:[%s1137 + $0x10] sm:$0xff]
        %v2216 = vld [vmem:[%s1137 + $0x18] sm:$0xff]
        %v2217 = vpack.c.bf16 %v2212, %v2211
        %v2218 = vpack.c.bf16 %v2214, %v2213
        %v2219 = vpack.c.bf16 %v2216, %v2215
        %v2220 = vld [vmem:[%s1140] sm:$0x1]
        %v2222 = vperm.slane %v2220, 0
        %v2225 = vsel %vm1220, %v2217, 0
        %2227 = vmatpush.bf16.msra.mxu0 0
        %2228 = vmatpush.bf16.msra.mxu0 0
        %2229 = vmatpush.bf16.msra.mxu0 0
        %2230 = vmatpush.bf16.msra.mxu0 0
        %2231 = vmatpush.bf16.msra.mxu0 0
        %2232 = vmatpush.bf16.msra.mxu0 0
        %2233 = vmatpush.bf16.msra.mxu0 %v2219
        %2234 = vmatpush.bf16.msra.mxu0 %v2218
        %2235 = vmatmul.bf16.gmra.mxu0 %v2225
        %v2236 = vpop.f32.mrf.mxu0
        %v2237 = vadd.f32 %v2222, %v2236
        %v2238 = vpop.f32.mrf.mxu0
        %v2239 = vadd.f32 %v2222, %v2238
        %2240 = vdwg.mxu0
        %v2241 = vmul.f32 %v2237, %v2237
        %v2242 = vmul.f32 %v2239, %v2239
        %v2243 = vmul.f32 %v2237, %v2241
        %v2244 = vmul.f32 %v2239, %v2242
        %v2245 = vmul.f32 %v2243, 0.044715
        %v2246 = vmul.f32 %v2244, 0.044715
        %v2247 = vadd.f32 %v2237, %v2245
        %v2248 = vadd.f32 %v2239, %v2246
        %v2249 = vmul.f32 %v2247, 0.7978846
        %v2250 = vmul.f32 %v2248, 0.7978846
        %v2251 = vtanh.pop %v2249
        %v2252 = vtanh.pop %v2250
        %v2253 = vadd.f32 %v2251, 1.0
        %v2254 = vadd.f32 %v2252, 1.0
        %v2255 = vmul.f32 %v2253, 0.5
        %v2256 = vmul.f32 %v2254, 0.5
        %v2257 = vmul.f32 %v2237, %v2255
        %v2258 = vmul.f32 %v2239, %v2256
        %v2259 = vld [vmem:[%s1145] sm:$0xff]
        %v2260 = vld [vmem:[%s1145 + $0x8] sm:$0xff]
        %v2261 = vld [vmem:[%s1145 + $0x10] sm:$0xff]
        %v2262 = vld [vmem:[%s1145 + $0x18] sm:$0xff]
        %v2263 = vld [vmem:[%s1145 + $0x20] sm:$0xff]
        %v2264 = vld [vmem:[%s1145 + $0x28] sm:$0xff]
        %v2265 = vld [vmem:[%s1145 + $0x30] sm:$0xff]
        %v2266 = vld [vmem:[%s1145 + $0x38] sm:$0xff]
        %v2267 = vpack.c.bf16 %v2258, %v2257
        %v2268 = vpack.c.bf16 %v2260, %v2259
        %v2269 = vpack.c.bf16 %v2262, %v2261
        %v2270 = vpack.c.bf16 %v2264, %v2263
        %v2271 = vpack.c.bf16 %v2266, %v2265
        %v2272 = vld [vmem:[%s1148] sm:$0x1]
        %v2274 = vperm.slane %v2272, 0
        %vm2276 = vcmask 523264
        %v2278 = vsel %vm2276, %v2267, 0
        %2280 = vmatpush.bf16.msra.mxu0 0
        %2281 = vmatpush.bf16.msra.mxu0 0
        %2282 = vmatpush.bf16.msra.mxu0 0
        %2283 = vmatpush.bf16.msra.mxu0 0
        %2284 = vmatpush.bf16.msra.mxu0 %v2271
        %2285 = vmatpush.bf16.msra.mxu0 %v2270
        %2286 = vmatpush.bf16.msra.mxu0 %v2269
        %2287 = vmatpush.bf16.msra.mxu0 %v2268
        %2288 = vmatmul.bf16.gmra.mxu0 %v2278
        %v2289 = vpop.f32.mrf.mxu0
        %v2290 = vadd.f32 %v2274, %v2289
        %v2291 = vpop.f32.mrf.mxu0
        %v2292 = vadd.f32 %v2274, %v2291
        %2293 = vdwg.mxu0
        %v2294 = vadd.f32 %v2211, %v2290
        %v2295 = vadd.f32 %v2212, %v2292
        %v2296 = vld [vmem:[%s1151] sm:$0x1]
        %v2297 = vld [vmem:[%s1154] sm:$0x1]
        %v2298 = vsel %vm1220, %v2294, 0.0
        %2299 = vadd.xlane.f32.xlu0 %v2298
        %v2300 = vpop.xlane.xlu0 %2299
        %v2301 = vsel %vm1220, %v2295, 0.0
        %2302 = vadd.xlane.f32.xlu0 %v2301
        %v2303 = vpop.xlane.xlu0 %2302
        %v2304 = vmul.f32 %v2300, %v2164
        %v2305 = vmul.f32 %v2303, %v2164
        %v2306 = vsub.f32 %v2294, %v2304
        %v2307 = vsub.f32 %v2295, %v2305
        %v2308 = vmul.f32 %v2306, %v2306
        %v2309 = vmul.f32 %v2307, %v2307
        %v2310 = vsel %vm1220, %v2308, 0.0
        %2311 = vadd.xlane.f32.xlu0 %v2310
        %v2312 = vpop.xlane.xlu0 %2311
        %v2313 = vsel %vm1220, %v2309, 0.0
        %2314 = vadd.xlane.f32.xlu0 %v2313
        %v2315 = vpop.xlane.xlu0 %2314
        %v2316 = vmul.f32 %v2312, %v2164
        %v2317 = vmul.f32 %v2315, %v2164
        %v2318 = vadd.f32 %v2316, 1e-05
        %v2319 = vadd.f32 %v2317, 1e-05
        %v2320 = vrsqrt.pop %v2318
        %v2321 = vmul.f32 %v2320, %v2318
        %v2322 = vmul.f32 %v2321, %v2320
        %v2323 = vmul.f32 0.5, %v2322
        %v2324 = vsub.f32 1.5, %v2323
        %v2325 = vmul.f32 %v2320, %v2324
        %vm2326 = vweird.f32 %v2318
        %vm2327 = vweird.f32 %v2320
        %vm2328 = vmor %vm2326, %vm2327
        %v2329 = vsel %vm2328, %v2320, %v2325
        %v2330 = vrsqrt.pop %v2319
        %v2331 = vmul.f32 %v2330, %v2319
        %v2332 = vmul.f32 %v2331, %v2330
        %v2333 = vmul.f32 0.5, %v2332
        %v2334 = vsub.f32 1.5, %v2333
        %v2335 = vmul.f32 %v2330, %v2334
        %vm2336 = vweird.f32 %v2319
        %vm2337 = vweird.f32 %v2330
        %vm2338 = vmor %vm2336, %vm2337
        %v2339 = vsel %vm2338, %v2330, %v2335
        %v2340 = vmul.f32 %v2306, %v2329
        %v2341 = vmul.f32 %v2307, %v2339
        %v2343 = vperm.slane %v2296, 0
        %v2345 = vmul.f32 %v2340, %v2343
        %v2346 = vmul.f32 %v2341, %v2343
        %v2348 = vperm.slane %v2297, 0
        %v2350 = vadd.f32 %v2345, %v2348
        %v2351 = vadd.f32 %v2346, %v2348
        %2352 = vst.msk [vmem:[#allocation2] sm:$0xff] %vm1220, %v2350
        %2353 = vst.msk [vmem:[#allocation2 + $0x8] sm:$0xff] %vm1220, %v2351
        %p2354 = scmp.eq.s32.totalorder %s47, 1
        // Predicated region
        $region125: #{tpu_custom_call.1} parent=119 // pred_check
          %p2355 = pneg %p2354
        $region126: #{tpu_custom_call.1} parent=119 // pred_check_branch
          %2357 = sbr.rel (%p2355) target = $region128
        $region127: #{tpu_custom_call.1} parent=119 // pred_region
          %v2358 = vld [vmem:[%s21] sm:$0x1]
          %v2359 = vld [vmem:[%s22] sm:$0x1]
          %v2360 = vsel %vm1220, %v2350, 0.0
          %2361 = vadd.xlane.f32.xlu0 %v2360
          %v2362 = vpop.xlane.xlu0 %2361
          %v2363 = vsel %vm1220, %v2351, 0.0
          %2364 = vadd.xlane.f32.xlu0 %v2363
          %v2365 = vpop.xlane.xlu0 %2364
          %v2366 = vmul.f32 %v2362, %v2164
          %v2367 = vmul.f32 %v2365, %v2164
          %v2368 = vsub.f32 %v2350, %v2366
          %v2369 = vsub.f32 %v2351, %v2367
          %v2370 = vmul.f32 %v2368, %v2368
          %v2371 = vmul.f32 %v2369, %v2369
          %v2372 = vsel %vm1220, %v2370, 0.0
          %2373 = vadd.xlane.f32.xlu0 %v2372
          %v2374 = vpop.xlane.xlu0 %2373
          %v2375 = vsel %vm1220, %v2371, 0.0
          %2376 = vadd.xlane.f32.xlu0 %v2375
          %v2377 = vpop.xlane.xlu0 %2376
          %v2378 = vmul.f32 %v2374, %v2164
          %v2379 = vmul.f32 %v2377, %v2164
          %v2380 = vadd.f32 %v2378, 1e-05
          %v2381 = vadd.f32 %v2379, 1e-05
          %v2382 = vrsqrt.pop %v2380
          %v2383 = vmul.f32 %v2382, %v2380
          %v2384 = vmul.f32 %v2383, %v2382
          %v2385 = vmul.f32 0.5, %v2384
          %v2386 = vsub.f32 1.5, %v2385
          %v2387 = vmul.f32 %v2382, %v2386
          %vm2388 = vweird.f32 %v2380
          %vm2389 = vweird.f32 %v2382
          %vm2390 = vmor %vm2388, %vm2389
          %v2391 = vsel %vm2390, %v2382, %v2387
          %v2392 = vrsqrt.pop %v2381
          %v2393 = vmul.f32 %v2392, %v2381
          %v2394 = vmul.f32 %v2393, %v2392
          %v2395 = vmul.f32 0.5, %v2394
          %v2396 = vsub.f32 1.5, %v2395
          %v2397 = vmul.f32 %v2392, %v2396
          %vm2398 = vweird.f32 %v2381
          %vm2399 = vweird.f32 %v2392
          %vm2400 = vmor %vm2398, %vm2399
          %v2401 = vsel %vm2400, %v2392, %v2397
          %v2402 = vmul.f32 %v2368, %v2391
          %v2403 = vmul.f32 %v2369, %v2401
          %v2405 = vperm.slane %v2358, 0
          %v2407 = vmul.f32 %v2402, %v2405
          %v2408 = vmul.f32 %v2403, %v2405
          %v2410 = vperm.slane %v2359, 0
          %v2412 = vadd.f32 %v2407, %v2410
          %v2413 = vadd.f32 %v2408, %v2410
          %v2414 = vld [vmem:[%s23] sm:$0xff]
          %v2415 = vld [vmem:[%s23 + $0x8] sm:$0xff]
          %v2416 = vld [vmem:[%s23 + $0x10] sm:$0xff]
          %v2417 = vld [vmem:[%s23 + $0x18] sm:$0xff]
          %v2418 = vpack.c.bf16 %v2413, %v2412
          %v2419 = vpack.c.bf16 %v2415, %v2414
          %v2420 = vpack.c.bf16 %v2417, %v2416
          %v2421 = vld [vmem:[%s24] sm:$0x1]
          %v2423 = vperm.slane %v2421, 0
          %v2426 = vsel %vm1220, %v2418, 0
          %2428 = vmatpush.bf16.msra.mxu0 0
          %2429 = vmatpush.bf16.msra.mxu0 0
          %2430 = vmatpush.bf16.msra.mxu0 0
          %2431 = vmatpush.bf16.msra.mxu0 0
          %2432 = vmatpush.bf16.msra.mxu0 0
          %2433 = vmatpush.bf16.msra.mxu0 0
          %2434 = vmatpush.bf16.msra.mxu0 %v2420
          %2435 = vmatpush.bf16.msra.mxu0 %v2419
          %2436 = vmatmul.bf16.gmra.mxu0 %v2426
          %v2437 = vpop.f32.mrf.mxu0
          %v2438 = vadd.f32 %v2423, %v2437
          %v2439 = vpop.f32.mrf.mxu0
          %v2440 = vadd.f32 %v2423, %v2439
          %2441 = vdwg.mxu0
          %2442 = vst.msk [vmem:[%s1159] sm:$0xff] %vm1288, %v2438
          %2443 = vst.msk [vmem:[%s1159 + $0x8] sm:$0xff] %vm1288, %v2440
        $region128: #{tpu_custom_call.1} parent=119 // pred_fallthru
          _
        %p2444 = scmp.lt.s32.totalorder %s46, 1
        %s2445 = scalar_select %p2444, %s46, 1
        %s2446 = smul.addr %s2445, 2
        %s2447 = smul.addr %s2446, 8
        %s2448 = scalar_lea.vmem %s25, %s2447
        %s2449 = sand.u32 %s710, 1
        %s2450 = scalar_lea.sflag [#allocation4], %s2449
        %s2451 = sand.u32 %s710, 1
        %s2452 = smul.addr %s2451, 64
        %s2453 = scalar_lea.vmem [#allocation3], %s2452
        %p2454 = scmp.lt.s32.totalorder %s47, 1
        %s2455 = scalar_select %p2454, %s47, 1
        %p2456 = scmp.lt.s32.totalorder %s46, 1
        %s2457 = scalar_select %p2456, %s46, 1
        %s2458 = smul.addr %s2457, 2
        %s2459 = smul.addr %s2455, 4
        %s2460 = sadd.s32 %s2458, %s2459
        %s2461 = smul.addr %s2460, 8
        %s2462 = scalar_lea.vmem %s27, %s2461
        // Predicated region
        $region129: #{tpu_custom_call.1} parent=119 // pred_check
          %p2463 = pneg %p692
        $region130: #{tpu_custom_call.1} parent=119 // pred_check_branch
          %2465 = sbr.rel (%p2463) target = $region132
        $region131: #{tpu_custom_call.1} parent=119 // pred_region
          _
        $region132: #{tpu_custom_call.1} parent=119 // pred_fallthru
          _
        // Predicated region
        $region133: #{tpu_custom_call.1} parent=119 // pred_check
          %p2466 = pneg %p720
        $region134: #{tpu_custom_call.1} parent=119 // pred_check_branch
          %2468 = sbr.rel (%p2466) target = $region136
        $region135: #{tpu_custom_call.1} parent=119 // pred_region
          %2470 = vsyncadd %s2450, 0
          %s2471 = smul.addr %s46, 8
          %s2472 = smul.addr %s47, 16
          %s2473 = sadd.s32 %s2471, %s2472
          %s2474 = smul.addr %s2473, 8
          %s2475 = scalar_lea.hbm %s26, %s2474
          %s2476 = sshll.u32 %s2453, 4
          %s2477 = int_to_ptr.vmem [resolvable:$true] %s2476
          %s2478 = sshll.u32 %s2475, 4
          %s2479 = int_to_ptr.hbm [resolvable:$true] %s2478
          %2484 = dma.vmem_to_hbm [thread:$0]  %s2477, 1024, %s2479, %s2450, 128, 128, 8
        $region136: #{tpu_custom_call.1} parent=119 // pred_fallthru
          _
        // Predicated region
        $region137: #{tpu_custom_call.1} parent=119 // pred_check
          %p2485 = pneg %p748
        $region138: #{tpu_custom_call.1} parent=119 // pred_check_branch
          %2487 = sbr.rel (%p2485) target = $region140
        $region139: #{tpu_custom_call.1} parent=119 // pred_region
          _
        $region140: #{tpu_custom_call.1} parent=119 // pred_fallthru
          _
      $region120: #{tpu_custom_call.1} parent=5 // pred_fallthru
        _
      %p2488 = scmp.le.s32.totalorder 2, %s37
      // Predicated region
      $region141: #{tpu_custom_call.1} parent=5 // pred_check
        %p2489 = pneg %p2488
      $region142: #{tpu_custom_call.1} parent=5 // pred_check_branch
        %2491 = sbr.rel (%p2489) target = $region144
      $region143: #{tpu_custom_call.1} parent=5 // pred_region
        %s2492 = ssub.s32 %s37, 2
        // Predicated region
        $region145: #{tpu_custom_call.1} parent=143 // pred_check
          %p2493 = pneg %p698
        $region146: #{tpu_custom_call.1} parent=143 // pred_check_branch
          %2495 = sbr.rel (%p2493) target = $region148
        $region147: #{tpu_custom_call.1} parent=143 // pred_region
          %p2496 = scmp.lt.s32.totalorder %s48, 1
          %s2497 = scalar_select %p2496, %s48, 1
          %s2498 = smul.addr %s2497, 2
          %s2499 = smul.addr %s2498, 8
          %s2500 = scalar_lea.vmem %s25, %s2499
        $region148: #{tpu_custom_call.1} parent=143 // pred_fallthru
          _
        // Predicated region
        $region149: #{tpu_custom_call.1} parent=143 // pred_check
          %p2501 = pneg %p726
        $region150: #{tpu_custom_call.1} parent=143 // pred_check_branch
          %2503 = sbr.rel (%p2501) target = $region152
        $region151: #{tpu_custom_call.1} parent=143 // pred_region
          %s2504 = sand.u32 %s711, 1
          %s2505 = scalar_lea.sflag [#allocation4], %s2504
          %s2506 = sand.u32 %s711, 1
          %s2507 = smul.addr %s2506, 64
          %s2508 = scalar_lea.vmem [#allocation3], %s2507
          %2510 = dma.done %s2505, 1024
        $region152: #{tpu_custom_call.1} parent=143 // pred_fallthru
          _
        // Predicated region
        $region153: #{tpu_custom_call.1} parent=143 // pred_check
          %p2511 = pneg %p754
        $region154: #{tpu_custom_call.1} parent=143 // pred_check_branch
          %2513 = sbr.rel (%p2511) target = $region156
        $region155: #{tpu_custom_call.1} parent=143 // pred_region
          %p2514 = scmp.lt.s32.totalorder %s49, 1
          %s2515 = scalar_select %p2514, %s49, 1
          %p2516 = scmp.lt.s32.totalorder %s48, 1
          %s2517 = scalar_select %p2516, %s48, 1
          %s2518 = smul.addr %s2517, 2
          %s2519 = smul.addr %s2515, 4
          %s2520 = sadd.s32 %s2518, %s2519
          %s2521 = smul.addr %s2520, 8
          %s2522 = scalar_lea.vmem %s27, %s2521
        $region156: #{tpu_custom_call.1} parent=143 // pred_fallthru
          _
      $region144: #{tpu_custom_call.1} parent=5 // pred_fallthru
        _
    $region6: #{tpu_custom_call.1} parent=1 // loop_footer
      %s41 = sadd.s32 1, %s37
    $region7: #{tpu_custom_call.1} parent=1 // loop_footer_branch
      %36 = sbr.rel target = $region3
    $region8: #{tpu_custom_call.1} parent=1 // loop_exit
      _
    %2523 = vsyncpa [#allocation4], 1
    %s2524 = scalar_lea.sflag [#allocation4], 1
    %2525 = vsyncpa %s2524, 1

</llo_original>
